<compile_context>
chip_gen: v5e
topology: v5e:2x2
jax: 0.10.0
libtpu: 0.0.40
codegen_flags: <defaults>
</compile_context>

<pallas_src>
import jax
import jax.numpy as jnp
import numpy as np
from jax.experimental import pallas as pl
from jax.experimental.pallas import tpu as pltpu


# ----------------------------------------------------------------------------
# Hoisted, shape-only preprocessing
# ----------------------------------------------------------------------------
def interp_matrix(out_size, in_size):
    """Bilinear interpolation matrix (align_corners=True), shape (out, in)."""
    A = np.zeros((out_size, in_size), np.float32)
    if in_size == 1:
        A[:, 0] = 1.0
        return A
    scale = np.float32((in_size - 1) / (out_size - 1))
    coord = np.arange(out_size, dtype=np.float32) * scale
    lo = np.clip(np.floor(coord).astype(np.int64), 0, in_size - 2)
    frac = coord - lo.astype(np.float32)
    rows = np.arange(out_size)
    A[rows, lo] = 1.0 - frac
    A[rows, lo + 1] += frac
    return A


def init_params(key, C, S):
    ks = jax.random.split(key, 8)

    def u(k, shape, fan_in):
        b = 1.0 / np.sqrt(fan_in)
        return jax.random.uniform(k, shape, jnp.float32, -b, b)

    return {
        "w_so": u(ks[0], (C, C), C), "b_so": u(ks[1], (C,), C),
        "w_sg": u(ks[2], (C, C), C), "b_sg": u(ks[3], (C,), C),
        "w_g1": u(ks[4], (S, S), S), "b_g1": u(ks[5], (S,), S),
        "w_g2": u(ks[6], (C, C), C), "b_g2": u(ks[7], (C,), C),
    }


def prepare(params, C, H, W, stride=16):
    """Precompute kernel-ready constants once (hoisted out of forward)."""
    Hs, Ws = H // stride, W // stride
    S = Hs * Ws
    A_h = interp_matrix(H, Hs)                       # (H, Hs)
    A_w = interp_matrix(W, Ws)                       # (W, Ws)
    # Batched H-pass upsample weight: the whole x16 H-interpolation for all
    # channels is a single MXU matmul.  Columns are ordered (hs, c) to match
    # the row packing of the in-kernel W-pass intermediate:
    #   bd_up[c*H + h, hs*C + c] = A_h[h, hs]
    bd_up = np.zeros((C * H, Hs * C), np.float32)
    for c in range(C):
        bd_up[c * H:(c + 1) * H, c::C] = A_h
    return {
        # stacked shrink_origin / shrink_graph 1x1-conv weights -> one matmul
        "w_sosg": jnp.concatenate([params["w_so"], params["w_sg"]], axis=0),   # (2C, C)
        "b_sosg": jnp.concatenate([params["b_so"], params["b_sg"]]).reshape(2 * C, 1),
        "w_g1t": params["w_g1"].T,                                             # (S, S)
        "b_g1": params["b_g1"].reshape(1, S),
        "w_g2": params["w_g2"],                                                # (C, C)
        "b_g2": params["b_g2"].reshape(C, 1),
        "a_w_t": jnp.asarray(A_w.T),                                           # (Ws, W) lane-dense
        "bd_up": jnp.asarray(bd_up),                                           # (C*H, Hs*C)
    }


# ----------------------------------------------------------------------------
# Fully fused kernel: subsample -> shrink/graph -> x16 upsample -> concat
# ----------------------------------------------------------------------------
def forward(x, prep):
    n, C, H, W = x.shape
    Ws = prep["a_w_t"].shape[0]
    Hs = prep["bd_up"].shape[1] // C
    S = Hs * Ws
    sh, sw = H // Hs, W // Ws

    def kernel(x_ref, wss_ref, bss_ref, wg1t_ref, bg1_ref, wg2_ref, bg2_ref,
               awt_ref, bdup_ref, o_ref, xs_s, t_s):
        # ---- channel concat pass-through: out[:, :C] = x (one bulk copy) ----
        o_ref[0, 0:C, :, :] = x_ref[0, :, :, :]

        # ---- stride-16 subsample of the already-resident x block ----
        # Exact single-lane copies into a lane-packed (C, S) scratch.
        # TODO(synk): a stride-16 lane gather (x[..., ::16, ::16]) has no
        # guaranteed Mosaic lowering; exact copies keep xs bit-identical to
        # the reference (a 0/1 selection matmul would round x through the
        # MXU's reduced-precision pass).
        for hs in range(Hs):
            for ws in range(Ws):
                s = hs * Ws + ws
                xs_s[:, s:s + 1] = x_ref[0, :, hs * sh, ws * sw:ws * sw + 1]
        xs = xs_s[...]                                                     # (C, S)

        # ---- shrink_origin / shrink_graph: stacked 1x1-conv channel matmul ----
        ss = jnp.dot(wss_ref[...], xs,
                     preferred_element_type=jnp.float32) + bss_ref[...]    # (2C, S)
        so = ss[0:C, :]
        sg = ss[C:2 * C, :]

        # ---- graph_1: per-batch S x S node mixing + ReLU ----
        g1 = jnp.dot(sg, wg1t_ref[...],
                     preferred_element_type=jnp.float32) + bg1_ref[...]    # (C, S)
        g1 = jnp.maximum(g1, 0.0)

        # ---- graph_2: channel mixing + shrink_origin residual ----
        shrink = so + jnp.dot(wg2_ref[...], g1,
                              preferred_element_type=jnp.float32) + bg2_ref[...]  # (C, S)

        # ---- bilinear x16 upsample (align_corners=True), separable ----
        # W pass: per hs-slice, lane-dense (Ws, W) operand; rows packed (hs, c).
        for hs in range(Hs):
            t_s[hs * C:(hs + 1) * C, :] = jnp.dot(
                shrink[:, hs * Ws:(hs + 1) * Ws], awt_ref[...],
                preferred_element_type=jnp.float32)                        # (C, W)
        # H pass: ALL channels in one matmul against the (C*H, Hs*C) block weight.
        up = jnp.dot(bdup_ref[...], t_s[...],
                     preferred_element_type=jnp.float32)                   # (C*H, W)
        o_ref[0, C:2 * C, :, :] = up.reshape(C, H, W)

    return pl.pallas_call(
        kernel,
        out_shape=jax.ShapeDtypeStruct((n, 2 * C, H, W), jnp.float32),
        grid_spec=pltpu.PrefetchScalarGridSpec(
            num_scalar_prefetch=0,
            grid=(n,),
            in_specs=[
                pl.BlockSpec((1, C, H, W), lambda b: (b, 0, 0, 0)),
                pl.BlockSpec((2 * C, C), lambda b: (0, 0)),
                pl.BlockSpec((2 * C, 1), lambda b: (0, 0)),
                pl.BlockSpec((S, S), lambda b: (0, 0)),
                pl.BlockSpec((1, S), lambda b: (0, 0)),
                pl.BlockSpec((C, C), lambda b: (0, 0)),
                pl.BlockSpec((C, 1), lambda b: (0, 0)),
                pl.BlockSpec((Ws, W), lambda b: (0, 0)),
                pl.BlockSpec((C * H, Hs * C), lambda b: (0, 0)),
            ],
            out_specs=pl.BlockSpec((1, 2 * C, H, W), lambda b: (b, 0, 0, 0)),
            scratch_shapes=[
                pltpu.VMEM((C, S), jnp.float32),        # lane-packed subsampled x
                pltpu.VMEM((Hs * C, W), jnp.float32),   # upsample W-pass intermediate
            ],
        ),
        compiler_params=pltpu.CompilerParams(
            dimension_semantics=("parallel",)),
    )(x, prep["w_sosg"], prep["b_sosg"], prep["w_g1t"], prep["b_g1"],
      prep["w_g2"], prep["b_g2"], prep["a_w_t"], prep["bd_up"])


# ----------------------------------------------------------------------------
# Pure-JAX reference (independent gather-based bilinear upsample)
# ----------------------------------------------------------------------------
def ref_forward(x, params, stride=16):
    hp = jax.lax.Precision.HIGHEST
    n, C, H, W = x.shape
    xs = x[:, :, ::stride, ::stride]
    Hs, Ws = xs.shape[2], xs.shape[3]
    S = Hs * Ws
    xsf = xs.reshape(n, C, S)
    so = jnp.einsum("oi,bis->bos", params["w_so"], xsf, precision=hp) + params["b_so"][None, :, None]
    sg = jnp.einsum("oi,bis->bos", params["w_sg"], xsf, precision=hp) + params["b_sg"][None, :, None]
    g1 = jnp.einsum("bci,si->bcs", sg, params["w_g1"], precision=hp) + params["b_g1"][None, None, :]
    g1 = jnp.maximum(g1, 0.0)
    g2 = jnp.einsum("oi,bis->bos", params["w_g2"], g1, precision=hp) + params["b_g2"][None, :, None]
    shrink = (so + g2).reshape(n, C, Hs, Ws)

    Ho, Wo = Hs * stride, Ws * stride
    yi = jnp.arange(Ho, dtype=jnp.float32) * ((Hs - 1) / (Ho - 1)) if Hs > 1 else jnp.zeros((Ho,), jnp.float32)
    xi = jnp.arange(Wo, dtype=jnp.float32) * ((Ws - 1) / (Wo - 1)) if Ws > 1 else jnp.zeros((Wo,), jnp.float32)
    y0 = jnp.floor(yi).astype(jnp.int32); y1 = jnp.minimum(y0 + 1, Hs - 1); fy = yi - y0
    x0 = jnp.floor(xi).astype(jnp.int32); x1 = jnp.minimum(x0 + 1, Ws - 1); fx = xi - x0
    row0 = shrink[:, :, y0, :]
    row1 = shrink[:, :, y1, :]
    top = row0[:, :, :, x0] * (1 - fx)[None, None, None, :] + row0[:, :, :, x1] * fx[None, None, None, :]
    bot = row1[:, :, :, x0] * (1 - fx)[None, None, None, :] + row1[:, :, :, x1] * fx[None, None, None, :]
    up = top * (1 - fy)[None, None, :, None] + bot * fy[None, None, :, None]
    return jnp.concatenate([x, up], axis=1)


if __name__ == "__main__":
    # node=8 default => graph_1 is Conv1d(64, 64), so the stride-16 shrink must
    # yield 8x8 nodes => H = W = 128.  n=2, C=4 keeps everything small.
    n, C, H, W = 2, 4, 128, 128
    x = jax.random.normal(jax.random.PRNGKey(0), (n, C, H, W), dtype=jnp.float32)
    S = (H // 16) * (W // 16)
    params = init_params(jax.random.PRNGKey(42), C, S)
    prep = prepare(params, C=C, H=H, W=W, stride=16)   # hoisted, built once

    fwd = jax.jit(forward)
    out = jax.block_until_ready(fwd(x, prep))
    assert out.shape == (n, 2 * C, H, W), out.shape

    ref = jax.block_until_ready(ref_forward(x, params))
    np.testing.assert_allclose(np.asarray(out), np.asarray(ref), atol=1e-2, rtol=1e-2)

    print("KERNEL_OK")
</pallas_src>

<mosaic_0001>
module attributes {stable_mosaic.version = 11 : i64} {
  func.func @kernel(%arg0: i32, %arg1: memref<1x4x128x128xf32, #tpu.memory_space<vmem>>, %arg2: memref<8x4xf32, #tpu.memory_space<vmem>>, %arg3: memref<8x1xf32, #tpu.memory_space<vmem>>, %arg4: memref<64x64xf32, #tpu.memory_space<vmem>>, %arg5: memref<1x64xf32, #tpu.memory_space<vmem>>, %arg6: memref<4x4xf32, #tpu.memory_space<vmem>>, %arg7: memref<4x1xf32, #tpu.memory_space<vmem>>, %arg8: memref<8x128xf32, #tpu.memory_space<vmem>>, %arg9: memref<512x32xf32, #tpu.memory_space<vmem>>, %arg10: memref<1x8x128x128xf32, #tpu.memory_space<vmem>>, %arg11: memref<4x64xf32, #tpu.memory_space<vmem>>, %arg12: memref<32x128xf32, #tpu.memory_space<vmem>>) attributes {dimension_semantics = [#tpu.dimension_semantics<parallel>], iteration_bounds = array<i64: 2>, scalar_prefetch = 0 : i64, scratch_operands = 2 : i64, tpu.core_type = #tpu.core_type<tc>, window_params = [{transform_indices = @transform_0, window_bounds = array<i64: 1, 4, 128, 128>}, {pipeline_mode = #tpu.pipeline_mode<synchronous>, transform_indices = @transform_1, window_bounds = array<i64: 8, 4>}, {pipeline_mode = #tpu.pipeline_mode<synchronous>, transform_indices = @transform_2, window_bounds = array<i64: 8, 1>}, {pipeline_mode = #tpu.pipeline_mode<synchronous>, transform_indices = @transform_3, window_bounds = array<i64: 64, 64>}, {pipeline_mode = #tpu.pipeline_mode<synchronous>, transform_indices = @transform_4, window_bounds = array<i64: 1, 64>}, {pipeline_mode = #tpu.pipeline_mode<synchronous>, transform_indices = @transform_5, window_bounds = array<i64: 4, 4>}, {pipeline_mode = #tpu.pipeline_mode<synchronous>, transform_indices = @transform_6, window_bounds = array<i64: 4, 1>}, {pipeline_mode = #tpu.pipeline_mode<synchronous>, transform_indices = @transform_7, window_bounds = array<i64: 8, 128>}, {pipeline_mode = #tpu.pipeline_mode<synchronous>, transform_indices = @transform_8, window_bounds = array<i64: 512, 32>}, {transform_indices = @transform_9, window_bounds = array<i64: 1, 8, 128, 128>}]} {
    %c0 = arith.constant 0 : index
    %c0_0 = arith.constant 0 : index
    %c0_1 = arith.constant 0 : index
    %c0_2 = arith.constant 0 : index
    %0 = vector.load %arg1[%c0, %c0_0, %c0_1, %c0_2] : memref<1x4x128x128xf32, #tpu.memory_space<vmem>>, vector<1x4x128x128xf32>
    %1 = vector.shape_cast %0 : vector<1x4x128x128xf32> to vector<4x128x128xf32>
    %c0_3 = arith.constant 0 : index
    %c0_4 = arith.constant 0 : index
    %c0_5 = arith.constant 0 : index
    %c0_6 = arith.constant 0 : index
    %2 = vector.load %arg10[%c0_3, %c0_4, %c0_5, %c0_6] : memref<1x8x128x128xf32, #tpu.memory_space<vmem>>, vector<1x4x128x128xf32>
    %3 = vector.shape_cast %2 : vector<1x4x128x128xf32> to vector<4x128x128xf32>
    %4 = vector.shape_cast %1 : vector<4x128x128xf32> to vector<1x4x128x128xf32>
    tpu.vector_store %arg10[%c0_3, %c0_4, %c0_5, %c0_6], %4 {strides = array<i32>} : memref<1x8x128x128xf32, #tpu.memory_space<vmem>>, vector<1x4x128x128xf32>,
    %c0_7 = arith.constant 0 : index
    %c0_8 = arith.constant 0 : index
    %c0_9 = arith.constant 0 : index
    %c0_10 = arith.constant 0 : index
    %5 = vector.load %arg1[%c0_7, %c0_8, %c0_9, %c0_10] : memref<1x4x128x128xf32, #tpu.memory_space<vmem>>, vector<1x4x1x1xf32>
    %6 = vector.shape_cast %5 : vector<1x4x1x1xf32> to vector<4x1xf32>
    %c0_11 = arith.constant 0 : index
    %c0_12 = arith.constant 0 : index
    %7 = vector.load %arg11[%c0_11, %c0_12] : memref<4x64xf32, #tpu.memory_space<vmem>>, vector<4x1xf32>
    tpu.vector_store %arg11[%c0_11, %c0_12], %6 {strides = array<i32>} : memref<4x64xf32, #tpu.memory_space<vmem>>, vector<4x1xf32>,
    %c0_13 = arith.constant 0 : index
    %c0_14 = arith.constant 0 : index
    %c0_15 = arith.constant 0 : index
    %c16 = arith.constant 16 : index
    %8 = vector.load %arg1[%c0_13, %c0_14, %c0_15, %c16] : memref<1x4x128x128xf32, #tpu.memory_space<vmem>>, vector<1x4x1x1xf32>
    %9 = vector.shape_cast %8 : vector<1x4x1x1xf32> to vector<4x1xf32>
    %c0_16 = arith.constant 0 : index
    %c1 = arith.constant 1 : index
    %10 = vector.load %arg11[%c0_16, %c1] : memref<4x64xf32, #tpu.memory_space<vmem>>, vector<4x1xf32>
    tpu.vector_store %arg11[%c0_16, %c1], %9 {strides = array<i32>} : memref<4x64xf32, #tpu.memory_space<vmem>>, vector<4x1xf32>,
    %c0_17 = arith.constant 0 : index
    %c0_18 = arith.constant 0 : index
    %c0_19 = arith.constant 0 : index
    %c32 = arith.constant 32 : index
    %11 = vector.load %arg1[%c0_17, %c0_18, %c0_19, %c32] : memref<1x4x128x128xf32, #tpu.memory_space<vmem>>, vector<1x4x1x1xf32>
    %12 = vector.shape_cast %11 : vector<1x4x1x1xf32> to vector<4x1xf32>
    %c0_20 = arith.constant 0 : index
    %c2 = arith.constant 2 : index
    %13 = vector.load %arg11[%c0_20, %c2] : memref<4x64xf32, #tpu.memory_space<vmem>>, vector<4x1xf32>
    tpu.vector_store %arg11[%c0_20, %c2], %12 {strides = array<i32>} : memref<4x64xf32, #tpu.memory_space<vmem>>, vector<4x1xf32>,
    %c0_21 = arith.constant 0 : index
    %c0_22 = arith.constant 0 : index
    %c0_23 = arith.constant 0 : index
    %c48 = arith.constant 48 : index
    %14 = vector.load %arg1[%c0_21, %c0_22, %c0_23, %c48] : memref<1x4x128x128xf32, #tpu.memory_space<vmem>>, vector<1x4x1x1xf32>
    %15 = vector.shape_cast %14 : vector<1x4x1x1xf32> to vector<4x1xf32>
    %c0_24 = arith.constant 0 : index
    %c3 = arith.constant 3 : index
    %16 = vector.load %arg11[%c0_24, %c3] : memref<4x64xf32, #tpu.memory_space<vmem>>, vector<4x1xf32>
    tpu.vector_store %arg11[%c0_24, %c3], %15 {strides = array<i32>} : memref<4x64xf32, #tpu.memory_space<vmem>>, vector<4x1xf32>,
    %c0_25 = arith.constant 0 : index
    %c0_26 = arith.constant 0 : index
    %c0_27 = arith.constant 0 : index
    %c64 = arith.constant 64 : index
    %17 = vector.load %arg1[%c0_25, %c0_26, %c0_27, %c64] : memref<1x4x128x128xf32, #tpu.memory_space<vmem>>, vector<1x4x1x1xf32>
    %18 = vector.shape_cast %17 : vector<1x4x1x1xf32> to vector<4x1xf32>
    %c0_28 = arith.constant 0 : index
    %c4 = arith.constant 4 : index
    %19 = vector.load %arg11[%c0_28, %c4] : memref<4x64xf32, #tpu.memory_space<vmem>>, vector<4x1xf32>
    tpu.vector_store %arg11[%c0_28, %c4], %18 {strides = array<i32>} : memref<4x64xf32, #tpu.memory_space<vmem>>, vector<4x1xf32>,
    %c0_29 = arith.constant 0 : index
    %c0_30 = arith.constant 0 : index
    %c0_31 = arith.constant 0 : index
    %c80 = arith.constant 80 : index
    %20 = vector.load %arg1[%c0_29, %c0_30, %c0_31, %c80] : memref<1x4x128x128xf32, #tpu.memory_space<vmem>>, vector<1x4x1x1xf32>
    %21 = vector.shape_cast %20 : vector<1x4x1x1xf32> to vector<4x1xf32>
    %c0_32 = arith.constant 0 : index
    %c5 = arith.constant 5 : index
    %22 = vector.load %arg11[%c0_32, %c5] : memref<4x64xf32, #tpu.memory_space<vmem>>, vector<4x1xf32>
    tpu.vector_store %arg11[%c0_32, %c5], %21 {strides = array<i32>} : memref<4x64xf32, #tpu.memory_space<vmem>>, vector<4x1xf32>,
    %c0_33 = arith.constant 0 : index
    %c0_34 = arith.constant 0 : index
    %c0_35 = arith.constant 0 : index
    %c96 = arith.constant 96 : index
    %23 = vector.load %arg1[%c0_33, %c0_34, %c0_35, %c96] : memref<1x4x128x128xf32, #tpu.memory_space<vmem>>, vector<1x4x1x1xf32>
    %24 = vector.shape_cast %23 : vector<1x4x1x1xf32> to vector<4x1xf32>
    %c0_36 = arith.constant 0 : index
    %c6 = arith.constant 6 : index
    %25 = vector.load %arg11[%c0_36, %c6] : memref<4x64xf32, #tpu.memory_space<vmem>>, vector<4x1xf32>
    tpu.vector_store %arg11[%c0_36, %c6], %24 {strides = array<i32>} : memref<4x64xf32, #tpu.memory_space<vmem>>, vector<4x1xf32>,
    %c0_37 = arith.constant 0 : index
    %c0_38 = arith.constant 0 : index
    %c0_39 = arith.constant 0 : index
    %c112 = arith.constant 112 : index
    %26 = vector.load %arg1[%c0_37, %c0_38, %c0_39, %c112] : memref<1x4x128x128xf32, #tpu.memory_space<vmem>>, vector<1x4x1x1xf32>
    %27 = vector.shape_cast %26 : vector<1x4x1x1xf32> to vector<4x1xf32>
    %c0_40 = arith.constant 0 : index
    %c7 = arith.constant 7 : index
    %28 = vector.load %arg11[%c0_40, %c7] : memref<4x64xf32, #tpu.memory_space<vmem>>, vector<4x1xf32>
    tpu.vector_store %arg11[%c0_40, %c7], %27 {strides = array<i32>} : memref<4x64xf32, #tpu.memory_space<vmem>>, vector<4x1xf32>,
    %c0_41 = arith.constant 0 : index
    %c0_42 = arith.constant 0 : index
    %c16_43 = arith.constant 16 : index
    %c0_44 = arith.constant 0 : index
    %29 = vector.load %arg1[%c0_41, %c0_42, %c16_43, %c0_44] : memref<1x4x128x128xf32, #tpu.memory_space<vmem>>, vector<1x4x1x1xf32>
    %30 = vector.shape_cast %29 : vector<1x4x1x1xf32> to vector<4x1xf32>
    %c0_45 = arith.constant 0 : index
    %c8 = arith.constant 8 : index
    %31 = vector.load %arg11[%c0_45, %c8] : memref<4x64xf32, #tpu.memory_space<vmem>>, vector<4x1xf32>
    tpu.vector_store %arg11[%c0_45, %c8], %30 {strides = array<i32>} : memref<4x64xf32, #tpu.memory_space<vmem>>, vector<4x1xf32>,
    %c0_46 = arith.constant 0 : index
    %c0_47 = arith.constant 0 : index
    %c16_48 = arith.constant 16 : index
    %c16_49 = arith.constant 16 : index
    %32 = vector.load %arg1[%c0_46, %c0_47, %c16_48, %c16_49] : memref<1x4x128x128xf32, #tpu.memory_space<vmem>>, vector<1x4x1x1xf32>
    %33 = vector.shape_cast %32 : vector<1x4x1x1xf32> to vector<4x1xf32>
    %c0_50 = arith.constant 0 : index
    %c9 = arith.constant 9 : index
    %34 = vector.load %arg11[%c0_50, %c9] : memref<4x64xf32, #tpu.memory_space<vmem>>, vector<4x1xf32>
    tpu.vector_store %arg11[%c0_50, %c9], %33 {strides = array<i32>} : memref<4x64xf32, #tpu.memory_space<vmem>>, vector<4x1xf32>,
    %c0_51 = arith.constant 0 : index
    %c0_52 = arith.constant 0 : index
    %c16_53 = arith.constant 16 : index
    %c32_54 = arith.constant 32 : index
    %35 = vector.load %arg1[%c0_51, %c0_52, %c16_53, %c32_54] : memref<1x4x128x128xf32, #tpu.memory_space<vmem>>, vector<1x4x1x1xf32>
    %36 = vector.shape_cast %35 : vector<1x4x1x1xf32> to vector<4x1xf32>
    %c0_55 = arith.constant 0 : index
    %c10 = arith.constant 10 : index
    %37 = vector.load %arg11[%c0_55, %c10] : memref<4x64xf32, #tpu.memory_space<vmem>>, vector<4x1xf32>
    tpu.vector_store %arg11[%c0_55, %c10], %36 {strides = array<i32>} : memref<4x64xf32, #tpu.memory_space<vmem>>, vector<4x1xf32>,
    %c0_56 = arith.constant 0 : index
    %c0_57 = arith.constant 0 : index
    %c16_58 = arith.constant 16 : index
    %c48_59 = arith.constant 48 : index
    %38 = vector.load %arg1[%c0_56, %c0_57, %c16_58, %c48_59] : memref<1x4x128x128xf32, #tpu.memory_space<vmem>>, vector<1x4x1x1xf32>
    %39 = vector.shape_cast %38 : vector<1x4x1x1xf32> to vector<4x1xf32>
    %c0_60 = arith.constant 0 : index
    %c11 = arith.constant 11 : index
    %40 = vector.load %arg11[%c0_60, %c11] : memref<4x64xf32, #tpu.memory_space<vmem>>, vector<4x1xf32>
    tpu.vector_store %arg11[%c0_60, %c11], %39 {strides = array<i32>} : memref<4x64xf32, #tpu.memory_space<vmem>>, vector<4x1xf32>,
    %c0_61 = arith.constant 0 : index
    %c0_62 = arith.constant 0 : index
    %c16_63 = arith.constant 16 : index
    %c64_64 = arith.constant 64 : index
    %41 = vector.load %arg1[%c0_61, %c0_62, %c16_63, %c64_64] : memref<1x4x128x128xf32, #tpu.memory_space<vmem>>, vector<1x4x1x1xf32>
    %42 = vector.shape_cast %41 : vector<1x4x1x1xf32> to vector<4x1xf32>
    %c0_65 = arith.constant 0 : index
    %c12 = arith.constant 12 : index
    %43 = vector.load %arg11[%c0_65, %c12] : memref<4x64xf32, #tpu.memory_space<vmem>>, vector<4x1xf32>
    tpu.vector_store %arg11[%c0_65, %c12], %42 {strides = array<i32>} : memref<4x64xf32, #tpu.memory_space<vmem>>, vector<4x1xf32>,
    %c0_66 = arith.constant 0 : index
    %c0_67 = arith.constant 0 : index
    %c16_68 = arith.constant 16 : index
    %c80_69 = arith.constant 80 : index
    %44 = vector.load %arg1[%c0_66, %c0_67, %c16_68, %c80_69] : memref<1x4x128x128xf32, #tpu.memory_space<vmem>>, vector<1x4x1x1xf32>
    %45 = vector.shape_cast %44 : vector<1x4x1x1xf32> to vector<4x1xf32>
    %c0_70 = arith.constant 0 : index
    %c13 = arith.constant 13 : index
    %46 = vector.load %arg11[%c0_70, %c13] : memref<4x64xf32, #tpu.memory_space<vmem>>, vector<4x1xf32>
    tpu.vector_store %arg11[%c0_70, %c13], %45 {strides = array<i32>} : memref<4x64xf32, #tpu.memory_space<vmem>>, vector<4x1xf32>,
    %c0_71 = arith.constant 0 : index
    %c0_72 = arith.constant 0 : index
    %c16_73 = arith.constant 16 : index
    %c96_74 = arith.constant 96 : index
    %47 = vector.load %arg1[%c0_71, %c0_72, %c16_73, %c96_74] : memref<1x4x128x128xf32, #tpu.memory_space<vmem>>, vector<1x4x1x1xf32>
    %48 = vector.shape_cast %47 : vector<1x4x1x1xf32> to vector<4x1xf32>
    %c0_75 = arith.constant 0 : index
    %c14 = arith.constant 14 : index
    %49 = vector.load %arg11[%c0_75, %c14] : memref<4x64xf32, #tpu.memory_space<vmem>>, vector<4x1xf32>
    tpu.vector_store %arg11[%c0_75, %c14], %48 {strides = array<i32>} : memref<4x64xf32, #tpu.memory_space<vmem>>, vector<4x1xf32>,
    %c0_76 = arith.constant 0 : index
    %c0_77 = arith.constant 0 : index
    %c16_78 = arith.constant 16 : index
    %c112_79 = arith.constant 112 : index
    %50 = vector.load %arg1[%c0_76, %c0_77, %c16_78, %c112_79] : memref<1x4x128x128xf32, #tpu.memory_space<vmem>>, vector<1x4x1x1xf32>
    %51 = vector.shape_cast %50 : vector<1x4x1x1xf32> to vector<4x1xf32>
    %c0_80 = arith.constant 0 : index
    %c15 = arith.constant 15 : index
    %52 = vector.load %arg11[%c0_80, %c15] : memref<4x64xf32, #tpu.memory_space<vmem>>, vector<4x1xf32>
    tpu.vector_store %arg11[%c0_80, %c15], %51 {strides = array<i32>} : memref<4x64xf32, #tpu.memory_space<vmem>>, vector<4x1xf32>,
    %c0_81 = arith.constant 0 : index
    %c0_82 = arith.constant 0 : index
    %c32_83 = arith.constant 32 : index
    %c0_84 = arith.constant 0 : index
    %53 = vector.load %arg1[%c0_81, %c0_82, %c32_83, %c0_84] : memref<1x4x128x128xf32, #tpu.memory_space<vmem>>, vector<1x4x1x1xf32>
    %54 = vector.shape_cast %53 : vector<1x4x1x1xf32> to vector<4x1xf32>
    %c0_85 = arith.constant 0 : index
    %c16_86 = arith.constant 16 : index
    %55 = vector.load %arg11[%c0_85, %c16_86] : memref<4x64xf32, #tpu.memory_space<vmem>>, vector<4x1xf32>
    tpu.vector_store %arg11[%c0_85, %c16_86], %54 {strides = array<i32>} : memref<4x64xf32, #tpu.memory_space<vmem>>, vector<4x1xf32>,
    %c0_87 = arith.constant 0 : index
    %c0_88 = arith.constant 0 : index
    %c32_89 = arith.constant 32 : index
    %c16_90 = arith.constant 16 : index
    %56 = vector.load %arg1[%c0_87, %c0_88, %c32_89, %c16_90] : memref<1x4x128x128xf32, #tpu.memory_space<vmem>>, vector<1x4x1x1xf32>
    %57 = vector.shape_cast %56 : vector<1x4x1x1xf32> to vector<4x1xf32>
    %c0_91 = arith.constant 0 : index
    %c17 = arith.constant 17 : index
    %58 = vector.load %arg11[%c0_91, %c17] : memref<4x64xf32, #tpu.memory_space<vmem>>, vector<4x1xf32>
    tpu.vector_store %arg11[%c0_91, %c17], %57 {strides = array<i32>} : memref<4x64xf32, #tpu.memory_space<vmem>>, vector<4x1xf32>,
    %c0_92 = arith.constant 0 : index
    %c0_93 = arith.constant 0 : index
    %c32_94 = arith.constant 32 : index
    %c32_95 = arith.constant 32 : index
    %59 = vector.load %arg1[%c0_92, %c0_93, %c32_94, %c32_95] : memref<1x4x128x128xf32, #tpu.memory_space<vmem>>, vector<1x4x1x1xf32>
    %60 = vector.shape_cast %59 : vector<1x4x1x1xf32> to vector<4x1xf32>
    %c0_96 = arith.constant 0 : index
    %c18 = arith.constant 18 : index
    %61 = vector.load %arg11[%c0_96, %c18] : memref<4x64xf32, #tpu.memory_space<vmem>>, vector<4x1xf32>
    tpu.vector_store %arg11[%c0_96, %c18], %60 {strides = array<i32>} : memref<4x64xf32, #tpu.memory_space<vmem>>, vector<4x1xf32>,
    %c0_97 = arith.constant 0 : index
    %c0_98 = arith.constant 0 : index
    %c32_99 = arith.constant 32 : index
    %c48_100 = arith.constant 48 : index
    %62 = vector.load %arg1[%c0_97, %c0_98, %c32_99, %c48_100] : memref<1x4x128x128xf32, #tpu.memory_space<vmem>>, vector<1x4x1x1xf32>
    %63 = vector.shape_cast %62 : vector<1x4x1x1xf32> to vector<4x1xf32>
    %c0_101 = arith.constant 0 : index
    %c19 = arith.constant 19 : index
    %64 = vector.load %arg11[%c0_101, %c19] : memref<4x64xf32, #tpu.memory_space<vmem>>, vector<4x1xf32>
    tpu.vector_store %arg11[%c0_101, %c19], %63 {strides = array<i32>} : memref<4x64xf32, #tpu.memory_space<vmem>>, vector<4x1xf32>,
    %c0_102 = arith.constant 0 : index
    %c0_103 = arith.constant 0 : index
    %c32_104 = arith.constant 32 : index
    %c64_105 = arith.constant 64 : index
    %65 = vector.load %arg1[%c0_102, %c0_103, %c32_104, %c64_105] : memref<1x4x128x128xf32, #tpu.memory_space<vmem>>, vector<1x4x1x1xf32>
    %66 = vector.shape_cast %65 : vector<1x4x1x1xf32> to vector<4x1xf32>
    %c0_106 = arith.constant 0 : index
    %c20 = arith.constant 20 : index
    %67 = vector.load %arg11[%c0_106, %c20] : memref<4x64xf32, #tpu.memory_space<vmem>>, vector<4x1xf32>
    tpu.vector_store %arg11[%c0_106, %c20], %66 {strides = array<i32>} : memref<4x64xf32, #tpu.memory_space<vmem>>, vector<4x1xf32>,
    %c0_107 = arith.constant 0 : index
    %c0_108 = arith.constant 0 : index
    %c32_109 = arith.constant 32 : index
    %c80_110 = arith.constant 80 : index
    %68 = vector.load %arg1[%c0_107, %c0_108, %c32_109, %c80_110] : memref<1x4x128x128xf32, #tpu.memory_space<vmem>>, vector<1x4x1x1xf32>
    %69 = vector.shape_cast %68 : vector<1x4x1x1xf32> to vector<4x1xf32>
    %c0_111 = arith.constant 0 : index
    %c21 = arith.constant 21 : index
    %70 = vector.load %arg11[%c0_111, %c21] : memref<4x64xf32, #tpu.memory_space<vmem>>, vector<4x1xf32>
    tpu.vector_store %arg11[%c0_111, %c21], %69 {strides = array<i32>} : memref<4x64xf32, #tpu.memory_space<vmem>>, vector<4x1xf32>,
    %c0_112 = arith.constant 0 : index
    %c0_113 = arith.constant 0 : index
    %c32_114 = arith.constant 32 : index
    %c96_115 = arith.constant 96 : index
    %71 = vector.load %arg1[%c0_112, %c0_113, %c32_114, %c96_115] : memref<1x4x128x128xf32, #tpu.memory_space<vmem>>, vector<1x4x1x1xf32>
    %72 = vector.shape_cast %71 : vector<1x4x1x1xf32> to vector<4x1xf32>
    %c0_116 = arith.constant 0 : index
    %c22 = arith.constant 22 : index
    %73 = vector.load %arg11[%c0_116, %c22] : memref<4x64xf32, #tpu.memory_space<vmem>>, vector<4x1xf32>
    tpu.vector_store %arg11[%c0_116, %c22], %72 {strides = array<i32>} : memref<4x64xf32, #tpu.memory_space<vmem>>, vector<4x1xf32>,
    %c0_117 = arith.constant 0 : index
    %c0_118 = arith.constant 0 : index
    %c32_119 = arith.constant 32 : index
    %c112_120 = arith.constant 112 : index
    %74 = vector.load %arg1[%c0_117, %c0_118, %c32_119, %c112_120] : memref<1x4x128x128xf32, #tpu.memory_space<vmem>>, vector<1x4x1x1xf32>
    %75 = vector.shape_cast %74 : vector<1x4x1x1xf32> to vector<4x1xf32>
    %c0_121 = arith.constant 0 : index
    %c23 = arith.constant 23 : index
    %76 = vector.load %arg11[%c0_121, %c23] : memref<4x64xf32, #tpu.memory_space<vmem>>, vector<4x1xf32>
    tpu.vector_store %arg11[%c0_121, %c23], %75 {strides = array<i32>} : memref<4x64xf32, #tpu.memory_space<vmem>>, vector<4x1xf32>,
    %c0_122 = arith.constant 0 : index
    %c0_123 = arith.constant 0 : index
    %c48_124 = arith.constant 48 : index
    %c0_125 = arith.constant 0 : index
    %77 = vector.load %arg1[%c0_122, %c0_123, %c48_124, %c0_125] : memref<1x4x128x128xf32, #tpu.memory_space<vmem>>, vector<1x4x1x1xf32>
    %78 = vector.shape_cast %77 : vector<1x4x1x1xf32> to vector<4x1xf32>
    %c0_126 = arith.constant 0 : index
    %c24 = arith.constant 24 : index
    %79 = vector.load %arg11[%c0_126, %c24] : memref<4x64xf32, #tpu.memory_space<vmem>>, vector<4x1xf32>
    tpu.vector_store %arg11[%c0_126, %c24], %78 {strides = array<i32>} : memref<4x64xf32, #tpu.memory_space<vmem>>, vector<4x1xf32>,
    %c0_127 = arith.constant 0 : index
    %c0_128 = arith.constant 0 : index
    %c48_129 = arith.constant 48 : index
    %c16_130 = arith.constant 16 : index
    %80 = vector.load %arg1[%c0_127, %c0_128, %c48_129, %c16_130] : memref<1x4x128x128xf32, #tpu.memory_space<vmem>>, vector<1x4x1x1xf32>
    %81 = vector.shape_cast %80 : vector<1x4x1x1xf32> to vector<4x1xf32>
    %c0_131 = arith.constant 0 : index
    %c25 = arith.constant 25 : index
    %82 = vector.load %arg11[%c0_131, %c25] : memref<4x64xf32, #tpu.memory_space<vmem>>, vector<4x1xf32>
    tpu.vector_store %arg11[%c0_131, %c25], %81 {strides = array<i32>} : memref<4x64xf32, #tpu.memory_space<vmem>>, vector<4x1xf32>,
    %c0_132 = arith.constant 0 : index
    %c0_133 = arith.constant 0 : index
    %c48_134 = arith.constant 48 : index
    %c32_135 = arith.constant 32 : index
    %83 = vector.load %arg1[%c0_132, %c0_133, %c48_134, %c32_135] : memref<1x4x128x128xf32, #tpu.memory_space<vmem>>, vector<1x4x1x1xf32>
    %84 = vector.shape_cast %83 : vector<1x4x1x1xf32> to vector<4x1xf32>
    %c0_136 = arith.constant 0 : index
    %c26 = arith.constant 26 : index
    %85 = vector.load %arg11[%c0_136, %c26] : memref<4x64xf32, #tpu.memory_space<vmem>>, vector<4x1xf32>
    tpu.vector_store %arg11[%c0_136, %c26], %84 {strides = array<i32>} : memref<4x64xf32, #tpu.memory_space<vmem>>, vector<4x1xf32>,
    %c0_137 = arith.constant 0 : index
    %c0_138 = arith.constant 0 : index
    %c48_139 = arith.constant 48 : index
    %c48_140 = arith.constant 48 : index
    %86 = vector.load %arg1[%c0_137, %c0_138, %c48_139, %c48_140] : memref<1x4x128x128xf32, #tpu.memory_space<vmem>>, vector<1x4x1x1xf32>
    %87 = vector.shape_cast %86 : vector<1x4x1x1xf32> to vector<4x1xf32>
    %c0_141 = arith.constant 0 : index
    %c27 = arith.constant 27 : index
    %88 = vector.load %arg11[%c0_141, %c27] : memref<4x64xf32, #tpu.memory_space<vmem>>, vector<4x1xf32>
    tpu.vector_store %arg11[%c0_141, %c27], %87 {strides = array<i32>} : memref<4x64xf32, #tpu.memory_space<vmem>>, vector<4x1xf32>,
    %c0_142 = arith.constant 0 : index
    %c0_143 = arith.constant 0 : index
    %c48_144 = arith.constant 48 : index
    %c64_145 = arith.constant 64 : index
    %89 = vector.load %arg1[%c0_142, %c0_143, %c48_144, %c64_145] : memref<1x4x128x128xf32, #tpu.memory_space<vmem>>, vector<1x4x1x1xf32>
    %90 = vector.shape_cast %89 : vector<1x4x1x1xf32> to vector<4x1xf32>
    %c0_146 = arith.constant 0 : index
    %c28 = arith.constant 28 : index
    %91 = vector.load %arg11[%c0_146, %c28] : memref<4x64xf32, #tpu.memory_space<vmem>>, vector<4x1xf32>
    tpu.vector_store %arg11[%c0_146, %c28], %90 {strides = array<i32>} : memref<4x64xf32, #tpu.memory_space<vmem>>, vector<4x1xf32>,
    %c0_147 = arith.constant 0 : index
    %c0_148 = arith.constant 0 : index
    %c48_149 = arith.constant 48 : index
    %c80_150 = arith.constant 80 : index
    %92 = vector.load %arg1[%c0_147, %c0_148, %c48_149, %c80_150] : memref<1x4x128x128xf32, #tpu.memory_space<vmem>>, vector<1x4x1x1xf32>
    %93 = vector.shape_cast %92 : vector<1x4x1x1xf32> to vector<4x1xf32>
    %c0_151 = arith.constant 0 : index
    %c29 = arith.constant 29 : index
    %94 = vector.load %arg11[%c0_151, %c29] : memref<4x64xf32, #tpu.memory_space<vmem>>, vector<4x1xf32>
    tpu.vector_store %arg11[%c0_151, %c29], %93 {strides = array<i32>} : memref<4x64xf32, #tpu.memory_space<vmem>>, vector<4x1xf32>,
    %c0_152 = arith.constant 0 : index
    %c0_153 = arith.constant 0 : index
    %c48_154 = arith.constant 48 : index
    %c96_155 = arith.constant 96 : index
    %95 = vector.load %arg1[%c0_152, %c0_153, %c48_154, %c96_155] : memref<1x4x128x128xf32, #tpu.memory_space<vmem>>, vector<1x4x1x1xf32>
    %96 = vector.shape_cast %95 : vector<1x4x1x1xf32> to vector<4x1xf32>
    %c0_156 = arith.constant 0 : index
    %c30 = arith.constant 30 : index
    %97 = vector.load %arg11[%c0_156, %c30] : memref<4x64xf32, #tpu.memory_space<vmem>>, vector<4x1xf32>
    tpu.vector_store %arg11[%c0_156, %c30], %96 {strides = array<i32>} : memref<4x64xf32, #tpu.memory_space<vmem>>, vector<4x1xf32>,
    %c0_157 = arith.constant 0 : index
    %c0_158 = arith.constant 0 : index
    %c48_159 = arith.constant 48 : index
    %c112_160 = arith.constant 112 : index
    %98 = vector.load %arg1[%c0_157, %c0_158, %c48_159, %c112_160] : memref<1x4x128x128xf32, #tpu.memory_space<vmem>>, vector<1x4x1x1xf32>
    %99 = vector.shape_cast %98 : vector<1x4x1x1xf32> to vector<4x1xf32>
    %c0_161 = arith.constant 0 : index
    %c31 = arith.constant 31 : index
    %100 = vector.load %arg11[%c0_161, %c31] : memref<4x64xf32, #tpu.memory_space<vmem>>, vector<4x1xf32>
    tpu.vector_store %arg11[%c0_161, %c31], %99 {strides = array<i32>} : memref<4x64xf32, #tpu.memory_space<vmem>>, vector<4x1xf32>,
    %c0_162 = arith.constant 0 : index
    %c0_163 = arith.constant 0 : index
    %c64_164 = arith.constant 64 : index
    %c0_165 = arith.constant 0 : index
    %101 = vector.load %arg1[%c0_162, %c0_163, %c64_164, %c0_165] : memref<1x4x128x128xf32, #tpu.memory_space<vmem>>, vector<1x4x1x1xf32>
    %102 = vector.shape_cast %101 : vector<1x4x1x1xf32> to vector<4x1xf32>
    %c0_166 = arith.constant 0 : index
    %c32_167 = arith.constant 32 : index
    %103 = vector.load %arg11[%c0_166, %c32_167] : memref<4x64xf32, #tpu.memory_space<vmem>>, vector<4x1xf32>
    tpu.vector_store %arg11[%c0_166, %c32_167], %102 {strides = array<i32>} : memref<4x64xf32, #tpu.memory_space<vmem>>, vector<4x1xf32>,
    %c0_168 = arith.constant 0 : index
    %c0_169 = arith.constant 0 : index
    %c64_170 = arith.constant 64 : index
    %c16_171 = arith.constant 16 : index
    %104 = vector.load %arg1[%c0_168, %c0_169, %c64_170, %c16_171] : memref<1x4x128x128xf32, #tpu.memory_space<vmem>>, vector<1x4x1x1xf32>
    %105 = vector.shape_cast %104 : vector<1x4x1x1xf32> to vector<4x1xf32>
    %c0_172 = arith.constant 0 : index
    %c33 = arith.constant 33 : index
    %106 = vector.load %arg11[%c0_172, %c33] : memref<4x64xf32, #tpu.memory_space<vmem>>, vector<4x1xf32>
    tpu.vector_store %arg11[%c0_172, %c33], %105 {strides = array<i32>} : memref<4x64xf32, #tpu.memory_space<vmem>>, vector<4x1xf32>,
    %c0_173 = arith.constant 0 : index
    %c0_174 = arith.constant 0 : index
    %c64_175 = arith.constant 64 : index
    %c32_176 = arith.constant 32 : index
    %107 = vector.load %arg1[%c0_173, %c0_174, %c64_175, %c32_176] : memref<1x4x128x128xf32, #tpu.memory_space<vmem>>, vector<1x4x1x1xf32>
    %108 = vector.shape_cast %107 : vector<1x4x1x1xf32> to vector<4x1xf32>
    %c0_177 = arith.constant 0 : index
    %c34 = arith.constant 34 : index
    %109 = vector.load %arg11[%c0_177, %c34] : memref<4x64xf32, #tpu.memory_space<vmem>>, vector<4x1xf32>
    tpu.vector_store %arg11[%c0_177, %c34], %108 {strides = array<i32>} : memref<4x64xf32, #tpu.memory_space<vmem>>, vector<4x1xf32>,
    %c0_178 = arith.constant 0 : index
    %c0_179 = arith.constant 0 : index
    %c64_180 = arith.constant 64 : index
    %c48_181 = arith.constant 48 : index
    %110 = vector.load %arg1[%c0_178, %c0_179, %c64_180, %c48_181] : memref<1x4x128x128xf32, #tpu.memory_space<vmem>>, vector<1x4x1x1xf32>
    %111 = vector.shape_cast %110 : vector<1x4x1x1xf32> to vector<4x1xf32>
    %c0_182 = arith.constant 0 : index
    %c35 = arith.constant 35 : index
    %112 = vector.load %arg11[%c0_182, %c35] : memref<4x64xf32, #tpu.memory_space<vmem>>, vector<4x1xf32>
    tpu.vector_store %arg11[%c0_182, %c35], %111 {strides = array<i32>} : memref<4x64xf32, #tpu.memory_space<vmem>>, vector<4x1xf32>,
    %c0_183 = arith.constant 0 : index
    %c0_184 = arith.constant 0 : index
    %c64_185 = arith.constant 64 : index
    %c64_186 = arith.constant 64 : index
    %113 = vector.load %arg1[%c0_183, %c0_184, %c64_185, %c64_186] : memref<1x4x128x128xf32, #tpu.memory_space<vmem>>, vector<1x4x1x1xf32>
    %114 = vector.shape_cast %113 : vector<1x4x1x1xf32> to vector<4x1xf32>
    %c0_187 = arith.constant 0 : index
    %c36 = arith.constant 36 : index
    %115 = vector.load %arg11[%c0_187, %c36] : memref<4x64xf32, #tpu.memory_space<vmem>>, vector<4x1xf32>
    tpu.vector_store %arg11[%c0_187, %c36], %114 {strides = array<i32>} : memref<4x64xf32, #tpu.memory_space<vmem>>, vector<4x1xf32>,
    %c0_188 = arith.constant 0 : index
    %c0_189 = arith.constant 0 : index
    %c64_190 = arith.constant 64 : index
    %c80_191 = arith.constant 80 : index
    %116 = vector.load %arg1[%c0_188, %c0_189, %c64_190, %c80_191] : memref<1x4x128x128xf32, #tpu.memory_space<vmem>>, vector<1x4x1x1xf32>
    %117 = vector.shape_cast %116 : vector<1x4x1x1xf32> to vector<4x1xf32>
    %c0_192 = arith.constant 0 : index
    %c37 = arith.constant 37 : index
    %118 = vector.load %arg11[%c0_192, %c37] : memref<4x64xf32, #tpu.memory_space<vmem>>, vector<4x1xf32>
    tpu.vector_store %arg11[%c0_192, %c37], %117 {strides = array<i32>} : memref<4x64xf32, #tpu.memory_space<vmem>>, vector<4x1xf32>,
    %c0_193 = arith.constant 0 : index
    %c0_194 = arith.constant 0 : index
    %c64_195 = arith.constant 64 : index
    %c96_196 = arith.constant 96 : index
    %119 = vector.load %arg1[%c0_193, %c0_194, %c64_195, %c96_196] : memref<1x4x128x128xf32, #tpu.memory_space<vmem>>, vector<1x4x1x1xf32>
    %120 = vector.shape_cast %119 : vector<1x4x1x1xf32> to vector<4x1xf32>
    %c0_197 = arith.constant 0 : index
    %c38 = arith.constant 38 : index
    %121 = vector.load %arg11[%c0_197, %c38] : memref<4x64xf32, #tpu.memory_space<vmem>>, vector<4x1xf32>
    tpu.vector_store %arg11[%c0_197, %c38], %120 {strides = array<i32>} : memref<4x64xf32, #tpu.memory_space<vmem>>, vector<4x1xf32>,
    %c0_198 = arith.constant 0 : index
    %c0_199 = arith.constant 0 : index
    %c64_200 = arith.constant 64 : index
    %c112_201 = arith.constant 112 : index
    %122 = vector.load %arg1[%c0_198, %c0_199, %c64_200, %c112_201] : memref<1x4x128x128xf32, #tpu.memory_space<vmem>>, vector<1x4x1x1xf32>
    %123 = vector.shape_cast %122 : vector<1x4x1x1xf32> to vector<4x1xf32>
    %c0_202 = arith.constant 0 : index
    %c39 = arith.constant 39 : index
    %124 = vector.load %arg11[%c0_202, %c39] : memref<4x64xf32, #tpu.memory_space<vmem>>, vector<4x1xf32>
    tpu.vector_store %arg11[%c0_202, %c39], %123 {strides = array<i32>} : memref<4x64xf32, #tpu.memory_space<vmem>>, vector<4x1xf32>,
    %c0_203 = arith.constant 0 : index
    %c0_204 = arith.constant 0 : index
    %c80_205 = arith.constant 80 : index
    %c0_206 = arith.constant 0 : index
    %125 = vector.load %arg1[%c0_203, %c0_204, %c80_205, %c0_206] : memref<1x4x128x128xf32, #tpu.memory_space<vmem>>, vector<1x4x1x1xf32>
    %126 = vector.shape_cast %125 : vector<1x4x1x1xf32> to vector<4x1xf32>
    %c0_207 = arith.constant 0 : index
    %c40 = arith.constant 40 : index
    %127 = vector.load %arg11[%c0_207, %c40] : memref<4x64xf32, #tpu.memory_space<vmem>>, vector<4x1xf32>
    tpu.vector_store %arg11[%c0_207, %c40], %126 {strides = array<i32>} : memref<4x64xf32, #tpu.memory_space<vmem>>, vector<4x1xf32>,
    %c0_208 = arith.constant 0 : index
    %c0_209 = arith.constant 0 : index
    %c80_210 = arith.constant 80 : index
    %c16_211 = arith.constant 16 : index
    %128 = vector.load %arg1[%c0_208, %c0_209, %c80_210, %c16_211] : memref<1x4x128x128xf32, #tpu.memory_space<vmem>>, vector<1x4x1x1xf32>
    %129 = vector.shape_cast %128 : vector<1x4x1x1xf32> to vector<4x1xf32>
    %c0_212 = arith.constant 0 : index
    %c41 = arith.constant 41 : index
    %130 = vector.load %arg11[%c0_212, %c41] : memref<4x64xf32, #tpu.memory_space<vmem>>, vector<4x1xf32>
    tpu.vector_store %arg11[%c0_212, %c41], %129 {strides = array<i32>} : memref<4x64xf32, #tpu.memory_space<vmem>>, vector<4x1xf32>,
    %c0_213 = arith.constant 0 : index
    %c0_214 = arith.constant 0 : index
    %c80_215 = arith.constant 80 : index
    %c32_216 = arith.constant 32 : index
    %131 = vector.load %arg1[%c0_213, %c0_214, %c80_215, %c32_216] : memref<1x4x128x128xf32, #tpu.memory_space<vmem>>, vector<1x4x1x1xf32>
    %132 = vector.shape_cast %131 : vector<1x4x1x1xf32> to vector<4x1xf32>
    %c0_217 = arith.constant 0 : index
    %c42 = arith.constant 42 : index
    %133 = vector.load %arg11[%c0_217, %c42] : memref<4x64xf32, #tpu.memory_space<vmem>>, vector<4x1xf32>
    tpu.vector_store %arg11[%c0_217, %c42], %132 {strides = array<i32>} : memref<4x64xf32, #tpu.memory_space<vmem>>, vector<4x1xf32>,
    %c0_218 = arith.constant 0 : index
    %c0_219 = arith.constant 0 : index
    %c80_220 = arith.constant 80 : index
    %c48_221 = arith.constant 48 : index
    %134 = vector.load %arg1[%c0_218, %c0_219, %c80_220, %c48_221] : memref<1x4x128x128xf32, #tpu.memory_space<vmem>>, vector<1x4x1x1xf32>
    %135 = vector.shape_cast %134 : vector<1x4x1x1xf32> to vector<4x1xf32>
    %c0_222 = arith.constant 0 : index
    %c43 = arith.constant 43 : index
    %136 = vector.load %arg11[%c0_222, %c43] : memref<4x64xf32, #tpu.memory_space<vmem>>, vector<4x1xf32>
    tpu.vector_store %arg11[%c0_222, %c43], %135 {strides = array<i32>} : memref<4x64xf32, #tpu.memory_space<vmem>>, vector<4x1xf32>,
    %c0_223 = arith.constant 0 : index
    %c0_224 = arith.constant 0 : index
    %c80_225 = arith.constant 80 : index
    %c64_226 = arith.constant 64 : index
    %137 = vector.load %arg1[%c0_223, %c0_224, %c80_225, %c64_226] : memref<1x4x128x128xf32, #tpu.memory_space<vmem>>, vector<1x4x1x1xf32>
    %138 = vector.shape_cast %137 : vector<1x4x1x1xf32> to vector<4x1xf32>
    %c0_227 = arith.constant 0 : index
    %c44 = arith.constant 44 : index
    %139 = vector.load %arg11[%c0_227, %c44] : memref<4x64xf32, #tpu.memory_space<vmem>>, vector<4x1xf32>
    tpu.vector_store %arg11[%c0_227, %c44], %138 {strides = array<i32>} : memref<4x64xf32, #tpu.memory_space<vmem>>, vector<4x1xf32>,
    %c0_228 = arith.constant 0 : index
    %c0_229 = arith.constant 0 : index
    %c80_230 = arith.constant 80 : index
    %c80_231 = arith.constant 80 : index
    %140 = vector.load %arg1[%c0_228, %c0_229, %c80_230, %c80_231] : memref<1x4x128x128xf32, #tpu.memory_space<vmem>>, vector<1x4x1x1xf32>
    %141 = vector.shape_cast %140 : vector<1x4x1x1xf32> to vector<4x1xf32>
    %c0_232 = arith.constant 0 : index
    %c45 = arith.constant 45 : index
    %142 = vector.load %arg11[%c0_232, %c45] : memref<4x64xf32, #tpu.memory_space<vmem>>, vector<4x1xf32>
    tpu.vector_store %arg11[%c0_232, %c45], %141 {strides = array<i32>} : memref<4x64xf32, #tpu.memory_space<vmem>>, vector<4x1xf32>,
    %c0_233 = arith.constant 0 : index
    %c0_234 = arith.constant 0 : index
    %c80_235 = arith.constant 80 : index
    %c96_236 = arith.constant 96 : index
    %143 = vector.load %arg1[%c0_233, %c0_234, %c80_235, %c96_236] : memref<1x4x128x128xf32, #tpu.memory_space<vmem>>, vector<1x4x1x1xf32>
    %144 = vector.shape_cast %143 : vector<1x4x1x1xf32> to vector<4x1xf32>
    %c0_237 = arith.constant 0 : index
    %c46 = arith.constant 46 : index
    %145 = vector.load %arg11[%c0_237, %c46] : memref<4x64xf32, #tpu.memory_space<vmem>>, vector<4x1xf32>
    tpu.vector_store %arg11[%c0_237, %c46], %144 {strides = array<i32>} : memref<4x64xf32, #tpu.memory_space<vmem>>, vector<4x1xf32>,
    %c0_238 = arith.constant 0 : index
    %c0_239 = arith.constant 0 : index
    %c80_240 = arith.constant 80 : index
    %c112_241 = arith.constant 112 : index
    %146 = vector.load %arg1[%c0_238, %c0_239, %c80_240, %c112_241] : memref<1x4x128x128xf32, #tpu.memory_space<vmem>>, vector<1x4x1x1xf32>
    %147 = vector.shape_cast %146 : vector<1x4x1x1xf32> to vector<4x1xf32>
    %c0_242 = arith.constant 0 : index
    %c47 = arith.constant 47 : index
    %148 = vector.load %arg11[%c0_242, %c47] : memref<4x64xf32, #tpu.memory_space<vmem>>, vector<4x1xf32>
    tpu.vector_store %arg11[%c0_242, %c47], %147 {strides = array<i32>} : memref<4x64xf32, #tpu.memory_space<vmem>>, vector<4x1xf32>,
    %c0_243 = arith.constant 0 : index
    %c0_244 = arith.constant 0 : index
    %c96_245 = arith.constant 96 : index
    %c0_246 = arith.constant 0 : index
    %149 = vector.load %arg1[%c0_243, %c0_244, %c96_245, %c0_246] : memref<1x4x128x128xf32, #tpu.memory_space<vmem>>, vector<1x4x1x1xf32>
    %150 = vector.shape_cast %149 : vector<1x4x1x1xf32> to vector<4x1xf32>
    %c0_247 = arith.constant 0 : index
    %c48_248 = arith.constant 48 : index
    %151 = vector.load %arg11[%c0_247, %c48_248] : memref<4x64xf32, #tpu.memory_space<vmem>>, vector<4x1xf32>
    tpu.vector_store %arg11[%c0_247, %c48_248], %150 {strides = array<i32>} : memref<4x64xf32, #tpu.memory_space<vmem>>, vector<4x1xf32>,
    %c0_249 = arith.constant 0 : index
    %c0_250 = arith.constant 0 : index
    %c96_251 = arith.constant 96 : index
    %c16_252 = arith.constant 16 : index
    %152 = vector.load %arg1[%c0_249, %c0_250, %c96_251, %c16_252] : memref<1x4x128x128xf32, #tpu.memory_space<vmem>>, vector<1x4x1x1xf32>
    %153 = vector.shape_cast %152 : vector<1x4x1x1xf32> to vector<4x1xf32>
    %c0_253 = arith.constant 0 : index
    %c49 = arith.constant 49 : index
    %154 = vector.load %arg11[%c0_253, %c49] : memref<4x64xf32, #tpu.memory_space<vmem>>, vector<4x1xf32>
    tpu.vector_store %arg11[%c0_253, %c49], %153 {strides = array<i32>} : memref<4x64xf32, #tpu.memory_space<vmem>>, vector<4x1xf32>,
    %c0_254 = arith.constant 0 : index
    %c0_255 = arith.constant 0 : index
    %c96_256 = arith.constant 96 : index
    %c32_257 = arith.constant 32 : index
    %155 = vector.load %arg1[%c0_254, %c0_255, %c96_256, %c32_257] : memref<1x4x128x128xf32, #tpu.memory_space<vmem>>, vector<1x4x1x1xf32>
    %156 = vector.shape_cast %155 : vector<1x4x1x1xf32> to vector<4x1xf32>
    %c0_258 = arith.constant 0 : index
    %c50 = arith.constant 50 : index
    %157 = vector.load %arg11[%c0_258, %c50] : memref<4x64xf32, #tpu.memory_space<vmem>>, vector<4x1xf32>
    tpu.vector_store %arg11[%c0_258, %c50], %156 {strides = array<i32>} : memref<4x64xf32, #tpu.memory_space<vmem>>, vector<4x1xf32>,
    %c0_259 = arith.constant 0 : index
    %c0_260 = arith.constant 0 : index
    %c96_261 = arith.constant 96 : index
    %c48_262 = arith.constant 48 : index
    %158 = vector.load %arg1[%c0_259, %c0_260, %c96_261, %c48_262] : memref<1x4x128x128xf32, #tpu.memory_space<vmem>>, vector<1x4x1x1xf32>
    %159 = vector.shape_cast %158 : vector<1x4x1x1xf32> to vector<4x1xf32>
    %c0_263 = arith.constant 0 : index
    %c51 = arith.constant 51 : index
    %160 = vector.load %arg11[%c0_263, %c51] : memref<4x64xf32, #tpu.memory_space<vmem>>, vector<4x1xf32>
    tpu.vector_store %arg11[%c0_263, %c51], %159 {strides = array<i32>} : memref<4x64xf32, #tpu.memory_space<vmem>>, vector<4x1xf32>,
    %c0_264 = arith.constant 0 : index
    %c0_265 = arith.constant 0 : index
    %c96_266 = arith.constant 96 : index
    %c64_267 = arith.constant 64 : index
    %161 = vector.load %arg1[%c0_264, %c0_265, %c96_266, %c64_267] : memref<1x4x128x128xf32, #tpu.memory_space<vmem>>, vector<1x4x1x1xf32>
    %162 = vector.shape_cast %161 : vector<1x4x1x1xf32> to vector<4x1xf32>
    %c0_268 = arith.constant 0 : index
    %c52 = arith.constant 52 : index
    %163 = vector.load %arg11[%c0_268, %c52] : memref<4x64xf32, #tpu.memory_space<vmem>>, vector<4x1xf32>
    tpu.vector_store %arg11[%c0_268, %c52], %162 {strides = array<i32>} : memref<4x64xf32, #tpu.memory_space<vmem>>, vector<4x1xf32>,
    %c0_269 = arith.constant 0 : index
    %c0_270 = arith.constant 0 : index
    %c96_271 = arith.constant 96 : index
    %c80_272 = arith.constant 80 : index
    %164 = vector.load %arg1[%c0_269, %c0_270, %c96_271, %c80_272] : memref<1x4x128x128xf32, #tpu.memory_space<vmem>>, vector<1x4x1x1xf32>
    %165 = vector.shape_cast %164 : vector<1x4x1x1xf32> to vector<4x1xf32>
    %c0_273 = arith.constant 0 : index
    %c53 = arith.constant 53 : index
    %166 = vector.load %arg11[%c0_273, %c53] : memref<4x64xf32, #tpu.memory_space<vmem>>, vector<4x1xf32>
    tpu.vector_store %arg11[%c0_273, %c53], %165 {strides = array<i32>} : memref<4x64xf32, #tpu.memory_space<vmem>>, vector<4x1xf32>,
    %c0_274 = arith.constant 0 : index
    %c0_275 = arith.constant 0 : index
    %c96_276 = arith.constant 96 : index
    %c96_277 = arith.constant 96 : index
    %167 = vector.load %arg1[%c0_274, %c0_275, %c96_276, %c96_277] : memref<1x4x128x128xf32, #tpu.memory_space<vmem>>, vector<1x4x1x1xf32>
    %168 = vector.shape_cast %167 : vector<1x4x1x1xf32> to vector<4x1xf32>
    %c0_278 = arith.constant 0 : index
    %c54 = arith.constant 54 : index
    %169 = vector.load %arg11[%c0_278, %c54] : memref<4x64xf32, #tpu.memory_space<vmem>>, vector<4x1xf32>
    tpu.vector_store %arg11[%c0_278, %c54], %168 {strides = array<i32>} : memref<4x64xf32, #tpu.memory_space<vmem>>, vector<4x1xf32>,
    %c0_279 = arith.constant 0 : index
    %c0_280 = arith.constant 0 : index
    %c96_281 = arith.constant 96 : index
    %c112_282 = arith.constant 112 : index
    %170 = vector.load %arg1[%c0_279, %c0_280, %c96_281, %c112_282] : memref<1x4x128x128xf32, #tpu.memory_space<vmem>>, vector<1x4x1x1xf32>
    %171 = vector.shape_cast %170 : vector<1x4x1x1xf32> to vector<4x1xf32>
    %c0_283 = arith.constant 0 : index
    %c55 = arith.constant 55 : index
    %172 = vector.load %arg11[%c0_283, %c55] : memref<4x64xf32, #tpu.memory_space<vmem>>, vector<4x1xf32>
    tpu.vector_store %arg11[%c0_283, %c55], %171 {strides = array<i32>} : memref<4x64xf32, #tpu.memory_space<vmem>>, vector<4x1xf32>,
    %c0_284 = arith.constant 0 : index
    %c0_285 = arith.constant 0 : index
    %c112_286 = arith.constant 112 : index
    %c0_287 = arith.constant 0 : index
    %173 = vector.load %arg1[%c0_284, %c0_285, %c112_286, %c0_287] : memref<1x4x128x128xf32, #tpu.memory_space<vmem>>, vector<1x4x1x1xf32>
    %174 = vector.shape_cast %173 : vector<1x4x1x1xf32> to vector<4x1xf32>
    %c0_288 = arith.constant 0 : index
    %c56 = arith.constant 56 : index
    %175 = vector.load %arg11[%c0_288, %c56] : memref<4x64xf32, #tpu.memory_space<vmem>>, vector<4x1xf32>
    tpu.vector_store %arg11[%c0_288, %c56], %174 {strides = array<i32>} : memref<4x64xf32, #tpu.memory_space<vmem>>, vector<4x1xf32>,
    %c0_289 = arith.constant 0 : index
    %c0_290 = arith.constant 0 : index
    %c112_291 = arith.constant 112 : index
    %c16_292 = arith.constant 16 : index
    %176 = vector.load %arg1[%c0_289, %c0_290, %c112_291, %c16_292] : memref<1x4x128x128xf32, #tpu.memory_space<vmem>>, vector<1x4x1x1xf32>
    %177 = vector.shape_cast %176 : vector<1x4x1x1xf32> to vector<4x1xf32>
    %c0_293 = arith.constant 0 : index
    %c57 = arith.constant 57 : index
    %178 = vector.load %arg11[%c0_293, %c57] : memref<4x64xf32, #tpu.memory_space<vmem>>, vector<4x1xf32>
    tpu.vector_store %arg11[%c0_293, %c57], %177 {strides = array<i32>} : memref<4x64xf32, #tpu.memory_space<vmem>>, vector<4x1xf32>,
    %c0_294 = arith.constant 0 : index
    %c0_295 = arith.constant 0 : index
    %c112_296 = arith.constant 112 : index
    %c32_297 = arith.constant 32 : index
    %179 = vector.load %arg1[%c0_294, %c0_295, %c112_296, %c32_297] : memref<1x4x128x128xf32, #tpu.memory_space<vmem>>, vector<1x4x1x1xf32>
    %180 = vector.shape_cast %179 : vector<1x4x1x1xf32> to vector<4x1xf32>
    %c0_298 = arith.constant 0 : index
    %c58 = arith.constant 58 : index
    %181 = vector.load %arg11[%c0_298, %c58] : memref<4x64xf32, #tpu.memory_space<vmem>>, vector<4x1xf32>
    tpu.vector_store %arg11[%c0_298, %c58], %180 {strides = array<i32>} : memref<4x64xf32, #tpu.memory_space<vmem>>, vector<4x1xf32>,
    %c0_299 = arith.constant 0 : index
    %c0_300 = arith.constant 0 : index
    %c112_301 = arith.constant 112 : index
    %c48_302 = arith.constant 48 : index
    %182 = vector.load %arg1[%c0_299, %c0_300, %c112_301, %c48_302] : memref<1x4x128x128xf32, #tpu.memory_space<vmem>>, vector<1x4x1x1xf32>
    %183 = vector.shape_cast %182 : vector<1x4x1x1xf32> to vector<4x1xf32>
    %c0_303 = arith.constant 0 : index
    %c59 = arith.constant 59 : index
    %184 = vector.load %arg11[%c0_303, %c59] : memref<4x64xf32, #tpu.memory_space<vmem>>, vector<4x1xf32>
    tpu.vector_store %arg11[%c0_303, %c59], %183 {strides = array<i32>} : memref<4x64xf32, #tpu.memory_space<vmem>>, vector<4x1xf32>,
    %c0_304 = arith.constant 0 : index
    %c0_305 = arith.constant 0 : index
    %c112_306 = arith.constant 112 : index
    %c64_307 = arith.constant 64 : index
    %185 = vector.load %arg1[%c0_304, %c0_305, %c112_306, %c64_307] : memref<1x4x128x128xf32, #tpu.memory_space<vmem>>, vector<1x4x1x1xf32>
    %186 = vector.shape_cast %185 : vector<1x4x1x1xf32> to vector<4x1xf32>
    %c0_308 = arith.constant 0 : index
    %c60 = arith.constant 60 : index
    %187 = vector.load %arg11[%c0_308, %c60] : memref<4x64xf32, #tpu.memory_space<vmem>>, vector<4x1xf32>
    tpu.vector_store %arg11[%c0_308, %c60], %186 {strides = array<i32>} : memref<4x64xf32, #tpu.memory_space<vmem>>, vector<4x1xf32>,
    %c0_309 = arith.constant 0 : index
    %c0_310 = arith.constant 0 : index
    %c112_311 = arith.constant 112 : index
    %c80_312 = arith.constant 80 : index
    %188 = vector.load %arg1[%c0_309, %c0_310, %c112_311, %c80_312] : memref<1x4x128x128xf32, #tpu.memory_space<vmem>>, vector<1x4x1x1xf32>
    %189 = vector.shape_cast %188 : vector<1x4x1x1xf32> to vector<4x1xf32>
    %c0_313 = arith.constant 0 : index
    %c61 = arith.constant 61 : index
    %190 = vector.load %arg11[%c0_313, %c61] : memref<4x64xf32, #tpu.memory_space<vmem>>, vector<4x1xf32>
    tpu.vector_store %arg11[%c0_313, %c61], %189 {strides = array<i32>} : memref<4x64xf32, #tpu.memory_space<vmem>>, vector<4x1xf32>,
    %c0_314 = arith.constant 0 : index
    %c0_315 = arith.constant 0 : index
    %c112_316 = arith.constant 112 : index
    %c96_317 = arith.constant 96 : index
    %191 = vector.load %arg1[%c0_314, %c0_315, %c112_316, %c96_317] : memref<1x4x128x128xf32, #tpu.memory_space<vmem>>, vector<1x4x1x1xf32>
    %192 = vector.shape_cast %191 : vector<1x4x1x1xf32> to vector<4x1xf32>
    %c0_318 = arith.constant 0 : index
    %c62 = arith.constant 62 : index
    %193 = vector.load %arg11[%c0_318, %c62] : memref<4x64xf32, #tpu.memory_space<vmem>>, vector<4x1xf32>
    tpu.vector_store %arg11[%c0_318, %c62], %192 {strides = array<i32>} : memref<4x64xf32, #tpu.memory_space<vmem>>, vector<4x1xf32>,
    %c0_319 = arith.constant 0 : index
    %c0_320 = arith.constant 0 : index
    %c112_321 = arith.constant 112 : index
    %c112_322 = arith.constant 112 : index
    %194 = vector.load %arg1[%c0_319, %c0_320, %c112_321, %c112_322] : memref<1x4x128x128xf32, #tpu.memory_space<vmem>>, vector<1x4x1x1xf32>
    %195 = vector.shape_cast %194 : vector<1x4x1x1xf32> to vector<4x1xf32>
    %c0_323 = arith.constant 0 : index
    %c63 = arith.constant 63 : index
    %196 = vector.load %arg11[%c0_323, %c63] : memref<4x64xf32, #tpu.memory_space<vmem>>, vector<4x1xf32>
    tpu.vector_store %arg11[%c0_323, %c63], %195 {strides = array<i32>} : memref<4x64xf32, #tpu.memory_space<vmem>>, vector<4x1xf32>,
    %c0_324 = arith.constant 0 : index
    %c0_325 = arith.constant 0 : index
    %197 = vector.load %arg11[%c0_324, %c0_325] : memref<4x64xf32, #tpu.memory_space<vmem>>, vector<4x64xf32>
    %c0_326 = arith.constant 0 : index
    %c0_327 = arith.constant 0 : index
    %198 = vector.load %arg2[%c0_326, %c0_327] : memref<8x4xf32, #tpu.memory_space<vmem>>, vector<8x4xf32>
    %cst = arith.constant dense<0.000000e+00> : vector<8x64xf32>
    %199 = tpu.matmul %198, %197, %cst {dimension_numbers = #tpu.dot_dimension_numbers<[1], [0], [0], [1], [0, 0, 1, 1], [], []>} : vector<8x4xf32>, vector<4x64xf32>, vector<8x64xf32> -> vector<8x64xf32>
    %c0_328 = arith.constant 0 : index
    %c0_329 = arith.constant 0 : index
    %200 = vector.load %arg3[%c0_328, %c0_329] : memref<8x1xf32, #tpu.memory_space<vmem>>, vector<8x1xf32>
    %201 = vector.broadcast %200 : vector<8x1xf32> to vector<8x64xf32>
    %202 = arith.addf %199, %201 : vector<8x64xf32>
    %203 = vector.extract_strided_slice %202 {offsets = [0, 0], sizes = [4, 64], strides = [1, 1]} : vector<8x64xf32> to vector<4x64xf32>
    %204 = vector.extract_strided_slice %202 {offsets = [4, 0], sizes = [4, 64], strides = [1, 1]} : vector<8x64xf32> to vector<4x64xf32>
    %c0_330 = arith.constant 0 : index
    %c0_331 = arith.constant 0 : index
    %205 = vector.load %arg4[%c0_330, %c0_331] : memref<64x64xf32, #tpu.memory_space<vmem>>, vector<64x64xf32>
    %cst_332 = arith.constant dense<0.000000e+00> : vector<4x64xf32>
    %206 = tpu.matmul %204, %205, %cst_332 {dimension_numbers = #tpu.dot_dimension_numbers<[1], [0], [0], [1], [0, 0, 1, 1], [], []>} : vector<4x64xf32>, vector<64x64xf32>, vector<4x64xf32> -> vector<4x64xf32>
    %c0_333 = arith.constant 0 : index
    %c0_334 = arith.constant 0 : index
    %207 = vector.load %arg5[%c0_333, %c0_334] : memref<1x64xf32, #tpu.memory_space<vmem>>, vector<1x64xf32>
    %208 = vector.broadcast %207 : vector<1x64xf32> to vector<4x64xf32>
    %209 = arith.addf %206, %208 : vector<4x64xf32>
    %cst_335 = arith.constant 0.000000e+00 : f32
    %210 = vector.broadcast %cst_335 : f32 to vector<4x64xf32>
    %211 = arith.maximumf %209, %210 : vector<4x64xf32>
    %c0_336 = arith.constant 0 : index
    %c0_337 = arith.constant 0 : index
    %212 = vector.load %arg6[%c0_336, %c0_337] : memref<4x4xf32, #tpu.memory_space<vmem>>, vector<4x4xf32>
    %cst_338 = arith.constant dense<0.000000e+00> : vector<4x64xf32>
    %213 = tpu.matmul %212, %211, %cst_338 {dimension_numbers = #tpu.dot_dimension_numbers<[1], [0], [0], [1], [0, 0, 1, 1], [], []>} : vector<4x4xf32>, vector<4x64xf32>, vector<4x64xf32> -> vector<4x64xf32>
    %214 = arith.addf %203, %213 : vector<4x64xf32>
    %c0_339 = arith.constant 0 : index
    %c0_340 = arith.constant 0 : index
    %215 = vector.load %arg7[%c0_339, %c0_340] : memref<4x1xf32, #tpu.memory_space<vmem>>, vector<4x1xf32>
    %216 = vector.broadcast %215 : vector<4x1xf32> to vector<4x64xf32>
    %217 = arith.addf %214, %216 : vector<4x64xf32>
    %218 = vector.extract_strided_slice %217 {offsets = [0, 0], sizes = [4, 8], strides = [1, 1]} : vector<4x64xf32> to vector<4x8xf32>
    %c0_341 = arith.constant 0 : index
    %c0_342 = arith.constant 0 : index
    %219 = vector.load %arg8[%c0_341, %c0_342] : memref<8x128xf32, #tpu.memory_space<vmem>>, vector<8x128xf32>
    %cst_343 = arith.constant dense<0.000000e+00> : vector<4x128xf32>
    %220 = tpu.matmul %218, %219, %cst_343 {dimension_numbers = #tpu.dot_dimension_numbers<[1], [0], [0], [1], [0, 0, 1, 1], [], []>} : vector<4x8xf32>, vector<8x128xf32>, vector<4x128xf32> -> vector<4x128xf32>
    %c0_344 = arith.constant 0 : index
    %c0_345 = arith.constant 0 : index
    %221 = vector.load %arg12[%c0_344, %c0_345] : memref<32x128xf32, #tpu.memory_space<vmem>>, vector<4x128xf32>
    tpu.vector_store %arg12[%c0_344, %c0_345], %220 {strides = array<i32>} : memref<32x128xf32, #tpu.memory_space<vmem>>, vector<4x128xf32>,
    %222 = vector.extract_strided_slice %217 {offsets = [0, 8], sizes = [4, 8], strides = [1, 1]} : vector<4x64xf32> to vector<4x8xf32>
    %c0_346 = arith.constant 0 : index
    %c0_347 = arith.constant 0 : index
    %223 = vector.load %arg8[%c0_346, %c0_347] : memref<8x128xf32, #tpu.memory_space<vmem>>, vector<8x128xf32>
    %cst_348 = arith.constant dense<0.000000e+00> : vector<4x128xf32>
    %224 = tpu.matmul %222, %223, %cst_348 {dimension_numbers = #tpu.dot_dimension_numbers<[1], [0], [0], [1], [0, 0, 1, 1], [], []>} : vector<4x8xf32>, vector<8x128xf32>, vector<4x128xf32> -> vector<4x128xf32>
    %c4_349 = arith.constant 4 : index
    %c0_350 = arith.constant 0 : index
    %225 = vector.load %arg12[%c4_349, %c0_350] : memref<32x128xf32, #tpu.memory_space<vmem>>, vector<4x128xf32>
    tpu.vector_store %arg12[%c4_349, %c0_350], %224 {strides = array<i32>} : memref<32x128xf32, #tpu.memory_space<vmem>>, vector<4x128xf32>,
    %226 = vector.extract_strided_slice %217 {offsets = [0, 16], sizes = [4, 8], strides = [1, 1]} : vector<4x64xf32> to vector<4x8xf32>
    %c0_351 = arith.constant 0 : index
    %c0_352 = arith.constant 0 : index
    %227 = vector.load %arg8[%c0_351, %c0_352] : memref<8x128xf32, #tpu.memory_space<vmem>>, vector<8x128xf32>
    %cst_353 = arith.constant dense<0.000000e+00> : vector<4x128xf32>
    %228 = tpu.matmul %226, %227, %cst_353 {dimension_numbers = #tpu.dot_dimension_numbers<[1], [0], [0], [1], [0, 0, 1, 1], [], []>} : vector<4x8xf32>, vector<8x128xf32>, vector<4x128xf32> -> vector<4x128xf32>
    %c8_354 = arith.constant 8 : index
    %c0_355 = arith.constant 0 : index
    %229 = vector.load %arg12[%c8_354, %c0_355] : memref<32x128xf32, #tpu.memory_space<vmem>>, vector<4x128xf32>
    tpu.vector_store %arg12[%c8_354, %c0_355], %228 {strides = array<i32>} : memref<32x128xf32, #tpu.memory_space<vmem>>, vector<4x128xf32>,
    %230 = vector.extract_strided_slice %217 {offsets = [0, 24], sizes = [4, 8], strides = [1, 1]} : vector<4x64xf32> to vector<4x8xf32>
    %c0_356 = arith.constant 0 : index
    %c0_357 = arith.constant 0 : index
    %231 = vector.load %arg8[%c0_356, %c0_357] : memref<8x128xf32, #tpu.memory_space<vmem>>, vector<8x128xf32>
    %cst_358 = arith.constant dense<0.000000e+00> : vector<4x128xf32>
    %232 = tpu.matmul %230, %231, %cst_358 {dimension_numbers = #tpu.dot_dimension_numbers<[1], [0], [0], [1], [0, 0, 1, 1], [], []>} : vector<4x8xf32>, vector<8x128xf32>, vector<4x128xf32> -> vector<4x128xf32>
    %c12_359 = arith.constant 12 : index
    %c0_360 = arith.constant 0 : index
    %233 = vector.load %arg12[%c12_359, %c0_360] : memref<32x128xf32, #tpu.memory_space<vmem>>, vector<4x128xf32>
    tpu.vector_store %arg12[%c12_359, %c0_360], %232 {strides = array<i32>} : memref<32x128xf32, #tpu.memory_space<vmem>>, vector<4x128xf32>,
    %234 = vector.extract_strided_slice %217 {offsets = [0, 32], sizes = [4, 8], strides = [1, 1]} : vector<4x64xf32> to vector<4x8xf32>
    %c0_361 = arith.constant 0 : index
    %c0_362 = arith.constant 0 : index
    %235 = vector.load %arg8[%c0_361, %c0_362] : memref<8x128xf32, #tpu.memory_space<vmem>>, vector<8x128xf32>
    %cst_363 = arith.constant dense<0.000000e+00> : vector<4x128xf32>
    %236 = tpu.matmul %234, %235, %cst_363 {dimension_numbers = #tpu.dot_dimension_numbers<[1], [0], [0], [1], [0, 0, 1, 1], [], []>} : vector<4x8xf32>, vector<8x128xf32>, vector<4x128xf32> -> vector<4x128xf32>
    %c16_364 = arith.constant 16 : index
    %c0_365 = arith.constant 0 : index
    %237 = vector.load %arg12[%c16_364, %c0_365] : memref<32x128xf32, #tpu.memory_space<vmem>>, vector<4x128xf32>
    tpu.vector_store %arg12[%c16_364, %c0_365], %236 {strides = array<i32>} : memref<32x128xf32, #tpu.memory_space<vmem>>, vector<4x128xf32>,
    %238 = vector.extract_strided_slice %217 {offsets = [0, 40], sizes = [4, 8], strides = [1, 1]} : vector<4x64xf32> to vector<4x8xf32>
    %c0_366 = arith.constant 0 : index
    %c0_367 = arith.constant 0 : index
    %239 = vector.load %arg8[%c0_366, %c0_367] : memref<8x128xf32, #tpu.memory_space<vmem>>, vector<8x128xf32>
    %cst_368 = arith.constant dense<0.000000e+00> : vector<4x128xf32>
    %240 = tpu.matmul %238, %239, %cst_368 {dimension_numbers = #tpu.dot_dimension_numbers<[1], [0], [0], [1], [0, 0, 1, 1], [], []>} : vector<4x8xf32>, vector<8x128xf32>, vector<4x128xf32> -> vector<4x128xf32>
    %c20_369 = arith.constant 20 : index
    %c0_370 = arith.constant 0 : index
    %241 = vector.load %arg12[%c20_369, %c0_370] : memref<32x128xf32, #tpu.memory_space<vmem>>, vector<4x128xf32>
    tpu.vector_store %arg12[%c20_369, %c0_370], %240 {strides = array<i32>} : memref<32x128xf32, #tpu.memory_space<vmem>>, vector<4x128xf32>,
    %242 = vector.extract_strided_slice %217 {offsets = [0, 48], sizes = [4, 8], strides = [1, 1]} : vector<4x64xf32> to vector<4x8xf32>
    %c0_371 = arith.constant 0 : index
    %c0_372 = arith.constant 0 : index
    %243 = vector.load %arg8[%c0_371, %c0_372] : memref<8x128xf32, #tpu.memory_space<vmem>>, vector<8x128xf32>
    %cst_373 = arith.constant dense<0.000000e+00> : vector<4x128xf32>
    %244 = tpu.matmul %242, %243, %cst_373 {dimension_numbers = #tpu.dot_dimension_numbers<[1], [0], [0], [1], [0, 0, 1, 1], [], []>} : vector<4x8xf32>, vector<8x128xf32>, vector<4x128xf32> -> vector<4x128xf32>
    %c24_374 = arith.constant 24 : index
    %c0_375 = arith.constant 0 : index
    %245 = vector.load %arg12[%c24_374, %c0_375] : memref<32x128xf32, #tpu.memory_space<vmem>>, vector<4x128xf32>
    tpu.vector_store %arg12[%c24_374, %c0_375], %244 {strides = array<i32>} : memref<32x128xf32, #tpu.memory_space<vmem>>, vector<4x128xf32>,
    %246 = vector.extract_strided_slice %217 {offsets = [0, 56], sizes = [4, 8], strides = [1, 1]} : vector<4x64xf32> to vector<4x8xf32>
    %c0_376 = arith.constant 0 : index
    %c0_377 = arith.constant 0 : index
    %247 = vector.load %arg8[%c0_376, %c0_377] : memref<8x128xf32, #tpu.memory_space<vmem>>, vector<8x128xf32>
    %cst_378 = arith.constant dense<0.000000e+00> : vector<4x128xf32>
    %248 = tpu.matmul %246, %247, %cst_378 {dimension_numbers = #tpu.dot_dimension_numbers<[1], [0], [0], [1], [0, 0, 1, 1], [], []>} : vector<4x8xf32>, vector<8x128xf32>, vector<4x128xf32> -> vector<4x128xf32>
    %c28_379 = arith.constant 28 : index
    %c0_380 = arith.constant 0 : index
    %249 = vector.load %arg12[%c28_379, %c0_380] : memref<32x128xf32, #tpu.memory_space<vmem>>, vector<4x128xf32>
    tpu.vector_store %arg12[%c28_379, %c0_380], %248 {strides = array<i32>} : memref<32x128xf32, #tpu.memory_space<vmem>>, vector<4x128xf32>,
    %c0_381 = arith.constant 0 : index
    %c0_382 = arith.constant 0 : index
    %250 = vector.load %arg9[%c0_381, %c0_382] : memref<512x32xf32, #tpu.memory_space<vmem>>, vector<512x32xf32>
    %c0_383 = arith.constant 0 : index
    %c0_384 = arith.constant 0 : index
    %251 = vector.load %arg12[%c0_383, %c0_384] : memref<32x128xf32, #tpu.memory_space<vmem>>, vector<32x128xf32>
    %cst_385 = arith.constant dense<0.000000e+00> : vector<512x128xf32>
    %252 = tpu.matmul %250, %251, %cst_385 {dimension_numbers = #tpu.dot_dimension_numbers<[1], [0], [0], [1], [0, 0, 1, 1], [], []>} : vector<512x32xf32>, vector<32x128xf32>, vector<512x128xf32> -> vector<512x128xf32>
    %253 = vector.shape_cast %252 : vector<512x128xf32> to vector<4x128x128xf32>
    %c0_386 = arith.constant 0 : index
    %c4_387 = arith.constant 4 : index
    %c0_388 = arith.constant 0 : index
    %c0_389 = arith.constant 0 : index
    %254 = vector.load %arg10[%c0_386, %c4_387, %c0_388, %c0_389] : memref<1x8x128x128xf32, #tpu.memory_space<vmem>>, vector<1x4x128x128xf32>
    %255 = vector.shape_cast %254 : vector<1x4x128x128xf32> to vector<4x128x128xf32>
    %256 = vector.shape_cast %253 : vector<4x128x128xf32> to vector<1x4x128x128xf32>
    tpu.vector_store %arg10[%c0_386, %c4_387, %c0_388, %c0_389], %256 {strides = array<i32>} : memref<1x8x128x128xf32, #tpu.memory_space<vmem>>, vector<1x4x128x128xf32>,
    return
  }
  func.func @transform_0(%arg0: i32) -> (i32, i32, i32, i32) {
    %c0_i32 = arith.constant 0 : i32
    %c0_i32_0 = arith.constant 0 : i32
    %c0_i32_1 = arith.constant 0 : i32
    %c0_i32_2 = arith.constant 0 : i32
    return %arg0, %c0_i32, %c0_i32_0, %c0_i32_1 : i32, i32, i32, i32
  }
  func.func @transform_1(%arg0: i32) -> (i32, i32) {
    %c0_i32 = arith.constant 0 : i32
    %c0_i32_0 = arith.constant 0 : i32
    %c0_i32_1 = arith.constant 0 : i32
    return %c0_i32, %c0_i32_0 : i32, i32
  }
  func.func @transform_2(%arg0: i32) -> (i32, i32) {
    %c0_i32 = arith.constant 0 : i32
    %c0_i32_0 = arith.constant 0 : i32
    %c0_i32_1 = arith.constant 0 : i32
    return %c0_i32, %c0_i32_0 : i32, i32
  }
  func.func @transform_3(%arg0: i32) -> (i32, i32) {
    %c0_i32 = arith.constant 0 : i32
    %c0_i32_0 = arith.constant 0 : i32
    %c0_i32_1 = arith.constant 0 : i32
    return %c0_i32, %c0_i32_0 : i32, i32
  }
  func.func @transform_4(%arg0: i32) -> (i32, i32) {
    %c0_i32 = arith.constant 0 : i32
    %c0_i32_0 = arith.constant 0 : i32
    %c0_i32_1 = arith.constant 0 : i32
    return %c0_i32, %c0_i32_0 : i32, i32
  }
  func.func @transform_5(%arg0: i32) -> (i32, i32) {
    %c0_i32 = arith.constant 0 : i32
    %c0_i32_0 = arith.constant 0 : i32
    %c0_i32_1 = arith.constant 0 : i32
    return %c0_i32, %c0_i32_0 : i32, i32
  }
  func.func @transform_6(%arg0: i32) -> (i32, i32) {
    %c0_i32 = arith.constant 0 : i32
    %c0_i32_0 = arith.constant 0 : i32
    %c0_i32_1 = arith.constant 0 : i32
    return %c0_i32, %c0_i32_0 : i32, i32
  }
  func.func @transform_7(%arg0: i32) -> (i32, i32) {
    %c0_i32 = arith.constant 0 : i32
    %c0_i32_0 = arith.constant 0 : i32
    %c0_i32_1 = arith.constant 0 : i32
    return %c0_i32, %c0_i32_0 : i32, i32
  }
  func.func @transform_8(%arg0: i32) -> (i32, i32) {
    %c0_i32 = arith.constant 0 : i32
    %c0_i32_0 = arith.constant 0 : i32
    %c0_i32_1 = arith.constant 0 : i32
    return %c0_i32, %c0_i32_0 : i32, i32
  }
  func.func @transform_9(%arg0: i32) -> (i32, i32, i32, i32) {
    %c0_i32 = arith.constant 0 : i32
    %c0_i32_0 = arith.constant 0 : i32
    %c0_i32_1 = arith.constant 0 : i32
    %c0_i32_2 = arith.constant 0 : i32
    return %arg0, %c0_i32, %c0_i32_0, %c0_i32_1 : i32, i32, i32, i32
  }
}

</mosaic_0001>

<llo_original>
// kernel: forward.1
$region0: #{forward.1}
  #allocation0 [shape = 'u32[]', space=smem, size = 0x4, offset = 0x4, fixed_abs, tag = 'smem constant byte address 0x4 - core index']
  #allocation1 [shape = 'u32[72,128]{1,0:T(1,128)}', space=vmem, size = 0x9000, scoped, tag = 'internal scratch']
  #allocation2 [shape = 'f32[4,64]{1,0:T(4,128)}', space=vmem, size = 0x800, scoped, tag = 'scratch operand']
  #allocation3 [shape = 'f32[32,128]{1,0:T(8,128)}', space=vmem, size = 0x4000, scoped, tag = 'scratch operand']
  %s0 = inlined_call_operand.hbm [shape: f32[2,4,128,128], index: 0, kind: input, shape index: {}]
  %s1 = inlined_call_operand.vmem [shape: f32[8,4], index: 1, kind: input, shape index: {}]
  %s2 = inlined_call_operand.vmem [shape: f32[8,1], index: 2, kind: input, shape index: {}]
  %s3 = inlined_call_operand.vmem [shape: f32[64,64], index: 3, kind: input, shape index: {}]
  %s4 = inlined_call_operand.vmem [shape: f32[1,64], index: 4, kind: input, shape index: {}]
  %s5 = inlined_call_operand.vmem [shape: f32[4,4], index: 5, kind: input, shape index: {}]
  %s6 = inlined_call_operand.vmem [shape: f32[4,1], index: 6, kind: input, shape index: {}]
  %s7 = inlined_call_operand.vmem [shape: f32[8,128], index: 7, kind: input, shape index: {}]
  %s8 = inlined_call_operand.vmem [shape: f32[512,32], index: 8, kind: input, shape index: {}]
  %s9 = inlined_call_operand.hbm [shape: f32[2,8,128,128], index: 9, kind: output, shape index: {}]
  %s10 = sld [smem:[#allocation0]]
  $region73: #{forward.1} parent=0
    _
  %s12 = ssub.s32 1, %s10
  %s13 = scalar_select 0, %s12, %s10
  $region1: #{forward.1} parent=0
    #allocation4 [shape = 'u8[524288]{0}', space=vmem, size = 0x80000, scoped, tag = 'input window, operand 0']
    #allocation5 [shape = 's32[2]{0}', space=sflag, size = 0x8, scoped, tag = 'scoped memory for forward.1']
    #allocation6 [shape = 's32[2]{0}', space=sflag, size = 0x8, scoped, tag = 'scoped memory for forward.1']
    #allocation7 [shape = 'u8[1048576]{0}', space=vmem, size = 0x100000, scoped, tag = 'output window, operand 0']
    %14 = vsyncpa [#allocation5], 0
    %s15 = scalar_lea.sflag [#allocation5], 1
    %16 = vsyncpa %s15, 0
    %17 = vsyncpa [#allocation6], 0
    %s18 = scalar_lea.sflag [#allocation6], 1
    %19 = vsyncpa %s18, 0
    loop: start=0, step=1, limit=4
    $region2: #{forward.1} parent=1 // loop_pre_header
      _
    $region3: #{forward.1} parent=1 // loop_header
      %s21 = sphi 0, %s25
      %p22 = scmp.ge.s32.totalorder %s21, 4
      %s31 = sphi 0, %s33
      %s34 = sphi 0, %s31
      %s35 = sphi 0, %s34
      %s51 = sphi 0, %s35
      %s55 = sphi 0, %s55
      %s57 = sphi 0, %s55
      %s58 = sphi 0, %s57
      %s72 = sphi 0, %s58
      %s76 = sphi 0, %s76
      %s78 = sphi 0, %s76
      %s79 = sphi 0, %s78
      %s93 = sphi 0, %s79
      %s97 = sphi 0, %s97
      %s99 = sphi 0, %s97
      %s100 = sphi 0, %s99
      %s114 = sphi 0, %s100
      %s118 = sphi 0, %s118
      %s120 = sphi 0, %s118
      %s121 = sphi 0, %s120
      %s135 = sphi 0, %s121
      %s139 = sphi 0, %s139
      %s141 = sphi 0, %s139
      %s142 = sphi 0, %s141
      %s156 = sphi 0, %s142
      %s160 = sphi 0, %s160
      %s162 = sphi 0, %s160
      %s163 = sphi 0, %s162
      %s177 = sphi 0, %s163
      %s181 = sphi 0, %s181
      %s183 = sphi 0, %s181
      %s184 = sphi 0, %s183
      %s198 = sphi 0, %s184
      %s202 = sphi 0, %s202
      %s204 = sphi 0, %s202
      %s205 = sphi 0, %s204
      %s219 = sphi 0, %s205
      %s225 = sphi 0, %s227
      %s228 = sphi 0, %s225
      %s229 = sphi 0, %s228
      %s245 = sphi 0, %s229
    $region4: #{forward.1} parent=1 // loop_header_branch
      %24 = sbr.rel (%p22) target = $region8
    $region5: #{forward.1} parent=1 // loop_body
      %s26 = ssub.s32 %s21, 1
      %s27 = ssub.s32 %s21, 2
      %s28 = sadd.s32 %s21, 1
      %s29 = ssub.s32 %s21, %s28
      %p30 = scmp.eq.s32.totalorder %s29, 0
      %s32 = sadd.s32 %s31, 1
      %s33 = scalar_select %p30, %s31, %s32
      %p36 = pneg %p30
      %p37 = scmp.eq.s32.totalorder %s21, 1
      %p38 = por %p36, %p37
      %p39 = scmp.ne.s32.totalorder %s31, %s34
      %p40 = scmp.eq.s32.totalorder %s21, 0
      %p41 = por %p39, %p40
      %p42 = scmp.ne.s32.totalorder %s31, %s34
      %p43 = scmp.eq.s32.totalorder %s26, 1
      %p44 = por %p42, %p43
      %p45 = scmp.ne.s32.totalorder %s34, %s35
      %p46 = scmp.eq.s32.totalorder %s26, 0
      %p47 = por %p45, %p46
      %p48 = scmp.ne.s32.totalorder %s34, %s35
      %p49 = scmp.eq.s32.totalorder %s27, 1
      %p50 = por %p48, %p49
      %p52 = scmp.ne.s32.totalorder %s35, %s51
      %p53 = scmp.eq.s32.totalorder %s27, 0
      %p54 = por %p52, %p53
      %s56 = sadd.s32 %s55, 1
      %p59 = scmp.eq.s32.totalorder %s21, 1
      %p60 = scmp.ne.s32.totalorder %s55, %s57
      %p61 = scmp.eq.s32.totalorder %s21, 0
      %p62 = por %p60, %p61
      %p63 = scmp.ne.s32.totalorder %s55, %s57
      %p64 = scmp.eq.s32.totalorder %s26, 1
      %p65 = por %p63, %p64
      %p66 = scmp.ne.s32.totalorder %s57, %s58
      %p67 = scmp.eq.s32.totalorder %s26, 0
      %p68 = por %p66, %p67
      %p69 = scmp.ne.s32.totalorder %s57, %s58
      %p70 = scmp.eq.s32.totalorder %s27, 1
      %p71 = por %p69, %p70
      %p73 = scmp.ne.s32.totalorder %s58, %s72
      %p74 = scmp.eq.s32.totalorder %s27, 0
      %p75 = por %p73, %p74
      %s77 = sadd.s32 %s76, 1
      %p80 = scmp.eq.s32.totalorder %s21, 1
      %p81 = scmp.ne.s32.totalorder %s76, %s78
      %p82 = scmp.eq.s32.totalorder %s21, 0
      %p83 = por %p81, %p82
      %p84 = scmp.ne.s32.totalorder %s76, %s78
      %p85 = scmp.eq.s32.totalorder %s26, 1
      %p86 = por %p84, %p85
      %p87 = scmp.ne.s32.totalorder %s78, %s79
      %p88 = scmp.eq.s32.totalorder %s26, 0
      %p89 = por %p87, %p88
      %p90 = scmp.ne.s32.totalorder %s78, %s79
      %p91 = scmp.eq.s32.totalorder %s27, 1
      %p92 = por %p90, %p91
      %p94 = scmp.ne.s32.totalorder %s79, %s93
      %p95 = scmp.eq.s32.totalorder %s27, 0
      %p96 = por %p94, %p95
      %s98 = sadd.s32 %s97, 1
      %p101 = scmp.eq.s32.totalorder %s21, 1
      %p102 = scmp.ne.s32.totalorder %s97, %s99
      %p103 = scmp.eq.s32.totalorder %s21, 0
      %p104 = por %p102, %p103
      %p105 = scmp.ne.s32.totalorder %s97, %s99
      %p106 = scmp.eq.s32.totalorder %s26, 1
      %p107 = por %p105, %p106
      %p108 = scmp.ne.s32.totalorder %s99, %s100
      %p109 = scmp.eq.s32.totalorder %s26, 0
      %p110 = por %p108, %p109
      %p111 = scmp.ne.s32.totalorder %s99, %s100
      %p112 = scmp.eq.s32.totalorder %s27, 1
      %p113 = por %p111, %p112
      %p115 = scmp.ne.s32.totalorder %s100, %s114
      %p116 = scmp.eq.s32.totalorder %s27, 0
      %p117 = por %p115, %p116
      %s119 = sadd.s32 %s118, 1
      %p122 = scmp.eq.s32.totalorder %s21, 1
      %p123 = scmp.ne.s32.totalorder %s118, %s120
      %p124 = scmp.eq.s32.totalorder %s21, 0
      %p125 = por %p123, %p124
      %p126 = scmp.ne.s32.totalorder %s118, %s120
      %p127 = scmp.eq.s32.totalorder %s26, 1
      %p128 = por %p126, %p127
      %p129 = scmp.ne.s32.totalorder %s120, %s121
      %p130 = scmp.eq.s32.totalorder %s26, 0
      %p131 = por %p129, %p130
      %p132 = scmp.ne.s32.totalorder %s120, %s121
      %p133 = scmp.eq.s32.totalorder %s27, 1
      %p134 = por %p132, %p133
      %p136 = scmp.ne.s32.totalorder %s121, %s135
      %p137 = scmp.eq.s32.totalorder %s27, 0
      %p138 = por %p136, %p137
      %s140 = sadd.s32 %s139, 1
      %p143 = scmp.eq.s32.totalorder %s21, 1
      %p144 = scmp.ne.s32.totalorder %s139, %s141
      %p145 = scmp.eq.s32.totalorder %s21, 0
      %p146 = por %p144, %p145
      %p147 = scmp.ne.s32.totalorder %s139, %s141
      %p148 = scmp.eq.s32.totalorder %s26, 1
      %p149 = por %p147, %p148
      %p150 = scmp.ne.s32.totalorder %s141, %s142
      %p151 = scmp.eq.s32.totalorder %s26, 0
      %p152 = por %p150, %p151
      %p153 = scmp.ne.s32.totalorder %s141, %s142
      %p154 = scmp.eq.s32.totalorder %s27, 1
      %p155 = por %p153, %p154
      %p157 = scmp.ne.s32.totalorder %s142, %s156
      %p158 = scmp.eq.s32.totalorder %s27, 0
      %p159 = por %p157, %p158
      %s161 = sadd.s32 %s160, 1
      %p164 = scmp.eq.s32.totalorder %s21, 1
      %p165 = scmp.ne.s32.totalorder %s160, %s162
      %p166 = scmp.eq.s32.totalorder %s21, 0
      %p167 = por %p165, %p166
      %p168 = scmp.ne.s32.totalorder %s160, %s162
      %p169 = scmp.eq.s32.totalorder %s26, 1
      %p170 = por %p168, %p169
      %p171 = scmp.ne.s32.totalorder %s162, %s163
      %p172 = scmp.eq.s32.totalorder %s26, 0
      %p173 = por %p171, %p172
      %p174 = scmp.ne.s32.totalorder %s162, %s163
      %p175 = scmp.eq.s32.totalorder %s27, 1
      %p176 = por %p174, %p175
      %p178 = scmp.ne.s32.totalorder %s163, %s177
      %p179 = scmp.eq.s32.totalorder %s27, 0
      %p180 = por %p178, %p179
      %s182 = sadd.s32 %s181, 1
      %p185 = scmp.eq.s32.totalorder %s21, 1
      %p186 = scmp.ne.s32.totalorder %s181, %s183
      %p187 = scmp.eq.s32.totalorder %s21, 0
      %p188 = por %p186, %p187
      %p189 = scmp.ne.s32.totalorder %s181, %s183
      %p190 = scmp.eq.s32.totalorder %s26, 1
      %p191 = por %p189, %p190
      %p192 = scmp.ne.s32.totalorder %s183, %s184
      %p193 = scmp.eq.s32.totalorder %s26, 0
      %p194 = por %p192, %p193
      %p195 = scmp.ne.s32.totalorder %s183, %s184
      %p196 = scmp.eq.s32.totalorder %s27, 1
      %p197 = por %p195, %p196
      %p199 = scmp.ne.s32.totalorder %s184, %s198
      %p200 = scmp.eq.s32.totalorder %s27, 0
      %p201 = por %p199, %p200
      %s203 = sadd.s32 %s202, 1
      %p206 = scmp.eq.s32.totalorder %s21, 1
      %p207 = scmp.ne.s32.totalorder %s202, %s204
      %p208 = scmp.eq.s32.totalorder %s21, 0
      %p209 = por %p207, %p208
      %p210 = scmp.ne.s32.totalorder %s202, %s204
      %p211 = scmp.eq.s32.totalorder %s26, 1
      %p212 = por %p210, %p211
      %p213 = scmp.ne.s32.totalorder %s204, %s205
      %p214 = scmp.eq.s32.totalorder %s26, 0
      %p215 = por %p213, %p214
      %p216 = scmp.ne.s32.totalorder %s204, %s205
      %p217 = scmp.eq.s32.totalorder %s27, 1
      %p218 = por %p216, %p217
      %p220 = scmp.ne.s32.totalorder %s205, %s219
      %p221 = scmp.eq.s32.totalorder %s27, 0
      %p222 = por %p220, %p221
      %s223 = ssub.s32 %s21, %s28
      %p224 = scmp.eq.s32.totalorder %s223, 0
      %s226 = sadd.s32 %s225, 1
      %s227 = scalar_select %p224, %s225, %s226
      %p230 = pneg %p224
      %p231 = scmp.eq.s32.totalorder %s21, 1
      %p232 = por %p230, %p231
      %p233 = scmp.ne.s32.totalorder %s225, %s228
      %p234 = scmp.eq.s32.totalorder %s21, 0
      %p235 = por %p233, %p234
      %p236 = scmp.ne.s32.totalorder %s225, %s228
      %p237 = scmp.eq.s32.totalorder %s26, 1
      %p238 = por %p236, %p237
      %p239 = scmp.ne.s32.totalorder %s228, %s229
      %p240 = scmp.eq.s32.totalorder %s26, 0
      %p241 = por %p239, %p240
      %p242 = scmp.ne.s32.totalorder %s228, %s229
      %p243 = scmp.eq.s32.totalorder %s27, 1
      %p244 = por %p242, %p243
      %p246 = scmp.ne.s32.totalorder %s229, %s245
      %p247 = scmp.eq.s32.totalorder %s27, 0
      %p248 = por %p246, %p247
      %p249 = scmp.le.s32.totalorder 1, %s21
      %p250 = scmp.lt.s32.totalorder %s21, 3
      %p251 = pnand %p249, %p250
      %p252 = pneg %p251
      // Predicated region
      $region9: #{forward.1} parent=5 // pred_check
        _
      $region10: #{forward.1} parent=5 // pred_check_branch
        %254 = sbr.rel (%p251) target = $region12
      $region11: #{forward.1} parent=5 // pred_region
        %s255 = ssub.s32 %s21, 1
        // Predicated region
        $region13: #{forward.1} parent=11 // pred_check
          %p256 = pneg %p68
        $region14: #{forward.1} parent=11 // pred_check_branch
          %258 = sbr.rel (%p256) target = $region16
        $region15: #{forward.1} parent=11 // pred_region
          _
        $region16: #{forward.1} parent=11 // pred_fallthru
          _
        // Predicated region
        $region17: #{forward.1} parent=11 // pred_check
          %p259 = pneg %p89
        $region18: #{forward.1} parent=11 // pred_check_branch
          %261 = sbr.rel (%p259) target = $region20
        $region19: #{forward.1} parent=11 // pred_region
          _
        $region20: #{forward.1} parent=11 // pred_fallthru
          _
        // Predicated region
        $region21: #{forward.1} parent=11 // pred_check
          %p262 = pneg %p110
        $region22: #{forward.1} parent=11 // pred_check_branch
          %264 = sbr.rel (%p262) target = $region24
        $region23: #{forward.1} parent=11 // pred_region
          _
        $region24: #{forward.1} parent=11 // pred_fallthru
          _
        // Predicated region
        $region25: #{forward.1} parent=11 // pred_check
          %p265 = pneg %p131
        $region26: #{forward.1} parent=11 // pred_check_branch
          %267 = sbr.rel (%p265) target = $region28
        $region27: #{forward.1} parent=11 // pred_region
          _
        $region28: #{forward.1} parent=11 // pred_fallthru
          _
        // Predicated region
        $region29: #{forward.1} parent=11 // pred_check
          %p268 = pneg %p152
        $region30: #{forward.1} parent=11 // pred_check_branch
          %270 = sbr.rel (%p268) target = $region32
        $region31: #{forward.1} parent=11 // pred_region
          _
        $region32: #{forward.1} parent=11 // pred_fallthru
          _
        // Predicated region
        $region33: #{forward.1} parent=11 // pred_check
          %p271 = pneg %p173
        $region34: #{forward.1} parent=11 // pred_check_branch
          %273 = sbr.rel (%p271) target = $region36
        $region35: #{forward.1} parent=11 // pred_region
          _
        $region36: #{forward.1} parent=11 // pred_fallthru
          _
        // Predicated region
        $region37: #{forward.1} parent=11 // pred_check
          %p274 = pneg %p194
        $region38: #{forward.1} parent=11 // pred_check_branch
          %276 = sbr.rel (%p274) target = $region40
        $region39: #{forward.1} parent=11 // pred_region
          _
        $region40: #{forward.1} parent=11 // pred_fallthru
          _
        // Predicated region
        $region41: #{forward.1} parent=11 // pred_check
          %p277 = pneg %p215
        $region42: #{forward.1} parent=11 // pred_check_branch
          %279 = sbr.rel (%p277) target = $region44
        $region43: #{forward.1} parent=11 // pred_region
          _
        $region44: #{forward.1} parent=11 // pred_fallthru
          _
      $region12: #{forward.1} parent=5 // pred_fallthru
        _
      %p280 = scmp.lt.s32.totalorder %s21, 2
      // Predicated region
      $region45: #{forward.1} parent=5 // pred_check
        %p281 = pneg %p280
      $region46: #{forward.1} parent=5 // pred_check_branch
        %283 = sbr.rel (%p281) target = $region48
      $region47: #{forward.1} parent=5 // pred_region
        // Predicated region
        $region49: #{forward.1} parent=47 // pred_check
          %p284 = pneg %p41
        $region50: #{forward.1} parent=47 // pred_check_branch
          %286 = sbr.rel (%p284) target = $region52
        $region51: #{forward.1} parent=47 // pred_region
          %s287 = sand.u32 %s31, 1
          %s288 = scalar_lea.sflag [#allocation5], %s287
          %s289 = sand.u32 %s31, 1
          %s290 = smul.addr %s289, 512
          %s291 = scalar_lea.vmem [#allocation4], %s290
          %293 = vsyncadd %s288, 0
          %s294 = smul.addr %s21, 64
          %s295 = smul.addr %s294, 8
          %s296 = scalar_lea.hbm %s0, %s295
          %s297 = sshll.u32 %s296, 4
          %s298 = int_to_ptr.hbm [resolvable:$true] %s297
          %s299 = sshll.u32 %s291, 4
          %s300 = int_to_ptr.vmem [resolvable:$true] %s299
          %305 = dma.hbm_to_vmem [thread:$0]  %s298, 8192, %s300, %s288, 128, 128, 8
        $region52: #{forward.1} parent=47 // pred_fallthru
          _
      $region48: #{forward.1} parent=5 // pred_fallthru
        _
      %p306 = scmp.le.s32.totalorder 1, %s21
      %p307 = scmp.lt.s32.totalorder %s21, 3
      %p308 = pnand %p306, %p307
      %p309 = pneg %p308
      // Predicated region
      $region53: #{forward.1} parent=5 // pred_check
        _
      $region54: #{forward.1} parent=5 // pred_check_branch
        %311 = sbr.rel (%p308) target = $region56
      $region55: #{forward.1} parent=5 // pred_region
        %s312 = ssub.s32 %s21, 1
        %s313 = sand.u32 %s34, 1
        %s314 = scalar_lea.sflag [#allocation5], %s313
        %s315 = sand.u32 %s34, 1
        %s316 = smul.addr %s315, 512
        %s317 = scalar_lea.vmem [#allocation4], %s316
        // Predicated region
        $region57: #{forward.1} parent=55 // pred_check
          %p318 = pneg %p47
        $region58: #{forward.1} parent=55 // pred_check_branch
          %320 = sbr.rel (%p318) target = $region60
        $region59: #{forward.1} parent=55 // pred_region
          %322 = dma.done %s314, 8192
        $region60: #{forward.1} parent=55 // pred_fallthru
          _
        %s323 = sand.u32 %s34, 1
        %s324 = scalar_lea.sflag [#allocation5], %s323
        %s325 = sand.u32 %s34, 1
        %s326 = smul.addr %s325, 512
        %s327 = scalar_lea.vmem [#allocation4], %s326
        %p328 = pneg %p47
        %p329 = pneg %p44
        %p330 = pneg %p68
        %p331 = pneg %p65
        %p332 = pneg %p89
        %p333 = pneg %p86
        %p334 = pneg %p110
        %p335 = pneg %p107
        %p336 = pneg %p131
        %p337 = pneg %p128
        %p338 = pneg %p152
        %p339 = pneg %p149
        %p340 = pneg %p173
        %p341 = pneg %p170
        %p342 = pneg %p194
        %p343 = pneg %p191
        %p344 = pneg %p215
        %p345 = pneg %p212
        %p346 = pneg %p241
        %p347 = pneg %p238
        %s348 = sand.u32 %s228, 1
        %s349 = scalar_lea.sflag [#allocation6], %s348
        %s350 = sand.u32 %s228, 1
        %s351 = smul.addr %s350, 1024
        %s352 = scalar_lea.vmem [#allocation7], %s351
        %v353 = vld [vmem:[%s317] sm:$0xff]
        %v354 = vld [vmem:[%s317 + $0x8] sm:$0xff]
        %v355 = vld [vmem:[%s317 + $0x10] sm:$0xff]
        %v356 = vld [vmem:[%s317 + $0x18] sm:$0xff]
        %v357 = vld [vmem:[%s317 + $0x20] sm:$0xff]
        %v358 = vld [vmem:[%s317 + $0x28] sm:$0xff]
        %v359 = vld [vmem:[%s317 + $0x30] sm:$0xff]
        %v360 = vld [vmem:[%s317 + $0x38] sm:$0xff]
        %v361 = vld [vmem:[%s317 + $0x40] sm:$0xff]
        %v362 = vld [vmem:[%s317 + $0x48] sm:$0xff]
        %v363 = vld [vmem:[%s317 + $0x50] sm:$0xff]
        %v364 = vld [vmem:[%s317 + $0x58] sm:$0xff]
        %v365 = vld [vmem:[%s317 + $0x60] sm:$0xff]
        %v366 = vld [vmem:[%s317 + $0x68] sm:$0xff]
        %v367 = vld [vmem:[%s317 + $0x70] sm:$0xff]
        %v368 = vld [vmem:[%s317 + $0x78] sm:$0xff]
        %v369 = vld [vmem:[%s317 + $0x80] sm:$0xff]
        %v370 = vld [vmem:[%s317 + $0x88] sm:$0xff]
        %v371 = vld [vmem:[%s317 + $0x90] sm:$0xff]
        %v372 = vld [vmem:[%s317 + $0x98] sm:$0xff]
        %v373 = vld [vmem:[%s317 + $0xa0] sm:$0xff]
        %v374 = vld [vmem:[%s317 + $0xa8] sm:$0xff]
        %v375 = vld [vmem:[%s317 + $0xb0] sm:$0xff]
        %v376 = vld [vmem:[%s317 + $0xb8] sm:$0xff]
        %v377 = vld [vmem:[%s317 + $0xc0] sm:$0xff]
        %v378 = vld [vmem:[%s317 + $0xc8] sm:$0xff]
        %v379 = vld [vmem:[%s317 + $0xd0] sm:$0xff]
        %v380 = vld [vmem:[%s317 + $0xd8] sm:$0xff]
        %v381 = vld [vmem:[%s317 + $0xe0] sm:$0xff]
        %v382 = vld [vmem:[%s317 + $0xe8] sm:$0xff]
        %v383 = vld [vmem:[%s317 + $0xf0] sm:$0xff]
        %v384 = vld [vmem:[%s317 + $0xf8] sm:$0xff]
        %v385 = vld [vmem:[%s317 + $0x100] sm:$0xff]
        %v386 = vld [vmem:[%s317 + $0x108] sm:$0xff]
        %v387 = vld [vmem:[%s317 + $0x110] sm:$0xff]
        %v388 = vld [vmem:[%s317 + $0x118] sm:$0xff]
        %v389 = vld [vmem:[%s317 + $0x120] sm:$0xff]
        %v390 = vld [vmem:[%s317 + $0x128] sm:$0xff]
        %v391 = vld [vmem:[%s317 + $0x130] sm:$0xff]
        %v392 = vld [vmem:[%s317 + $0x138] sm:$0xff]
        %v393 = vld [vmem:[%s317 + $0x140] sm:$0xff]
        %v394 = vld [vmem:[%s317 + $0x148] sm:$0xff]
        %v395 = vld [vmem:[%s317 + $0x150] sm:$0xff]
        %v396 = vld [vmem:[%s317 + $0x158] sm:$0xff]
        %v397 = vld [vmem:[%s317 + $0x160] sm:$0xff]
        %v398 = vld [vmem:[%s317 + $0x168] sm:$0xff]
        %v399 = vld [vmem:[%s317 + $0x170] sm:$0xff]
        %v400 = vld [vmem:[%s317 + $0x178] sm:$0xff]
        %v401 = vld [vmem:[%s317 + $0x180] sm:$0xff]
        %v402 = vld [vmem:[%s317 + $0x188] sm:$0xff]
        %v403 = vld [vmem:[%s317 + $0x190] sm:$0xff]
        %v404 = vld [vmem:[%s317 + $0x198] sm:$0xff]
        %v405 = vld [vmem:[%s317 + $0x1a0] sm:$0xff]
        %v406 = vld [vmem:[%s317 + $0x1a8] sm:$0xff]
        %v407 = vld [vmem:[%s317 + $0x1b0] sm:$0xff]
        %v408 = vld [vmem:[%s317 + $0x1b8] sm:$0xff]
        %v409 = vld [vmem:[%s317 + $0x1c0] sm:$0xff]
        %v410 = vld [vmem:[%s317 + $0x1c8] sm:$0xff]
        %v411 = vld [vmem:[%s317 + $0x1d0] sm:$0xff]
        %v412 = vld [vmem:[%s317 + $0x1d8] sm:$0xff]
        %v413 = vld [vmem:[%s317 + $0x1e0] sm:$0xff]
        %v414 = vld [vmem:[%s317 + $0x1e8] sm:$0xff]
        %v415 = vld [vmem:[%s317 + $0x1f0] sm:$0xff]
        %v416 = vld [vmem:[%s317 + $0x1f8] sm:$0xff]
        %417 = vst [vmem:[%s352] sm:$0xff] %v353
        %418 = vst [vmem:[%s352 + $0x8] sm:$0xff] %v354
        %419 = vst [vmem:[%s352 + $0x10] sm:$0xff] %v355
        %420 = vst [vmem:[%s352 + $0x18] sm:$0xff] %v356
        %421 = vst [vmem:[%s352 + $0x20] sm:$0xff] %v357
        %422 = vst [vmem:[%s352 + $0x28] sm:$0xff] %v358
        %423 = vst [vmem:[%s352 + $0x30] sm:$0xff] %v359
        %424 = vst [vmem:[%s352 + $0x38] sm:$0xff] %v360
        %425 = vst [vmem:[%s352 + $0x40] sm:$0xff] %v361
        %426 = vst [vmem:[%s352 + $0x48] sm:$0xff] %v362
        %427 = vst [vmem:[%s352 + $0x50] sm:$0xff] %v363
        %428 = vst [vmem:[%s352 + $0x58] sm:$0xff] %v364
        %429 = vst [vmem:[%s352 + $0x60] sm:$0xff] %v365
        %430 = vst [vmem:[%s352 + $0x68] sm:$0xff] %v366
        %431 = vst [vmem:[%s352 + $0x70] sm:$0xff] %v367
        %432 = vst [vmem:[%s352 + $0x78] sm:$0xff] %v368
        %433 = vst [vmem:[%s352 + $0x80] sm:$0xff] %v369
        %434 = vst [vmem:[%s352 + $0x88] sm:$0xff] %v370
        %435 = vst [vmem:[%s352 + $0x90] sm:$0xff] %v371
        %436 = vst [vmem:[%s352 + $0x98] sm:$0xff] %v372
        %437 = vst [vmem:[%s352 + $0xa0] sm:$0xff] %v373
        %438 = vst [vmem:[%s352 + $0xa8] sm:$0xff] %v374
        %439 = vst [vmem:[%s352 + $0xb0] sm:$0xff] %v375
        %440 = vst [vmem:[%s352 + $0xb8] sm:$0xff] %v376
        %441 = vst [vmem:[%s352 + $0xc0] sm:$0xff] %v377
        %442 = vst [vmem:[%s352 + $0xc8] sm:$0xff] %v378
        %443 = vst [vmem:[%s352 + $0xd0] sm:$0xff] %v379
        %444 = vst [vmem:[%s352 + $0xd8] sm:$0xff] %v380
        %445 = vst [vmem:[%s352 + $0xe0] sm:$0xff] %v381
        %446 = vst [vmem:[%s352 + $0xe8] sm:$0xff] %v382
        %447 = vst [vmem:[%s352 + $0xf0] sm:$0xff] %v383
        %448 = vst [vmem:[%s352 + $0xf8] sm:$0xff] %v384
        %449 = vst [vmem:[%s352 + $0x100] sm:$0xff] %v385
        %450 = vst [vmem:[%s352 + $0x108] sm:$0xff] %v386
        %451 = vst [vmem:[%s352 + $0x110] sm:$0xff] %v387
        %452 = vst [vmem:[%s352 + $0x118] sm:$0xff] %v388
        %453 = vst [vmem:[%s352 + $0x120] sm:$0xff] %v389
        %454 = vst [vmem:[%s352 + $0x128] sm:$0xff] %v390
        %455 = vst [vmem:[%s352 + $0x130] sm:$0xff] %v391
        %456 = vst [vmem:[%s352 + $0x138] sm:$0xff] %v392
        %457 = vst [vmem:[%s352 + $0x140] sm:$0xff] %v393
        %458 = vst [vmem:[%s352 + $0x148] sm:$0xff] %v394
        %459 = vst [vmem:[%s352 + $0x150] sm:$0xff] %v395
        %460 = vst [vmem:[%s352 + $0x158] sm:$0xff] %v396
        %461 = vst [vmem:[%s352 + $0x160] sm:$0xff] %v397
        %462 = vst [vmem:[%s352 + $0x168] sm:$0xff] %v398
        %463 = vst [vmem:[%s352 + $0x170] sm:$0xff] %v399
        %464 = vst [vmem:[%s352 + $0x178] sm:$0xff] %v400
        %465 = vst [vmem:[%s352 + $0x180] sm:$0xff] %v401
        %466 = vst [vmem:[%s352 + $0x188] sm:$0xff] %v402
        %467 = vst [vmem:[%s352 + $0x190] sm:$0xff] %v403
        %468 = vst [vmem:[%s352 + $0x198] sm:$0xff] %v404
        %469 = vst [vmem:[%s352 + $0x1a0] sm:$0xff] %v405
        %470 = vst [vmem:[%s352 + $0x1a8] sm:$0xff] %v406
        %471 = vst [vmem:[%s352 + $0x1b0] sm:$0xff] %v407
        %472 = vst [vmem:[%s352 + $0x1b8] sm:$0xff] %v408
        %473 = vst [vmem:[%s352 + $0x1c0] sm:$0xff] %v409
        %474 = vst [vmem:[%s352 + $0x1c8] sm:$0xff] %v410
        %475 = vst [vmem:[%s352 + $0x1d0] sm:$0xff] %v411
        %476 = vst [vmem:[%s352 + $0x1d8] sm:$0xff] %v412
        %477 = vst [vmem:[%s352 + $0x1e0] sm:$0xff] %v413
        %478 = vst [vmem:[%s352 + $0x1e8] sm:$0xff] %v414
        %479 = vst [vmem:[%s352 + $0x1f0] sm:$0xff] %v415
        %480 = vst [vmem:[%s352 + $0x1f8] sm:$0xff] %v416
        %v481 = vld [vmem:[%s317] sm:$0x1]
        %v482 = vld [vmem:[%s317 + $0x80] sm:$0x1]
        %v483 = vld [vmem:[%s317 + $0x100] sm:$0x1]
        %v484 = vld [vmem:[%s317 + $0x180] sm:$0x1]
        %v489 = vrot.slane %v482, 7
        %vm490 = vcmask 1041409
        %v491 = vsel %vm490, %v489, %v481
        %v492 = vrot.slane %v483, 6
        %vm493 = vcmask 1042434
        %v494 = vsel %vm493, %v492, %v491
        %v495 = vrot.slane %v484, 5
        %vm496 = vcmask 1043459
        %v497 = vsel %vm496, %v495, %v494
        %vm499 = vcmask 3072
        %500 = vst.msk [vmem:[#allocation2] sm:$0xf] %vm499, %v497
        %v501 = vld [vmem:[%s317] sm:$0x1]
        %v502 = vld [vmem:[%s317 + $0x80] sm:$0x1]
        %v503 = vld [vmem:[%s317 + $0x100] sm:$0x1]
        %v504 = vld [vmem:[%s317 + $0x180] sm:$0x1]
        %v509 = vrot.slane %v502, 7
        %v510 = vsel %vm490, %v509, %v501
        %v511 = vrot.slane %v503, 6
        %v512 = vsel %vm493, %v511, %v510
        %v513 = vrot.slane %v504, 5
        %v514 = vsel %vm496, %v513, %v512
        %515 = vrot.lane.b32.xlu0 %v514, 113
        %v516 = vpop.permute.xlu0 %515
        %vm518 = vcmask 11272
        %519 = vst.msk [vmem:[#allocation2] sm:$0xf] %vm518, %v516
        %v520 = vld [vmem:[%s317] sm:$0x1]
        %v521 = vld [vmem:[%s317 + $0x80] sm:$0x1]
        %v522 = vld [vmem:[%s317 + $0x100] sm:$0x1]
        %v523 = vld [vmem:[%s317 + $0x180] sm:$0x1]
        %v528 = vrot.slane %v521, 7
        %v529 = vsel %vm490, %v528, %v520
        %v530 = vrot.slane %v522, 6
        %v531 = vsel %vm493, %v530, %v529
        %v532 = vrot.slane %v523, 5
        %v533 = vsel %vm496, %v532, %v531
        %534 = vrot.lane.b32.xlu0 %v533, 98
        %v535 = vpop.permute.xlu0 %534
        %vm537 = vcmask 19472
        %538 = vst.msk [vmem:[#allocation2] sm:$0xf] %vm537, %v535
        %v539 = vld [vmem:[%s317] sm:$0x1]
        %v540 = vld [vmem:[%s317 + $0x80] sm:$0x1]
        %v541 = vld [vmem:[%s317 + $0x100] sm:$0x1]
        %v542 = vld [vmem:[%s317 + $0x180] sm:$0x1]
        %v547 = vrot.slane %v540, 7
        %v548 = vsel %vm490, %v547, %v539
        %v549 = vrot.slane %v541, 6
        %v550 = vsel %vm493, %v549, %v548
        %v551 = vrot.slane %v542, 5
        %v552 = vsel %vm496, %v551, %v550
        %553 = vrot.lane.b32.xlu0 %v552, 83
        %v554 = vpop.permute.xlu0 %553
        %vm556 = vcmask 27672
        %557 = vst.msk [vmem:[#allocation2] sm:$0xf] %vm556, %v554
        %v558 = vld [vmem:[%s317] sm:$0x1]
        %v559 = vld [vmem:[%s317 + $0x80] sm:$0x1]
        %v560 = vld [vmem:[%s317 + $0x100] sm:$0x1]
        %v561 = vld [vmem:[%s317 + $0x180] sm:$0x1]
        %v566 = vrot.slane %v559, 7
        %v567 = vsel %vm490, %v566, %v558
        %v568 = vrot.slane %v560, 6
        %v569 = vsel %vm493, %v568, %v567
        %v570 = vrot.slane %v561, 5
        %v571 = vsel %vm496, %v570, %v569
        %572 = vrot.lane.b32.xlu0 %v571, 68
        %v573 = vpop.permute.xlu0 %572
        %vm575 = vcmask 35872
        %576 = vst.msk [vmem:[#allocation2] sm:$0xf] %vm575, %v573
        %v577 = vld [vmem:[%s317] sm:$0x1]
        %v578 = vld [vmem:[%s317 + $0x80] sm:$0x1]
        %v579 = vld [vmem:[%s317 + $0x100] sm:$0x1]
        %v580 = vld [vmem:[%s317 + $0x180] sm:$0x1]
        %v585 = vrot.slane %v578, 7
        %v586 = vsel %vm490, %v585, %v577
        %v587 = vrot.slane %v579, 6
        %v588 = vsel %vm493, %v587, %v586
        %v589 = vrot.slane %v580, 5
        %v590 = vsel %vm496, %v589, %v588
        %591 = vrot.lane.b32.xlu0 %v590, 53
        %v592 = vpop.permute.xlu0 %591
        %vm594 = vcmask 44072
        %595 = vst.msk [vmem:[#allocation2] sm:$0xf] %vm594, %v592
        %v596 = vld [vmem:[%s317] sm:$0x1]
        %v597 = vld [vmem:[%s317 + $0x80] sm:$0x1]
        %v598 = vld [vmem:[%s317 + $0x100] sm:$0x1]
        %v599 = vld [vmem:[%s317 + $0x180] sm:$0x1]
        %v604 = vrot.slane %v597, 7
        %v605 = vsel %vm490, %v604, %v596
        %v606 = vrot.slane %v598, 6
        %v607 = vsel %vm493, %v606, %v605
        %v608 = vrot.slane %v599, 5
        %v609 = vsel %vm496, %v608, %v607
        %610 = vrot.lane.b32.xlu0 %v609, 38
        %v611 = vpop.permute.xlu0 %610
        %vm613 = vcmask 52272
        %614 = vst.msk [vmem:[#allocation2] sm:$0xf] %vm613, %v611
        %v615 = vld [vmem:[%s317] sm:$0x1]
        %v616 = vld [vmem:[%s317 + $0x80] sm:$0x1]
        %v617 = vld [vmem:[%s317 + $0x100] sm:$0x1]
        %v618 = vld [vmem:[%s317 + $0x180] sm:$0x1]
        %v623 = vrot.slane %v616, 7
        %v624 = vsel %vm490, %v623, %v615
        %v625 = vrot.slane %v617, 6
        %v626 = vsel %vm493, %v625, %v624
        %v627 = vrot.slane %v618, 5
        %v628 = vsel %vm496, %v627, %v626
        %629 = vrot.lane.b32.xlu0 %v628, 23
        %v630 = vpop.permute.xlu0 %629
        %vm632 = vcmask 60472
        %633 = vst.msk [vmem:[#allocation2] sm:$0xf] %vm632, %v630
        %v634 = vld [vmem:[%s317 + $0x10] sm:$0x1]
        %v635 = vld [vmem:[%s317 + $0x90] sm:$0x1]
        %v636 = vld [vmem:[%s317 + $0x110] sm:$0x1]
        %v637 = vld [vmem:[%s317 + $0x190] sm:$0x1]
        %v642 = vrot.slane %v635, 7
        %v643 = vsel %vm490, %v642, %v634
        %v644 = vrot.slane %v636, 6
        %v645 = vsel %vm493, %v644, %v643
        %v646 = vrot.slane %v637, 5
        %v647 = vsel %vm496, %v646, %v645
        %648 = vrot.lane.b32.xlu0 %v647, 8
        %v649 = vpop.permute.xlu0 %648
        %vm651 = vcmask 68672
        %652 = vst.msk [vmem:[#allocation2] sm:$0xf] %vm651, %v649
        %v653 = vld [vmem:[%s317 + $0x10] sm:$0x1]
        %v654 = vld [vmem:[%s317 + $0x90] sm:$0x1]
        %v655 = vld [vmem:[%s317 + $0x110] sm:$0x1]
        %v656 = vld [vmem:[%s317 + $0x190] sm:$0x1]
        %v661 = vrot.slane %v654, 7
        %v662 = vsel %vm490, %v661, %v653
        %v663 = vrot.slane %v655, 6
        %v664 = vsel %vm493, %v663, %v662
        %v665 = vrot.slane %v656, 5
        %v666 = vsel %vm496, %v665, %v664
        %667 = vrot.lane.b32.xlu0 %v666, 121
        %v668 = vpop.permute.xlu0 %667
        %vm670 = vcmask 76872
        %671 = vst.msk [vmem:[#allocation2] sm:$0xf] %vm670, %v668
        %v672 = vld [vmem:[%s317 + $0x10] sm:$0x1]
        %v673 = vld [vmem:[%s317 + $0x90] sm:$0x1]
        %v674 = vld [vmem:[%s317 + $0x110] sm:$0x1]
        %v675 = vld [vmem:[%s317 + $0x190] sm:$0x1]
        %v680 = vrot.slane %v673, 7
        %v681 = vsel %vm490, %v680, %v672
        %v682 = vrot.slane %v674, 6
        %v683 = vsel %vm493, %v682, %v681
        %v684 = vrot.slane %v675, 5
        %v685 = vsel %vm496, %v684, %v683
        %686 = vrot.lane.b32.xlu0 %v685, 106
        %v687 = vpop.permute.xlu0 %686
        %vm689 = vcmask 85072
        %690 = vst.msk [vmem:[#allocation2] sm:$0xf] %vm689, %v687
        %v691 = vld [vmem:[%s317 + $0x10] sm:$0x1]
        %v692 = vld [vmem:[%s317 + $0x90] sm:$0x1]
        %v693 = vld [vmem:[%s317 + $0x110] sm:$0x1]
        %v694 = vld [vmem:[%s317 + $0x190] sm:$0x1]
        %v699 = vrot.slane %v692, 7
        %v700 = vsel %vm490, %v699, %v691
        %v701 = vrot.slane %v693, 6
        %v702 = vsel %vm493, %v701, %v700
        %v703 = vrot.slane %v694, 5
        %v704 = vsel %vm496, %v703, %v702
        %705 = vrot.lane.b32.xlu0 %v704, 91
        %v706 = vpop.permute.xlu0 %705
        %vm708 = vcmask 93272
        %709 = vst.msk [vmem:[#allocation2] sm:$0xf] %vm708, %v706
        %v710 = vld [vmem:[%s317 + $0x10] sm:$0x1]
        %v711 = vld [vmem:[%s317 + $0x90] sm:$0x1]
        %v712 = vld [vmem:[%s317 + $0x110] sm:$0x1]
        %v713 = vld [vmem:[%s317 + $0x190] sm:$0x1]
        %v718 = vrot.slane %v711, 7
        %v719 = vsel %vm490, %v718, %v710
        %v720 = vrot.slane %v712, 6
        %v721 = vsel %vm493, %v720, %v719
        %v722 = vrot.slane %v713, 5
        %v723 = vsel %vm496, %v722, %v721
        %724 = vrot.lane.b32.xlu0 %v723, 76
        %v725 = vpop.permute.xlu0 %724
        %vm727 = vcmask 101472
        %728 = vst.msk [vmem:[#allocation2] sm:$0xf] %vm727, %v725
        %v729 = vld [vmem:[%s317 + $0x10] sm:$0x1]
        %v730 = vld [vmem:[%s317 + $0x90] sm:$0x1]
        %v731 = vld [vmem:[%s317 + $0x110] sm:$0x1]
        %v732 = vld [vmem:[%s317 + $0x190] sm:$0x1]
        %v737 = vrot.slane %v730, 7
        %v738 = vsel %vm490, %v737, %v729
        %v739 = vrot.slane %v731, 6
        %v740 = vsel %vm493, %v739, %v738
        %v741 = vrot.slane %v732, 5
        %v742 = vsel %vm496, %v741, %v740
        %743 = vrot.lane.b32.xlu0 %v742, 61
        %v744 = vpop.permute.xlu0 %743
        %vm746 = vcmask 109672
        %747 = vst.msk [vmem:[#allocation2] sm:$0xf] %vm746, %v744
        %v748 = vld [vmem:[%s317 + $0x10] sm:$0x1]
        %v749 = vld [vmem:[%s317 + $0x90] sm:$0x1]
        %v750 = vld [vmem:[%s317 + $0x110] sm:$0x1]
        %v751 = vld [vmem:[%s317 + $0x190] sm:$0x1]
        %v756 = vrot.slane %v749, 7
        %v757 = vsel %vm490, %v756, %v748
        %v758 = vrot.slane %v750, 6
        %v759 = vsel %vm493, %v758, %v757
        %v760 = vrot.slane %v751, 5
        %v761 = vsel %vm496, %v760, %v759
        %762 = vrot.lane.b32.xlu0 %v761, 46
        %v763 = vpop.permute.xlu0 %762
        %vm765 = vcmask 117872
        %766 = vst.msk [vmem:[#allocation2] sm:$0xf] %vm765, %v763
        %v767 = vld [vmem:[%s317 + $0x10] sm:$0x1]
        %v768 = vld [vmem:[%s317 + $0x90] sm:$0x1]
        %v769 = vld [vmem:[%s317 + $0x110] sm:$0x1]
        %v770 = vld [vmem:[%s317 + $0x190] sm:$0x1]
        %v775 = vrot.slane %v768, 7
        %v776 = vsel %vm490, %v775, %v767
        %v777 = vrot.slane %v769, 6
        %v778 = vsel %vm493, %v777, %v776
        %v779 = vrot.slane %v770, 5
        %v780 = vsel %vm496, %v779, %v778
        %781 = vrot.lane.b32.xlu0 %v780, 31
        %v782 = vpop.permute.xlu0 %781
        %vm784 = vcmask 126072
        %785 = vst.msk [vmem:[#allocation2] sm:$0xf] %vm784, %v782
        %v786 = vld [vmem:[%s317 + $0x20] sm:$0x1]
        %v787 = vld [vmem:[%s317 + $0xa0] sm:$0x1]
        %v788 = vld [vmem:[%s317 + $0x120] sm:$0x1]
        %v789 = vld [vmem:[%s317 + $0x1a0] sm:$0x1]
        %v794 = vrot.slane %v787, 7
        %v795 = vsel %vm490, %v794, %v786
        %v796 = vrot.slane %v788, 6
        %v797 = vsel %vm493, %v796, %v795
        %v798 = vrot.slane %v789, 5
        %v799 = vsel %vm496, %v798, %v797
        %800 = vrot.lane.b32.xlu0 %v799, 16
        %v801 = vpop.permute.xlu0 %800
        %vm803 = vcmask 134272
        %804 = vst.msk [vmem:[#allocation2] sm:$0xf] %vm803, %v801
        %v805 = vld [vmem:[%s317 + $0x20] sm:$0x1]
        %v806 = vld [vmem:[%s317 + $0xa0] sm:$0x1]
        %v807 = vld [vmem:[%s317 + $0x120] sm:$0x1]
        %v808 = vld [vmem:[%s317 + $0x1a0] sm:$0x1]
        %v813 = vrot.slane %v806, 7
        %v814 = vsel %vm490, %v813, %v805
        %v815 = vrot.slane %v807, 6
        %v816 = vsel %vm493, %v815, %v814
        %v817 = vrot.slane %v808, 5
        %v818 = vsel %vm496, %v817, %v816
        %819 = vrot.lane.b32.xlu0 %v818, 1
        %v820 = vpop.permute.xlu0 %819
        %vm822 = vcmask 142472
        %823 = vst.msk [vmem:[#allocation2] sm:$0xf] %vm822, %v820
        %v824 = vld [vmem:[%s317 + $0x20] sm:$0x1]
        %v825 = vld [vmem:[%s317 + $0xa0] sm:$0x1]
        %v826 = vld [vmem:[%s317 + $0x120] sm:$0x1]
        %v827 = vld [vmem:[%s317 + $0x1a0] sm:$0x1]
        %v832 = vrot.slane %v825, 7
        %v833 = vsel %vm490, %v832, %v824
        %v834 = vrot.slane %v826, 6
        %v835 = vsel %vm493, %v834, %v833
        %v836 = vrot.slane %v827, 5
        %v837 = vsel %vm496, %v836, %v835
        %838 = vrot.lane.b32.xlu0 %v837, 114
        %v839 = vpop.permute.xlu0 %838
        %vm841 = vcmask 150672
        %842 = vst.msk [vmem:[#allocation2] sm:$0xf] %vm841, %v839
        %v843 = vld [vmem:[%s317 + $0x20] sm:$0x1]
        %v844 = vld [vmem:[%s317 + $0xa0] sm:$0x1]
        %v845 = vld [vmem:[%s317 + $0x120] sm:$0x1]
        %v846 = vld [vmem:[%s317 + $0x1a0] sm:$0x1]
        %v851 = vrot.slane %v844, 7
        %v852 = vsel %vm490, %v851, %v843
        %v853 = vrot.slane %v845, 6
        %v854 = vsel %vm493, %v853, %v852
        %v855 = vrot.slane %v846, 5
        %v856 = vsel %vm496, %v855, %v854
        %857 = vrot.lane.b32.xlu0 %v856, 99
        %v858 = vpop.permute.xlu0 %857
        %vm860 = vcmask 158872
        %861 = vst.msk [vmem:[#allocation2] sm:$0xf] %vm860, %v858
        %v862 = vld [vmem:[%s317 + $0x20] sm:$0x1]
        %v863 = vld [vmem:[%s317 + $0xa0] sm:$0x1]
        %v864 = vld [vmem:[%s317 + $0x120] sm:$0x1]
        %v865 = vld [vmem:[%s317 + $0x1a0] sm:$0x1]
        %v870 = vrot.slane %v863, 7
        %v871 = vsel %vm490, %v870, %v862
        %v872 = vrot.slane %v864, 6
        %v873 = vsel %vm493, %v872, %v871
        %v874 = vrot.slane %v865, 5
        %v875 = vsel %vm496, %v874, %v873
        %876 = vrot.lane.b32.xlu0 %v875, 84
        %v877 = vpop.permute.xlu0 %876
        %vm879 = vcmask 167072
        %880 = vst.msk [vmem:[#allocation2] sm:$0xf] %vm879, %v877
        %v881 = vld [vmem:[%s317 + $0x20] sm:$0x1]
        %v882 = vld [vmem:[%s317 + $0xa0] sm:$0x1]
        %v883 = vld [vmem:[%s317 + $0x120] sm:$0x1]
        %v884 = vld [vmem:[%s317 + $0x1a0] sm:$0x1]
        %v889 = vrot.slane %v882, 7
        %v890 = vsel %vm490, %v889, %v881
        %v891 = vrot.slane %v883, 6
        %v892 = vsel %vm493, %v891, %v890
        %v893 = vrot.slane %v884, 5
        %v894 = vsel %vm496, %v893, %v892
        %895 = vrot.lane.b32.xlu0 %v894, 69
        %v896 = vpop.permute.xlu0 %895
        %vm898 = vcmask 175272
        %899 = vst.msk [vmem:[#allocation2] sm:$0xf] %vm898, %v896
        %v900 = vld [vmem:[%s317 + $0x20] sm:$0x1]
        %v901 = vld [vmem:[%s317 + $0xa0] sm:$0x1]
        %v902 = vld [vmem:[%s317 + $0x120] sm:$0x1]
        %v903 = vld [vmem:[%s317 + $0x1a0] sm:$0x1]
        %v908 = vrot.slane %v901, 7
        %v909 = vsel %vm490, %v908, %v900
        %v910 = vrot.slane %v902, 6
        %v911 = vsel %vm493, %v910, %v909
        %v912 = vrot.slane %v903, 5
        %v913 = vsel %vm496, %v912, %v911
        %914 = vrot.lane.b32.xlu0 %v913, 54
        %v915 = vpop.permute.xlu0 %914
        %vm917 = vcmask 183472
        %918 = vst.msk [vmem:[#allocation2] sm:$0xf] %vm917, %v915
        %v919 = vld [vmem:[%s317 + $0x20] sm:$0x1]
        %v920 = vld [vmem:[%s317 + $0xa0] sm:$0x1]
        %v921 = vld [vmem:[%s317 + $0x120] sm:$0x1]
        %v922 = vld [vmem:[%s317 + $0x1a0] sm:$0x1]
        %v927 = vrot.slane %v920, 7
        %v928 = vsel %vm490, %v927, %v919
        %v929 = vrot.slane %v921, 6
        %v930 = vsel %vm493, %v929, %v928
        %v931 = vrot.slane %v922, 5
        %v932 = vsel %vm496, %v931, %v930
        %933 = vrot.lane.b32.xlu0 %v932, 39
        %v934 = vpop.permute.xlu0 %933
        %vm936 = vcmask 191672
        %937 = vst.msk [vmem:[#allocation2] sm:$0xf] %vm936, %v934
        %v938 = vld [vmem:[%s317 + $0x30] sm:$0x1]
        %v939 = vld [vmem:[%s317 + $0xb0] sm:$0x1]
        %v940 = vld [vmem:[%s317 + $0x130] sm:$0x1]
        %v941 = vld [vmem:[%s317 + $0x1b0] sm:$0x1]
        %v946 = vrot.slane %v939, 7
        %v947 = vsel %vm490, %v946, %v938
        %v948 = vrot.slane %v940, 6
        %v949 = vsel %vm493, %v948, %v947
        %v950 = vrot.slane %v941, 5
        %v951 = vsel %vm496, %v950, %v949
        %952 = vrot.lane.b32.xlu0 %v951, 24
        %v953 = vpop.permute.xlu0 %952
        %vm955 = vcmask 199872
        %956 = vst.msk [vmem:[#allocation2] sm:$0xf] %vm955, %v953
        %v957 = vld [vmem:[%s317 + $0x30] sm:$0x1]
        %v958 = vld [vmem:[%s317 + $0xb0] sm:$0x1]
        %v959 = vld [vmem:[%s317 + $0x130] sm:$0x1]
        %v960 = vld [vmem:[%s317 + $0x1b0] sm:$0x1]
        %v965 = vrot.slane %v958, 7
        %v966 = vsel %vm490, %v965, %v957
        %v967 = vrot.slane %v959, 6
        %v968 = vsel %vm493, %v967, %v966
        %v969 = vrot.slane %v960, 5
        %v970 = vsel %vm496, %v969, %v968
        %971 = vrot.lane.b32.xlu0 %v970, 9
        %v972 = vpop.permute.xlu0 %971
        %vm974 = vcmask 208072
        %975 = vst.msk [vmem:[#allocation2] sm:$0xf] %vm974, %v972
        %v976 = vld [vmem:[%s317 + $0x30] sm:$0x1]
        %v977 = vld [vmem:[%s317 + $0xb0] sm:$0x1]
        %v978 = vld [vmem:[%s317 + $0x130] sm:$0x1]
        %v979 = vld [vmem:[%s317 + $0x1b0] sm:$0x1]
        %v984 = vrot.slane %v977, 7
        %v985 = vsel %vm490, %v984, %v976
        %v986 = vrot.slane %v978, 6
        %v987 = vsel %vm493, %v986, %v985
        %v988 = vrot.slane %v979, 5
        %v989 = vsel %vm496, %v988, %v987
        %990 = vrot.lane.b32.xlu0 %v989, 122
        %v991 = vpop.permute.xlu0 %990
        %vm993 = vcmask 216272
        %994 = vst.msk [vmem:[#allocation2] sm:$0xf] %vm993, %v991
        %v995 = vld [vmem:[%s317 + $0x30] sm:$0x1]
        %v996 = vld [vmem:[%s317 + $0xb0] sm:$0x1]
        %v997 = vld [vmem:[%s317 + $0x130] sm:$0x1]
        %v998 = vld [vmem:[%s317 + $0x1b0] sm:$0x1]
        %v1003 = vrot.slane %v996, 7
        %v1004 = vsel %vm490, %v1003, %v995
        %v1005 = vrot.slane %v997, 6
        %v1006 = vsel %vm493, %v1005, %v1004
        %v1007 = vrot.slane %v998, 5
        %v1008 = vsel %vm496, %v1007, %v1006
        %1009 = vrot.lane.b32.xlu0 %v1008, 107
        %v1010 = vpop.permute.xlu0 %1009
        %vm1012 = vcmask 224472
        %1013 = vst.msk [vmem:[#allocation2] sm:$0xf] %vm1012, %v1010
        %v1014 = vld [vmem:[%s317 + $0x30] sm:$0x1]
        %v1015 = vld [vmem:[%s317 + $0xb0] sm:$0x1]
        %v1016 = vld [vmem:[%s317 + $0x130] sm:$0x1]
        %v1017 = vld [vmem:[%s317 + $0x1b0] sm:$0x1]
        %v1022 = vrot.slane %v1015, 7
        %v1023 = vsel %vm490, %v1022, %v1014
        %v1024 = vrot.slane %v1016, 6
        %v1025 = vsel %vm493, %v1024, %v1023
        %v1026 = vrot.slane %v1017, 5
        %v1027 = vsel %vm496, %v1026, %v1025
        %1028 = vrot.lane.b32.xlu0 %v1027, 92
        %v1029 = vpop.permute.xlu0 %1028
        %vm1031 = vcmask 232672
        %1032 = vst.msk [vmem:[#allocation2] sm:$0xf] %vm1031, %v1029
        %v1033 = vld [vmem:[%s317 + $0x30] sm:$0x1]
        %v1034 = vld [vmem:[%s317 + $0xb0] sm:$0x1]
        %v1035 = vld [vmem:[%s317 + $0x130] sm:$0x1]
        %v1036 = vld [vmem:[%s317 + $0x1b0] sm:$0x1]
        %v1041 = vrot.slane %v1034, 7
        %v1042 = vsel %vm490, %v1041, %v1033
        %v1043 = vrot.slane %v1035, 6
        %v1044 = vsel %vm493, %v1043, %v1042
        %v1045 = vrot.slane %v1036, 5
        %v1046 = vsel %vm496, %v1045, %v1044
        %1047 = vrot.lane.b32.xlu0 %v1046, 77
        %v1048 = vpop.permute.xlu0 %1047
        %vm1050 = vcmask 240872
        %1051 = vst.msk [vmem:[#allocation2] sm:$0xf] %vm1050, %v1048
        %v1052 = vld [vmem:[%s317 + $0x30] sm:$0x1]
        %v1053 = vld [vmem:[%s317 + $0xb0] sm:$0x1]
        %v1054 = vld [vmem:[%s317 + $0x130] sm:$0x1]
        %v1055 = vld [vmem:[%s317 + $0x1b0] sm:$0x1]
        %v1060 = vrot.slane %v1053, 7
        %v1061 = vsel %vm490, %v1060, %v1052
        %v1062 = vrot.slane %v1054, 6
        %v1063 = vsel %vm493, %v1062, %v1061
        %v1064 = vrot.slane %v1055, 5
        %v1065 = vsel %vm496, %v1064, %v1063
        %1066 = vrot.lane.b32.xlu0 %v1065, 62
        %v1067 = vpop.permute.xlu0 %1066
        %vm1069 = vcmask 249072
        %1070 = vst.msk [vmem:[#allocation2] sm:$0xf] %vm1069, %v1067
        %v1071 = vld [vmem:[%s317 + $0x30] sm:$0x1]
        %v1072 = vld [vmem:[%s317 + $0xb0] sm:$0x1]
        %v1073 = vld [vmem:[%s317 + $0x130] sm:$0x1]
        %v1074 = vld [vmem:[%s317 + $0x1b0] sm:$0x1]
        %v1079 = vrot.slane %v1072, 7
        %v1080 = vsel %vm490, %v1079, %v1071
        %v1081 = vrot.slane %v1073, 6
        %v1082 = vsel %vm493, %v1081, %v1080
        %v1083 = vrot.slane %v1074, 5
        %v1084 = vsel %vm496, %v1083, %v1082
        %1085 = vrot.lane.b32.xlu0 %v1084, 47
        %v1086 = vpop.permute.xlu0 %1085
        %vm1088 = vcmask 257272
        %1089 = vst.msk [vmem:[#allocation2] sm:$0xf] %vm1088, %v1086
        %v1090 = vld [vmem:[%s317 + $0x40] sm:$0x1]
        %v1091 = vld [vmem:[%s317 + $0xc0] sm:$0x1]
        %v1092 = vld [vmem:[%s317 + $0x140] sm:$0x1]
        %v1093 = vld [vmem:[%s317 + $0x1c0] sm:$0x1]
        %v1098 = vrot.slane %v1091, 7
        %v1099 = vsel %vm490, %v1098, %v1090
        %v1100 = vrot.slane %v1092, 6
        %v1101 = vsel %vm493, %v1100, %v1099
        %v1102 = vrot.slane %v1093, 5
        %v1103 = vsel %vm496, %v1102, %v1101
        %1104 = vrot.lane.b32.xlu0 %v1103, 32
        %v1105 = vpop.permute.xlu0 %1104
        %vm1107 = vcmask 265472
        %1108 = vst.msk [vmem:[#allocation2] sm:$0xf] %vm1107, %v1105
        %v1109 = vld [vmem:[%s317 + $0x40] sm:$0x1]
        %v1110 = vld [vmem:[%s317 + $0xc0] sm:$0x1]
        %v1111 = vld [vmem:[%s317 + $0x140] sm:$0x1]
        %v1112 = vld [vmem:[%s317 + $0x1c0] sm:$0x1]
        %v1117 = vrot.slane %v1110, 7
        %v1118 = vsel %vm490, %v1117, %v1109
        %v1119 = vrot.slane %v1111, 6
        %v1120 = vsel %vm493, %v1119, %v1118
        %v1121 = vrot.slane %v1112, 5
        %v1122 = vsel %vm496, %v1121, %v1120
        %1123 = vrot.lane.b32.xlu0 %v1122, 17
        %v1124 = vpop.permute.xlu0 %1123
        %vm1126 = vcmask 273672
        %1127 = vst.msk [vmem:[#allocation2] sm:$0xf] %vm1126, %v1124
        %v1128 = vld [vmem:[%s317 + $0x40] sm:$0x1]
        %v1129 = vld [vmem:[%s317 + $0xc0] sm:$0x1]
        %v1130 = vld [vmem:[%s317 + $0x140] sm:$0x1]
        %v1131 = vld [vmem:[%s317 + $0x1c0] sm:$0x1]
        %v1136 = vrot.slane %v1129, 7
        %v1137 = vsel %vm490, %v1136, %v1128
        %v1138 = vrot.slane %v1130, 6
        %v1139 = vsel %vm493, %v1138, %v1137
        %v1140 = vrot.slane %v1131, 5
        %v1141 = vsel %vm496, %v1140, %v1139
        %1142 = vrot.lane.b32.xlu0 %v1141, 2
        %v1143 = vpop.permute.xlu0 %1142
        %vm1145 = vcmask 281872
        %1146 = vst.msk [vmem:[#allocation2] sm:$0xf] %vm1145, %v1143
        %v1147 = vld [vmem:[%s317 + $0x40] sm:$0x1]
        %v1148 = vld [vmem:[%s317 + $0xc0] sm:$0x1]
        %v1149 = vld [vmem:[%s317 + $0x140] sm:$0x1]
        %v1150 = vld [vmem:[%s317 + $0x1c0] sm:$0x1]
        %v1155 = vrot.slane %v1148, 7
        %v1156 = vsel %vm490, %v1155, %v1147
        %v1157 = vrot.slane %v1149, 6
        %v1158 = vsel %vm493, %v1157, %v1156
        %v1159 = vrot.slane %v1150, 5
        %v1160 = vsel %vm496, %v1159, %v1158
        %1161 = vrot.lane.b32.xlu0 %v1160, 115
        %v1162 = vpop.permute.xlu0 %1161
        %vm1164 = vcmask 290072
        %1165 = vst.msk [vmem:[#allocation2] sm:$0xf] %vm1164, %v1162
        %v1166 = vld [vmem:[%s317 + $0x40] sm:$0x1]
        %v1167 = vld [vmem:[%s317 + $0xc0] sm:$0x1]
        %v1168 = vld [vmem:[%s317 + $0x140] sm:$0x1]
        %v1169 = vld [vmem:[%s317 + $0x1c0] sm:$0x1]
        %v1174 = vrot.slane %v1167, 7
        %v1175 = vsel %vm490, %v1174, %v1166
        %v1176 = vrot.slane %v1168, 6
        %v1177 = vsel %vm493, %v1176, %v1175
        %v1178 = vrot.slane %v1169, 5
        %v1179 = vsel %vm496, %v1178, %v1177
        %1180 = vrot.lane.b32.xlu0 %v1179, 100
        %v1181 = vpop.permute.xlu0 %1180
        %vm1183 = vcmask 298272
        %1184 = vst.msk [vmem:[#allocation2] sm:$0xf] %vm1183, %v1181
        %v1185 = vld [vmem:[%s317 + $0x40] sm:$0x1]
        %v1186 = vld [vmem:[%s317 + $0xc0] sm:$0x1]
        %v1187 = vld [vmem:[%s317 + $0x140] sm:$0x1]
        %v1188 = vld [vmem:[%s317 + $0x1c0] sm:$0x1]
        %v1193 = vrot.slane %v1186, 7
        %v1194 = vsel %vm490, %v1193, %v1185
        %v1195 = vrot.slane %v1187, 6
        %v1196 = vsel %vm493, %v1195, %v1194
        %v1197 = vrot.slane %v1188, 5
        %v1198 = vsel %vm496, %v1197, %v1196
        %1199 = vrot.lane.b32.xlu0 %v1198, 85
        %v1200 = vpop.permute.xlu0 %1199
        %vm1202 = vcmask 306472
        %1203 = vst.msk [vmem:[#allocation2] sm:$0xf] %vm1202, %v1200
        %v1204 = vld [vmem:[%s317 + $0x40] sm:$0x1]
        %v1205 = vld [vmem:[%s317 + $0xc0] sm:$0x1]
        %v1206 = vld [vmem:[%s317 + $0x140] sm:$0x1]
        %v1207 = vld [vmem:[%s317 + $0x1c0] sm:$0x1]
        %v1212 = vrot.slane %v1205, 7
        %v1213 = vsel %vm490, %v1212, %v1204
        %v1214 = vrot.slane %v1206, 6
        %v1215 = vsel %vm493, %v1214, %v1213
        %v1216 = vrot.slane %v1207, 5
        %v1217 = vsel %vm496, %v1216, %v1215
        %1218 = vrot.lane.b32.xlu0 %v1217, 70
        %v1219 = vpop.permute.xlu0 %1218
        %vm1221 = vcmask 314672
        %1222 = vst.msk [vmem:[#allocation2] sm:$0xf] %vm1221, %v1219
        %v1223 = vld [vmem:[%s317 + $0x40] sm:$0x1]
        %v1224 = vld [vmem:[%s317 + $0xc0] sm:$0x1]
        %v1225 = vld [vmem:[%s317 + $0x140] sm:$0x1]
        %v1226 = vld [vmem:[%s317 + $0x1c0] sm:$0x1]
        %v1231 = vrot.slane %v1224, 7
        %v1232 = vsel %vm490, %v1231, %v1223
        %v1233 = vrot.slane %v1225, 6
        %v1234 = vsel %vm493, %v1233, %v1232
        %v1235 = vrot.slane %v1226, 5
        %v1236 = vsel %vm496, %v1235, %v1234
        %1237 = vrot.lane.b32.xlu0 %v1236, 55
        %v1238 = vpop.permute.xlu0 %1237
        %vm1240 = vcmask 322872
        %1241 = vst.msk [vmem:[#allocation2] sm:$0xf] %vm1240, %v1238
        %v1242 = vld [vmem:[%s317 + $0x50] sm:$0x1]
        %v1243 = vld [vmem:[%s317 + $0xd0] sm:$0x1]
        %v1244 = vld [vmem:[%s317 + $0x150] sm:$0x1]
        %v1245 = vld [vmem:[%s317 + $0x1d0] sm:$0x1]
        %v1250 = vrot.slane %v1243, 7
        %v1251 = vsel %vm490, %v1250, %v1242
        %v1252 = vrot.slane %v1244, 6
        %v1253 = vsel %vm493, %v1252, %v1251
        %v1254 = vrot.slane %v1245, 5
        %v1255 = vsel %vm496, %v1254, %v1253
        %1256 = vrot.lane.b32.xlu0 %v1255, 40
        %v1257 = vpop.permute.xlu0 %1256
        %vm1259 = vcmask 331072
        %1260 = vst.msk [vmem:[#allocation2] sm:$0xf] %vm1259, %v1257
        %v1261 = vld [vmem:[%s317 + $0x50] sm:$0x1]
        %v1262 = vld [vmem:[%s317 + $0xd0] sm:$0x1]
        %v1263 = vld [vmem:[%s317 + $0x150] sm:$0x1]
        %v1264 = vld [vmem:[%s317 + $0x1d0] sm:$0x1]
        %v1269 = vrot.slane %v1262, 7
        %v1270 = vsel %vm490, %v1269, %v1261
        %v1271 = vrot.slane %v1263, 6
        %v1272 = vsel %vm493, %v1271, %v1270
        %v1273 = vrot.slane %v1264, 5
        %v1274 = vsel %vm496, %v1273, %v1272
        %1275 = vrot.lane.b32.xlu0 %v1274, 25
        %v1276 = vpop.permute.xlu0 %1275
        %vm1278 = vcmask 339272
        %1279 = vst.msk [vmem:[#allocation2] sm:$0xf] %vm1278, %v1276
        %v1280 = vld [vmem:[%s317 + $0x50] sm:$0x1]
        %v1281 = vld [vmem:[%s317 + $0xd0] sm:$0x1]
        %v1282 = vld [vmem:[%s317 + $0x150] sm:$0x1]
        %v1283 = vld [vmem:[%s317 + $0x1d0] sm:$0x1]
        %v1288 = vrot.slane %v1281, 7
        %v1289 = vsel %vm490, %v1288, %v1280
        %v1290 = vrot.slane %v1282, 6
        %v1291 = vsel %vm493, %v1290, %v1289
        %v1292 = vrot.slane %v1283, 5
        %v1293 = vsel %vm496, %v1292, %v1291
        %1294 = vrot.lane.b32.xlu0 %v1293, 10
        %v1295 = vpop.permute.xlu0 %1294
        %vm1297 = vcmask 347472
        %1298 = vst.msk [vmem:[#allocation2] sm:$0xf] %vm1297, %v1295
        %v1299 = vld [vmem:[%s317 + $0x50] sm:$0x1]
        %v1300 = vld [vmem:[%s317 + $0xd0] sm:$0x1]
        %v1301 = vld [vmem:[%s317 + $0x150] sm:$0x1]
        %v1302 = vld [vmem:[%s317 + $0x1d0] sm:$0x1]
        %v1307 = vrot.slane %v1300, 7
        %v1308 = vsel %vm490, %v1307, %v1299
        %v1309 = vrot.slane %v1301, 6
        %v1310 = vsel %vm493, %v1309, %v1308
        %v1311 = vrot.slane %v1302, 5
        %v1312 = vsel %vm496, %v1311, %v1310
        %1313 = vrot.lane.b32.xlu0 %v1312, 123
        %v1314 = vpop.permute.xlu0 %1313
        %vm1316 = vcmask 355672
        %1317 = vst.msk [vmem:[#allocation2] sm:$0xf] %vm1316, %v1314
        %v1318 = vld [vmem:[%s317 + $0x50] sm:$0x1]
        %v1319 = vld [vmem:[%s317 + $0xd0] sm:$0x1]
        %v1320 = vld [vmem:[%s317 + $0x150] sm:$0x1]
        %v1321 = vld [vmem:[%s317 + $0x1d0] sm:$0x1]
        %v1326 = vrot.slane %v1319, 7
        %v1327 = vsel %vm490, %v1326, %v1318
        %v1328 = vrot.slane %v1320, 6
        %v1329 = vsel %vm493, %v1328, %v1327
        %v1330 = vrot.slane %v1321, 5
        %v1331 = vsel %vm496, %v1330, %v1329
        %1332 = vrot.lane.b32.xlu0 %v1331, 108
        %v1333 = vpop.permute.xlu0 %1332
        %vm1335 = vcmask 363872
        %1336 = vst.msk [vmem:[#allocation2] sm:$0xf] %vm1335, %v1333
        %v1337 = vld [vmem:[%s317 + $0x50] sm:$0x1]
        %v1338 = vld [vmem:[%s317 + $0xd0] sm:$0x1]
        %v1339 = vld [vmem:[%s317 + $0x150] sm:$0x1]
        %v1340 = vld [vmem:[%s317 + $0x1d0] sm:$0x1]
        %v1345 = vrot.slane %v1338, 7
        %v1346 = vsel %vm490, %v1345, %v1337
        %v1347 = vrot.slane %v1339, 6
        %v1348 = vsel %vm493, %v1347, %v1346
        %v1349 = vrot.slane %v1340, 5
        %v1350 = vsel %vm496, %v1349, %v1348
        %1351 = vrot.lane.b32.xlu0 %v1350, 93
        %v1352 = vpop.permute.xlu0 %1351
        %vm1354 = vcmask 372072
        %1355 = vst.msk [vmem:[#allocation2] sm:$0xf] %vm1354, %v1352
        %v1356 = vld [vmem:[%s317 + $0x50] sm:$0x1]
        %v1357 = vld [vmem:[%s317 + $0xd0] sm:$0x1]
        %v1358 = vld [vmem:[%s317 + $0x150] sm:$0x1]
        %v1359 = vld [vmem:[%s317 + $0x1d0] sm:$0x1]
        %v1364 = vrot.slane %v1357, 7
        %v1365 = vsel %vm490, %v1364, %v1356
        %v1366 = vrot.slane %v1358, 6
        %v1367 = vsel %vm493, %v1366, %v1365
        %v1368 = vrot.slane %v1359, 5
        %v1369 = vsel %vm496, %v1368, %v1367
        %1370 = vrot.lane.b32.xlu0 %v1369, 78
        %v1371 = vpop.permute.xlu0 %1370
        %vm1373 = vcmask 380272
        %1374 = vst.msk [vmem:[#allocation2] sm:$0xf] %vm1373, %v1371
        %v1375 = vld [vmem:[%s317 + $0x50] sm:$0x1]
        %v1376 = vld [vmem:[%s317 + $0xd0] sm:$0x1]
        %v1377 = vld [vmem:[%s317 + $0x150] sm:$0x1]
        %v1378 = vld [vmem:[%s317 + $0x1d0] sm:$0x1]
        %v1383 = vrot.slane %v1376, 7
        %v1384 = vsel %vm490, %v1383, %v1375
        %v1385 = vrot.slane %v1377, 6
        %v1386 = vsel %vm493, %v1385, %v1384
        %v1387 = vrot.slane %v1378, 5
        %v1388 = vsel %vm496, %v1387, %v1386
        %1389 = vrot.lane.b32.xlu0 %v1388, 63
        %v1390 = vpop.permute.xlu0 %1389
        %vm1392 = vcmask 388472
        %1393 = vst.msk [vmem:[#allocation2] sm:$0xf] %vm1392, %v1390
        %v1394 = vld [vmem:[%s317 + $0x60] sm:$0x1]
        %v1395 = vld [vmem:[%s317 + $0xe0] sm:$0x1]
        %v1396 = vld [vmem:[%s317 + $0x160] sm:$0x1]
        %v1397 = vld [vmem:[%s317 + $0x1e0] sm:$0x1]
        %v1402 = vrot.slane %v1395, 7
        %v1403 = vsel %vm490, %v1402, %v1394
        %v1404 = vrot.slane %v1396, 6
        %v1405 = vsel %vm493, %v1404, %v1403
        %v1406 = vrot.slane %v1397, 5
        %v1407 = vsel %vm496, %v1406, %v1405
        %1408 = vrot.lane.b32.xlu0 %v1407, 48
        %v1409 = vpop.permute.xlu0 %1408
        %vm1411 = vcmask 396672
        %1412 = vst.msk [vmem:[#allocation2] sm:$0xf] %vm1411, %v1409
        %v1413 = vld [vmem:[%s317 + $0x60] sm:$0x1]
        %v1414 = vld [vmem:[%s317 + $0xe0] sm:$0x1]
        %v1415 = vld [vmem:[%s317 + $0x160] sm:$0x1]
        %v1416 = vld [vmem:[%s317 + $0x1e0] sm:$0x1]
        %v1421 = vrot.slane %v1414, 7
        %v1422 = vsel %vm490, %v1421, %v1413
        %v1423 = vrot.slane %v1415, 6
        %v1424 = vsel %vm493, %v1423, %v1422
        %v1425 = vrot.slane %v1416, 5
        %v1426 = vsel %vm496, %v1425, %v1424
        %1427 = vrot.lane.b32.xlu0 %v1426, 33
        %v1428 = vpop.permute.xlu0 %1427
        %vm1430 = vcmask 404872
        %1431 = vst.msk [vmem:[#allocation2] sm:$0xf] %vm1430, %v1428
        %v1432 = vld [vmem:[%s317 + $0x60] sm:$0x1]
        %v1433 = vld [vmem:[%s317 + $0xe0] sm:$0x1]
        %v1434 = vld [vmem:[%s317 + $0x160] sm:$0x1]
        %v1435 = vld [vmem:[%s317 + $0x1e0] sm:$0x1]
        %v1440 = vrot.slane %v1433, 7
        %v1441 = vsel %vm490, %v1440, %v1432
        %v1442 = vrot.slane %v1434, 6
        %v1443 = vsel %vm493, %v1442, %v1441
        %v1444 = vrot.slane %v1435, 5
        %v1445 = vsel %vm496, %v1444, %v1443
        %1446 = vrot.lane.b32.xlu0 %v1445, 18
        %v1447 = vpop.permute.xlu0 %1446
        %vm1449 = vcmask 413072
        %1450 = vst.msk [vmem:[#allocation2] sm:$0xf] %vm1449, %v1447
        %v1451 = vld [vmem:[%s317 + $0x60] sm:$0x1]
        %v1452 = vld [vmem:[%s317 + $0xe0] sm:$0x1]
        %v1453 = vld [vmem:[%s317 + $0x160] sm:$0x1]
        %v1454 = vld [vmem:[%s317 + $0x1e0] sm:$0x1]
        %v1459 = vrot.slane %v1452, 7
        %v1460 = vsel %vm490, %v1459, %v1451
        %v1461 = vrot.slane %v1453, 6
        %v1462 = vsel %vm493, %v1461, %v1460
        %v1463 = vrot.slane %v1454, 5
        %v1464 = vsel %vm496, %v1463, %v1462
        %1465 = vrot.lane.b32.xlu0 %v1464, 3
        %v1466 = vpop.permute.xlu0 %1465
        %vm1468 = vcmask 421272
        %1469 = vst.msk [vmem:[#allocation2] sm:$0xf] %vm1468, %v1466
        %v1470 = vld [vmem:[%s317 + $0x60] sm:$0x1]
        %v1471 = vld [vmem:[%s317 + $0xe0] sm:$0x1]
        %v1472 = vld [vmem:[%s317 + $0x160] sm:$0x1]
        %v1473 = vld [vmem:[%s317 + $0x1e0] sm:$0x1]
        %v1478 = vrot.slane %v1471, 7
        %v1479 = vsel %vm490, %v1478, %v1470
        %v1480 = vrot.slane %v1472, 6
        %v1481 = vsel %vm493, %v1480, %v1479
        %v1482 = vrot.slane %v1473, 5
        %v1483 = vsel %vm496, %v1482, %v1481
        %1484 = vrot.lane.b32.xlu0 %v1483, 116
        %v1485 = vpop.permute.xlu0 %1484
        %vm1487 = vcmask 429472
        %1488 = vst.msk [vmem:[#allocation2] sm:$0xf] %vm1487, %v1485
        %v1489 = vld [vmem:[%s317 + $0x60] sm:$0x1]
        %v1490 = vld [vmem:[%s317 + $0xe0] sm:$0x1]
        %v1491 = vld [vmem:[%s317 + $0x160] sm:$0x1]
        %v1492 = vld [vmem:[%s317 + $0x1e0] sm:$0x1]
        %v1497 = vrot.slane %v1490, 7
        %v1498 = vsel %vm490, %v1497, %v1489
        %v1499 = vrot.slane %v1491, 6
        %v1500 = vsel %vm493, %v1499, %v1498
        %v1501 = vrot.slane %v1492, 5
        %v1502 = vsel %vm496, %v1501, %v1500
        %1503 = vrot.lane.b32.xlu0 %v1502, 101
        %v1504 = vpop.permute.xlu0 %1503
        %vm1506 = vcmask 437672
        %1507 = vst.msk [vmem:[#allocation2] sm:$0xf] %vm1506, %v1504
        %v1508 = vld [vmem:[%s317 + $0x60] sm:$0x1]
        %v1509 = vld [vmem:[%s317 + $0xe0] sm:$0x1]
        %v1510 = vld [vmem:[%s317 + $0x160] sm:$0x1]
        %v1511 = vld [vmem:[%s317 + $0x1e0] sm:$0x1]
        %v1516 = vrot.slane %v1509, 7
        %v1517 = vsel %vm490, %v1516, %v1508
        %v1518 = vrot.slane %v1510, 6
        %v1519 = vsel %vm493, %v1518, %v1517
        %v1520 = vrot.slane %v1511, 5
        %v1521 = vsel %vm496, %v1520, %v1519
        %1522 = vrot.lane.b32.xlu0 %v1521, 86
        %v1523 = vpop.permute.xlu0 %1522
        %vm1525 = vcmask 445872
        %1526 = vst.msk [vmem:[#allocation2] sm:$0xf] %vm1525, %v1523
        %v1527 = vld [vmem:[%s317 + $0x60] sm:$0x1]
        %v1528 = vld [vmem:[%s317 + $0xe0] sm:$0x1]
        %v1529 = vld [vmem:[%s317 + $0x160] sm:$0x1]
        %v1530 = vld [vmem:[%s317 + $0x1e0] sm:$0x1]
        %v1535 = vrot.slane %v1528, 7
        %v1536 = vsel %vm490, %v1535, %v1527
        %v1537 = vrot.slane %v1529, 6
        %v1538 = vsel %vm493, %v1537, %v1536
        %v1539 = vrot.slane %v1530, 5
        %v1540 = vsel %vm496, %v1539, %v1538
        %1541 = vrot.lane.b32.xlu0 %v1540, 71
        %v1542 = vpop.permute.xlu0 %1541
        %vm1544 = vcmask 454072
        %1545 = vst.msk [vmem:[#allocation2] sm:$0xf] %vm1544, %v1542
        %v1546 = vld [vmem:[%s317 + $0x70] sm:$0x1]
        %v1547 = vld [vmem:[%s317 + $0xf0] sm:$0x1]
        %v1548 = vld [vmem:[%s317 + $0x170] sm:$0x1]
        %v1549 = vld [vmem:[%s317 + $0x1f0] sm:$0x1]
        %v1554 = vrot.slane %v1547, 7
        %v1555 = vsel %vm490, %v1554, %v1546
        %v1556 = vrot.slane %v1548, 6
        %v1557 = vsel %vm493, %v1556, %v1555
        %v1558 = vrot.slane %v1549, 5
        %v1559 = vsel %vm496, %v1558, %v1557
        %1560 = vrot.lane.b32.xlu0 %v1559, 56
        %v1561 = vpop.permute.xlu0 %1560
        %vm1563 = vcmask 462272
        %1564 = vst.msk [vmem:[#allocation2] sm:$0xf] %vm1563, %v1561
        %v1565 = vld [vmem:[%s317 + $0x70] sm:$0x1]
        %v1566 = vld [vmem:[%s317 + $0xf0] sm:$0x1]
        %v1567 = vld [vmem:[%s317 + $0x170] sm:$0x1]
        %v1568 = vld [vmem:[%s317 + $0x1f0] sm:$0x1]
        %v1573 = vrot.slane %v1566, 7
        %v1574 = vsel %vm490, %v1573, %v1565
        %v1575 = vrot.slane %v1567, 6
        %v1576 = vsel %vm493, %v1575, %v1574
        %v1577 = vrot.slane %v1568, 5
        %v1578 = vsel %vm496, %v1577, %v1576
        %1579 = vrot.lane.b32.xlu0 %v1578, 41
        %v1580 = vpop.permute.xlu0 %1579
        %vm1582 = vcmask 470472
        %1583 = vst.msk [vmem:[#allocation2] sm:$0xf] %vm1582, %v1580
        %v1584 = vld [vmem:[%s317 + $0x70] sm:$0x1]
        %v1585 = vld [vmem:[%s317 + $0xf0] sm:$0x1]
        %v1586 = vld [vmem:[%s317 + $0x170] sm:$0x1]
        %v1587 = vld [vmem:[%s317 + $0x1f0] sm:$0x1]
        %v1592 = vrot.slane %v1585, 7
        %v1593 = vsel %vm490, %v1592, %v1584
        %v1594 = vrot.slane %v1586, 6
        %v1595 = vsel %vm493, %v1594, %v1593
        %v1596 = vrot.slane %v1587, 5
        %v1597 = vsel %vm496, %v1596, %v1595
        %1598 = vrot.lane.b32.xlu0 %v1597, 26
        %v1599 = vpop.permute.xlu0 %1598
        %vm1601 = vcmask 478672
        %1602 = vst.msk [vmem:[#allocation2] sm:$0xf] %vm1601, %v1599
        %v1603 = vld [vmem:[%s317 + $0x70] sm:$0x1]
        %v1604 = vld [vmem:[%s317 + $0xf0] sm:$0x1]
        %v1605 = vld [vmem:[%s317 + $0x170] sm:$0x1]
        %v1606 = vld [vmem:[%s317 + $0x1f0] sm:$0x1]
        %v1611 = vrot.slane %v1604, 7
        %v1612 = vsel %vm490, %v1611, %v1603
        %v1613 = vrot.slane %v1605, 6
        %v1614 = vsel %vm493, %v1613, %v1612
        %v1615 = vrot.slane %v1606, 5
        %v1616 = vsel %vm496, %v1615, %v1614
        %1617 = vrot.lane.b32.xlu0 %v1616, 11
        %v1618 = vpop.permute.xlu0 %1617
        %vm1620 = vcmask 486872
        %1621 = vst.msk [vmem:[#allocation2] sm:$0xf] %vm1620, %v1618
        %v1622 = vld [vmem:[%s317 + $0x70] sm:$0x1]
        %v1623 = vld [vmem:[%s317 + $0xf0] sm:$0x1]
        %v1624 = vld [vmem:[%s317 + $0x170] sm:$0x1]
        %v1625 = vld [vmem:[%s317 + $0x1f0] sm:$0x1]
        %v1630 = vrot.slane %v1623, 7
        %v1631 = vsel %vm490, %v1630, %v1622
        %v1632 = vrot.slane %v1624, 6
        %v1633 = vsel %vm493, %v1632, %v1631
        %v1634 = vrot.slane %v1625, 5
        %v1635 = vsel %vm496, %v1634, %v1633
        %1636 = vrot.lane.b32.xlu0 %v1635, 124
        %v1637 = vpop.permute.xlu0 %1636
        %vm1639 = vcmask 495072
        %1640 = vst.msk [vmem:[#allocation2] sm:$0xf] %vm1639, %v1637
        %v1641 = vld [vmem:[%s317 + $0x70] sm:$0x1]
        %v1642 = vld [vmem:[%s317 + $0xf0] sm:$0x1]
        %v1643 = vld [vmem:[%s317 + $0x170] sm:$0x1]
        %v1644 = vld [vmem:[%s317 + $0x1f0] sm:$0x1]
        %v1649 = vrot.slane %v1642, 7
        %v1650 = vsel %vm490, %v1649, %v1641
        %v1651 = vrot.slane %v1643, 6
        %v1652 = vsel %vm493, %v1651, %v1650
        %v1653 = vrot.slane %v1644, 5
        %v1654 = vsel %vm496, %v1653, %v1652
        %1655 = vrot.lane.b32.xlu0 %v1654, 109
        %v1656 = vpop.permute.xlu0 %1655
        %vm1658 = vcmask 503272
        %1659 = vst.msk [vmem:[#allocation2] sm:$0xf] %vm1658, %v1656
        %v1660 = vld [vmem:[%s317 + $0x70] sm:$0x1]
        %v1661 = vld [vmem:[%s317 + $0xf0] sm:$0x1]
        %v1662 = vld [vmem:[%s317 + $0x170] sm:$0x1]
        %v1663 = vld [vmem:[%s317 + $0x1f0] sm:$0x1]
        %v1668 = vrot.slane %v1661, 7
        %v1669 = vsel %vm490, %v1668, %v1660
        %v1670 = vrot.slane %v1662, 6
        %v1671 = vsel %vm493, %v1670, %v1669
        %v1672 = vrot.slane %v1663, 5
        %v1673 = vsel %vm496, %v1672, %v1671
        %1674 = vrot.lane.b32.xlu0 %v1673, 94
        %v1675 = vpop.permute.xlu0 %1674
        %vm1677 = vcmask 511472
        %1678 = vst.msk [vmem:[#allocation2] sm:$0xf] %vm1677, %v1675
        %v1679 = vld [vmem:[%s317 + $0x70] sm:$0x1]
        %v1680 = vld [vmem:[%s317 + $0xf0] sm:$0x1]
        %v1681 = vld [vmem:[%s317 + $0x170] sm:$0x1]
        %v1682 = vld [vmem:[%s317 + $0x1f0] sm:$0x1]
        %v1687 = vrot.slane %v1680, 7
        %v1688 = vsel %vm490, %v1687, %v1679
        %v1689 = vrot.slane %v1681, 6
        %v1690 = vsel %vm493, %v1689, %v1688
        %v1691 = vrot.slane %v1682, 5
        %v1692 = vsel %vm496, %v1691, %v1690
        %1693 = vrot.lane.b32.xlu0 %v1692, 79
        %v1694 = vpop.permute.xlu0 %1693
        %vm1696 = vcmask 519672
        %1697 = vst.msk [vmem:[#allocation2] sm:$0xf] %vm1696, %v1694
        %v1698 = vld [vmem:[#allocation2] sm:$0xf]
        %v1699 = vld [vmem:[%s1] sm:$0xff]
        %v1700 = vld [vmem:[%s2] sm:$0xff]
        %1702 = vset.pattern.permute.xlu0 0
        %1703 = vperm.xlu0 %1702, %v1700
        %v1704 = vpop.permute.xlu0 %1703
        %vm1706 = vcmask 31744
        %v1708 = vsel %vm1706, %v1699, 0
        %vm1710 = vcmask 1043456
        %v1712 = vsel %vm1710, %v1698, 0
        %1714 = vmatpush.msra.mxu0 0.0
        %1715 = vmatpush.msra.mxu0 0.0
        %1716 = vmatpush.msra.mxu0 0.0
        %1717 = vmatpush.msra.mxu0 0.0
        %1718 = vmatpush.msra.mxu0 0.0
        %1719 = vmatpush.msra.mxu0 0.0
        %1720 = vmatpush.msra.mxu0 0.0
        %1721 = vmatpush.msra.mxu0 0.0
        %1722 = vmatpush.msra.mxu0 0.0
        %1723 = vmatpush.msra.mxu0 0.0
        %1724 = vmatpush.msra.mxu0 0.0
        %1725 = vmatpush.msra.mxu0 0.0
        %1726 = vmatpush.msra.mxu0 0.0
        %1727 = vmatpush.msra.mxu0 0.0
        %1728 = vmatpush.msra.mxu0 0.0
        %1729 = vmatpush.msra.mxu0 %v1712
        %1730 = vmatmul.f32.gmra.mxu0 %v1708
        %v1731 = vpop.f32.mrf.mxu0
        %v1732 = vadd.f32 %v1704, %v1731
        %1733 = vdwg.mxu0
        %v1734 = vld [vmem:[%s3] sm:$0xff]
        %v1735 = vld [vmem:[%s3 + $0x8] sm:$0xff]
        %v1736 = vld [vmem:[%s3 + $0x10] sm:$0xff]
        %v1737 = vld [vmem:[%s3 + $0x18] sm:$0xff]
        %v1738 = vld [vmem:[%s3 + $0x20] sm:$0xff]
        %v1739 = vld [vmem:[%s3 + $0x28] sm:$0xff]
        %v1740 = vld [vmem:[%s3 + $0x30] sm:$0xff]
        %v1741 = vld [vmem:[%s3 + $0x38] sm:$0xff]
        %v1742 = vld [vmem:[%s4] sm:$0x1]
        %v1744 = vperm.slane %v1742, 0
        %v1747 = vrot.slane %v1732, 4
        %vm1748 = vcmask 523264
        %v1749 = vsel %vm1748, %v1747, 0
        %1751 = vmatpush.msra.mxu0 0.0
        %1752 = vmatpush.msra.mxu0 0.0
        %1753 = vmatpush.msra.mxu0 0.0
        %1754 = vmatpush.msra.mxu0 0.0
        %1755 = vmatpush.msra.mxu0 0.0
        %1756 = vmatpush.msra.mxu0 0.0
        %1757 = vmatpush.msra.mxu0 0.0
        %1758 = vmatpush.msra.mxu0 0.0
        %1759 = vmatpush.msra.mxu0 %v1741
        %1760 = vmatpush.msra.mxu0 %v1740
        %1761 = vmatpush.msra.mxu0 %v1739
        %1762 = vmatpush.msra.mxu0 %v1738
        %1763 = vmatpush.msra.mxu0 %v1737
        %1764 = vmatpush.msra.mxu0 %v1736
        %1765 = vmatpush.msra.mxu0 %v1735
        %1766 = vmatpush.msra.mxu0 %v1734
        %1767 = vmatmul.f32.gmra.mxu0 %v1749
        %v1768 = vpop.f32.mrf.mxu0
        %v1769 = vadd.f32 %v1744, %v1768
        %1770 = vdwg.mxu0
        %v1771 = vmax.f32 %v1769, 0.0
        %v1772 = vld [vmem:[%s5] sm:$0xf]
        %v1774 = vsel %vm1706, %v1772, 0
        %v1777 = vsel %vm1710, %v1771, 0
        %1779 = vmatpush.msra.mxu0 0.0
        %1780 = vmatpush.msra.mxu0 0.0
        %1781 = vmatpush.msra.mxu0 0.0
        %1782 = vmatpush.msra.mxu0 0.0
        %1783 = vmatpush.msra.mxu0 0.0
        %1784 = vmatpush.msra.mxu0 0.0
        %1785 = vmatpush.msra.mxu0 0.0
        %1786 = vmatpush.msra.mxu0 0.0
        %1787 = vmatpush.msra.mxu0 0.0
        %1788 = vmatpush.msra.mxu0 0.0
        %1789 = vmatpush.msra.mxu0 0.0
        %1790 = vmatpush.msra.mxu0 0.0
        %1791 = vmatpush.msra.mxu0 0.0
        %1792 = vmatpush.msra.mxu0 0.0
        %1793 = vmatpush.msra.mxu0 0.0
        %1794 = vmatpush.msra.mxu0 %v1777
        %1795 = vmatmul.f32.gmra.mxu0 %v1774
        %v1796 = vpop.f32.mrf.mxu0
        %v1797 = vadd.f32 0.0, %v1796
        %1798 = vdwg.mxu0
        %v1799 = vadd.f32 %v1732, %v1797
        %v1800 = vld [vmem:[%s6] sm:$0xf]
        %1802 = vset.pattern.permute.xlu0 0
        %1803 = vperm.xlu0 %1802, %v1800
        %v1804 = vpop.permute.xlu0 %1803
        %v1806 = vadd.f32 %v1799, %v1804
        %v1807 = vld [vmem:[%s7] sm:$0xff]
        %vm1808 = vcmask 64512
        %v1810 = vsel %vm1808, %v1806, 0
        %1812 = vmatpush.msra.mxu0 0.0
        %1813 = vmatpush.msra.mxu0 0.0
        %1814 = vmatpush.msra.mxu0 0.0
        %1815 = vmatpush.msra.mxu0 0.0
        %1816 = vmatpush.msra.mxu0 0.0
        %1817 = vmatpush.msra.mxu0 0.0
        %1818 = vmatpush.msra.mxu0 0.0
        %1819 = vmatpush.msra.mxu0 0.0
        %1820 = vmatpush.msra.mxu0 0.0
        %1821 = vmatpush.msra.mxu0 0.0
        %1822 = vmatpush.msra.mxu0 0.0
        %1823 = vmatpush.msra.mxu0 0.0
        %1824 = vmatpush.msra.mxu0 0.0
        %1825 = vmatpush.msra.mxu0 0.0
        %1826 = vmatpush.msra.mxu0 0.0
        %1827 = vmatpush.msra.mxu0 %v1807
        %1828 = vmatmul.f32.gmra.mxu0 %v1810
        %v1829 = vpop.f32.mrf.mxu0
        %v1830 = vadd.f32 0.0, %v1829
        %1831 = vdwg.mxu0
        %1832 = vst [vmem:[#allocation3] sm:$0xf] %v1830
        %v1833 = vld [vmem:[%s7] sm:$0xff]
        %1834 = vrot.lane.b32.xlu0 %v1806, 120
        %v1835 = vpop.permute.xlu0 %1834
        %v1836 = vsel %vm1808, %v1835, 0
        %1838 = vmatpush.msra.mxu0 0.0
        %1839 = vmatpush.msra.mxu0 0.0
        %1840 = vmatpush.msra.mxu0 0.0
        %1841 = vmatpush.msra.mxu0 0.0
        %1842 = vmatpush.msra.mxu0 0.0
        %1843 = vmatpush.msra.mxu0 0.0
        %1844 = vmatpush.msra.mxu0 0.0
        %1845 = vmatpush.msra.mxu0 0.0
        %1846 = vmatpush.msra.mxu0 0.0
        %1847 = vmatpush.msra.mxu0 0.0
        %1848 = vmatpush.msra.mxu0 0.0
        %1849 = vmatpush.msra.mxu0 0.0
        %1850 = vmatpush.msra.mxu0 0.0
        %1851 = vmatpush.msra.mxu0 0.0
        %1852 = vmatpush.msra.mxu0 0.0
        %1853 = vmatpush.msra.mxu0 %v1833
        %1854 = vmatmul.f32.gmra.mxu0 %v1836
        %v1855 = vpop.f32.mrf.mxu0
        %v1856 = vadd.f32 0.0, %v1855
        %1857 = vdwg.mxu0
        %1858 = vst [vmem:[#allocation3 + $0x4] sm:$0xf] %v1856
        %v1859 = vld [vmem:[%s7] sm:$0xff]
        %1860 = vrot.lane.b32.xlu0 %v1806, 112
        %v1861 = vpop.permute.xlu0 %1860
        %v1862 = vsel %vm1808, %v1861, 0
        %1864 = vmatpush.msra.mxu0 0.0
        %1865 = vmatpush.msra.mxu0 0.0
        %1866 = vmatpush.msra.mxu0 0.0
        %1867 = vmatpush.msra.mxu0 0.0
        %1868 = vmatpush.msra.mxu0 0.0
        %1869 = vmatpush.msra.mxu0 0.0
        %1870 = vmatpush.msra.mxu0 0.0
        %1871 = vmatpush.msra.mxu0 0.0
        %1872 = vmatpush.msra.mxu0 0.0
        %1873 = vmatpush.msra.mxu0 0.0
        %1874 = vmatpush.msra.mxu0 0.0
        %1875 = vmatpush.msra.mxu0 0.0
        %1876 = vmatpush.msra.mxu0 0.0
        %1877 = vmatpush.msra.mxu0 0.0
        %1878 = vmatpush.msra.mxu0 0.0
        %1879 = vmatpush.msra.mxu0 %v1859
        %1880 = vmatmul.f32.gmra.mxu0 %v1862
        %v1881 = vpop.f32.mrf.mxu0
        %v1882 = vadd.f32 0.0, %v1881
        %1883 = vdwg.mxu0
        %1884 = vst [vmem:[#allocation3 + $0x8] sm:$0xf] %v1882
        %v1885 = vld [vmem:[%s7] sm:$0xff]
        %1886 = vrot.lane.b32.xlu0 %v1806, 104
        %v1887 = vpop.permute.xlu0 %1886
        %v1888 = vsel %vm1808, %v1887, 0
        %1890 = vmatpush.msra.mxu0 0.0
        %1891 = vmatpush.msra.mxu0 0.0
        %1892 = vmatpush.msra.mxu0 0.0
        %1893 = vmatpush.msra.mxu0 0.0
        %1894 = vmatpush.msra.mxu0 0.0
        %1895 = vmatpush.msra.mxu0 0.0
        %1896 = vmatpush.msra.mxu0 0.0
        %1897 = vmatpush.msra.mxu0 0.0
        %1898 = vmatpush.msra.mxu0 0.0
        %1899 = vmatpush.msra.mxu0 0.0
        %1900 = vmatpush.msra.mxu0 0.0
        %1901 = vmatpush.msra.mxu0 0.0
        %1902 = vmatpush.msra.mxu0 0.0
        %1903 = vmatpush.msra.mxu0 0.0
        %1904 = vmatpush.msra.mxu0 0.0
        %1905 = vmatpush.msra.mxu0 %v1885
        %1906 = vmatmul.f32.gmra.mxu0 %v1888
        %v1907 = vpop.f32.mrf.mxu0
        %v1908 = vadd.f32 0.0, %v1907
        %1909 = vdwg.mxu0
        %1910 = vst [vmem:[#allocation3 + $0xc] sm:$0xf] %v1908
        %v1911 = vld [vmem:[%s7] sm:$0xff]
        %1912 = vrot.lane.b32.xlu0 %v1806, 96
        %v1913 = vpop.permute.xlu0 %1912
        %v1914 = vsel %vm1808, %v1913, 0
        %1916 = vmatpush.msra.mxu0 0.0
        %1917 = vmatpush.msra.mxu0 0.0
        %1918 = vmatpush.msra.mxu0 0.0
        %1919 = vmatpush.msra.mxu0 0.0
        %1920 = vmatpush.msra.mxu0 0.0
        %1921 = vmatpush.msra.mxu0 0.0
        %1922 = vmatpush.msra.mxu0 0.0
        %1923 = vmatpush.msra.mxu0 0.0
        %1924 = vmatpush.msra.mxu0 0.0
        %1925 = vmatpush.msra.mxu0 0.0
        %1926 = vmatpush.msra.mxu0 0.0
        %1927 = vmatpush.msra.mxu0 0.0
        %1928 = vmatpush.msra.mxu0 0.0
        %1929 = vmatpush.msra.mxu0 0.0
        %1930 = vmatpush.msra.mxu0 0.0
        %1931 = vmatpush.msra.mxu0 %v1911
        %1932 = vmatmul.f32.gmra.mxu0 %v1914
        %v1933 = vpop.f32.mrf.mxu0
        %v1934 = vadd.f32 0.0, %v1933
        %1935 = vdwg.mxu0
        %1936 = vst [vmem:[#allocation3 + $0x10] sm:$0xf] %v1934
        %v1937 = vld [vmem:[%s7] sm:$0xff]
        %1938 = vrot.lane.b32.xlu0 %v1806, 88
        %v1939 = vpop.permute.xlu0 %1938
        %v1940 = vsel %vm1808, %v1939, 0
        %1942 = vmatpush.msra.mxu0 0.0
        %1943 = vmatpush.msra.mxu0 0.0
        %1944 = vmatpush.msra.mxu0 0.0
        %1945 = vmatpush.msra.mxu0 0.0
        %1946 = vmatpush.msra.mxu0 0.0
        %1947 = vmatpush.msra.mxu0 0.0
        %1948 = vmatpush.msra.mxu0 0.0
        %1949 = vmatpush.msra.mxu0 0.0
        %1950 = vmatpush.msra.mxu0 0.0
        %1951 = vmatpush.msra.mxu0 0.0
        %1952 = vmatpush.msra.mxu0 0.0
        %1953 = vmatpush.msra.mxu0 0.0
        %1954 = vmatpush.msra.mxu0 0.0
        %1955 = vmatpush.msra.mxu0 0.0
        %1956 = vmatpush.msra.mxu0 0.0
        %1957 = vmatpush.msra.mxu0 %v1937
        %1958 = vmatmul.f32.gmra.mxu0 %v1940
        %v1959 = vpop.f32.mrf.mxu0
        %v1960 = vadd.f32 0.0, %v1959
        %1961 = vdwg.mxu0
        %1962 = vst [vmem:[#allocation3 + $0x14] sm:$0xf] %v1960
        %v1963 = vld [vmem:[%s7] sm:$0xff]
        %1964 = vrot.lane.b32.xlu0 %v1806, 80
        %v1965 = vpop.permute.xlu0 %1964
        %v1966 = vsel %vm1808, %v1965, 0
        %1968 = vmatpush.msra.mxu0 0.0
        %1969 = vmatpush.msra.mxu0 0.0
        %1970 = vmatpush.msra.mxu0 0.0
        %1971 = vmatpush.msra.mxu0 0.0
        %1972 = vmatpush.msra.mxu0 0.0
        %1973 = vmatpush.msra.mxu0 0.0
        %1974 = vmatpush.msra.mxu0 0.0
        %1975 = vmatpush.msra.mxu0 0.0
        %1976 = vmatpush.msra.mxu0 0.0
        %1977 = vmatpush.msra.mxu0 0.0
        %1978 = vmatpush.msra.mxu0 0.0
        %1979 = vmatpush.msra.mxu0 0.0
        %1980 = vmatpush.msra.mxu0 0.0
        %1981 = vmatpush.msra.mxu0 0.0
        %1982 = vmatpush.msra.mxu0 0.0
        %1983 = vmatpush.msra.mxu0 %v1963
        %1984 = vmatmul.f32.gmra.mxu0 %v1966
        %v1985 = vpop.f32.mrf.mxu0
        %v1986 = vadd.f32 0.0, %v1985
        %1987 = vdwg.mxu0
        %1988 = vst [vmem:[#allocation3 + $0x18] sm:$0xf] %v1986
        %v1989 = vld [vmem:[%s7] sm:$0xff]
        %1990 = vrot.lane.b32.xlu0 %v1806, 72
        %v1991 = vpop.permute.xlu0 %1990
        %v1992 = vsel %vm1808, %v1991, 0
        %1994 = vmatpush.msra.mxu0 0.0
        %1995 = vmatpush.msra.mxu0 0.0
        %1996 = vmatpush.msra.mxu0 0.0
        %1997 = vmatpush.msra.mxu0 0.0
        %1998 = vmatpush.msra.mxu0 0.0
        %1999 = vmatpush.msra.mxu0 0.0
        %2000 = vmatpush.msra.mxu0 0.0
        %2001 = vmatpush.msra.mxu0 0.0
        %2002 = vmatpush.msra.mxu0 0.0
        %2003 = vmatpush.msra.mxu0 0.0
        %2004 = vmatpush.msra.mxu0 0.0
        %2005 = vmatpush.msra.mxu0 0.0
        %2006 = vmatpush.msra.mxu0 0.0
        %2007 = vmatpush.msra.mxu0 0.0
        %2008 = vmatpush.msra.mxu0 0.0
        %2009 = vmatpush.msra.mxu0 %v1989
        %2010 = vmatmul.f32.gmra.mxu0 %v1992
        %v2011 = vpop.f32.mrf.mxu0
        %v2012 = vadd.f32 0.0, %v2011
        %2013 = vdwg.mxu0
        %2014 = vst [vmem:[#allocation3 + $0x1c] sm:$0xf] %v2012
        %v2015 = vld [vmem:[%s8] sm:$0xff]
        %v2016 = vld [vmem:[%s8 + $0x8] sm:$0xff]
        %v2017 = vld [vmem:[%s8 + $0x10] sm:$0xff]
        %v2018 = vld [vmem:[%s8 + $0x18] sm:$0xff]
        %v2019 = vld [vmem:[%s8 + $0x20] sm:$0xff]
        %v2020 = vld [vmem:[%s8 + $0x28] sm:$0xff]
        %v2021 = vld [vmem:[%s8 + $0x30] sm:$0xff]
        %v2022 = vld [vmem:[%s8 + $0x38] sm:$0xff]
        %v2023 = vld [vmem:[%s8 + $0x40] sm:$0xff]
        %v2024 = vld [vmem:[%s8 + $0x48] sm:$0xff]
        %v2025 = vld [vmem:[%s8 + $0x50] sm:$0xff]
        %v2026 = vld [vmem:[%s8 + $0x58] sm:$0xff]
        %v2027 = vld [vmem:[%s8 + $0x60] sm:$0xff]
        %v2028 = vld [vmem:[%s8 + $0x68] sm:$0xff]
        %v2029 = vld [vmem:[%s8 + $0x70] sm:$0xff]
        %v2030 = vld [vmem:[%s8 + $0x78] sm:$0xff]
        %v2031 = vld [vmem:[%s8 + $0x80] sm:$0xff]
        %v2032 = vld [vmem:[%s8 + $0x88] sm:$0xff]
        %v2033 = vld [vmem:[%s8 + $0x90] sm:$0xff]
        %v2034 = vld [vmem:[%s8 + $0x98] sm:$0xff]
        %v2035 = vld [vmem:[%s8 + $0xa0] sm:$0xff]
        %v2036 = vld [vmem:[%s8 + $0xa8] sm:$0xff]
        %v2037 = vld [vmem:[%s8 + $0xb0] sm:$0xff]
        %v2038 = vld [vmem:[%s8 + $0xb8] sm:$0xff]
        %v2039 = vld [vmem:[%s8 + $0xc0] sm:$0xff]
        %v2040 = vld [vmem:[%s8 + $0xc8] sm:$0xff]
        %v2041 = vld [vmem:[%s8 + $0xd0] sm:$0xff]
        %v2042 = vld [vmem:[%s8 + $0xd8] sm:$0xff]
        %v2043 = vld [vmem:[%s8 + $0xe0] sm:$0xff]
        %v2044 = vld [vmem:[%s8 + $0xe8] sm:$0xff]
        %v2045 = vld [vmem:[%s8 + $0xf0] sm:$0xff]
        %v2046 = vld [vmem:[%s8 + $0xf8] sm:$0xff]
        %v2047 = vld [vmem:[%s8 + $0x100] sm:$0xff]
        %v2048 = vld [vmem:[%s8 + $0x108] sm:$0xff]
        %v2049 = vld [vmem:[%s8 + $0x110] sm:$0xff]
        %v2050 = vld [vmem:[%s8 + $0x118] sm:$0xff]
        %v2051 = vld [vmem:[%s8 + $0x120] sm:$0xff]
        %v2052 = vld [vmem:[%s8 + $0x128] sm:$0xff]
        %v2053 = vld [vmem:[%s8 + $0x130] sm:$0xff]
        %v2054 = vld [vmem:[%s8 + $0x138] sm:$0xff]
        %v2055 = vld [vmem:[%s8 + $0x140] sm:$0xff]
        %v2056 = vld [vmem:[%s8 + $0x148] sm:$0xff]
        %v2057 = vld [vmem:[%s8 + $0x150] sm:$0xff]
        %v2058 = vld [vmem:[%s8 + $0x158] sm:$0xff]
        %v2059 = vld [vmem:[%s8 + $0x160] sm:$0xff]
        %v2060 = vld [vmem:[%s8 + $0x168] sm:$0xff]
        %v2061 = vld [vmem:[%s8 + $0x170] sm:$0xff]
        %v2062 = vld [vmem:[%s8 + $0x178] sm:$0xff]
        %v2063 = vld [vmem:[%s8 + $0x180] sm:$0xff]
        %v2064 = vld [vmem:[%s8 + $0x188] sm:$0xff]
        %v2065 = vld [vmem:[%s8 + $0x190] sm:$0xff]
        %v2066 = vld [vmem:[%s8 + $0x198] sm:$0xff]
        %v2067 = vld [vmem:[%s8 + $0x1a0] sm:$0xff]
        %v2068 = vld [vmem:[%s8 + $0x1a8] sm:$0xff]
        %v2069 = vld [vmem:[%s8 + $0x1b0] sm:$0xff]
        %v2070 = vld [vmem:[%s8 + $0x1b8] sm:$0xff]
        %v2071 = vld [vmem:[%s8 + $0x1c0] sm:$0xff]
        %v2072 = vld [vmem:[%s8 + $0x1c8] sm:$0xff]
        %v2073 = vld [vmem:[%s8 + $0x1d0] sm:$0xff]
        %v2074 = vld [vmem:[%s8 + $0x1d8] sm:$0xff]
        %v2075 = vld [vmem:[%s8 + $0x1e0] sm:$0xff]
        %v2076 = vld [vmem:[%s8 + $0x1e8] sm:$0xff]
        %v2077 = vld [vmem:[%s8 + $0x1f0] sm:$0xff]
        %v2078 = vld [vmem:[%s8 + $0x1f8] sm:$0xff]
        %v2079 = vld [vmem:[#allocation3] sm:$0xff]
        %v2080 = vld [vmem:[#allocation3 + $0x8] sm:$0xff]
        %v2081 = vld [vmem:[#allocation3 + $0x10] sm:$0xff]
        %v2082 = vld [vmem:[#allocation3 + $0x18] sm:$0xff]
        %vm2083 = vcmask 261120
        %v2085 = vsel %vm2083, %v2015, 0
        %v2088 = vsel %vm2083, %v2016, 0
        %v2091 = vsel %vm2083, %v2017, 0
        %v2094 = vsel %vm2083, %v2018, 0
        %v2097 = vsel %vm2083, %v2019, 0
        %v2100 = vsel %vm2083, %v2020, 0
        %v2103 = vsel %vm2083, %v2021, 0
        %v2106 = vsel %vm2083, %v2022, 0
        %v2109 = vsel %vm2083, %v2023, 0
        %v2112 = vsel %vm2083, %v2024, 0
        %v2115 = vsel %vm2083, %v2025, 0
        %v2118 = vsel %vm2083, %v2026, 0
        %v2121 = vsel %vm2083, %v2027, 0
        %v2124 = vsel %vm2083, %v2028, 0
        %v2127 = vsel %vm2083, %v2029, 0
        %v2130 = vsel %vm2083, %v2030, 0
        %v2133 = vsel %vm2083, %v2031, 0
        %v2136 = vsel %vm2083, %v2032, 0
        %v2139 = vsel %vm2083, %v2033, 0
        %v2142 = vsel %vm2083, %v2034, 0
        %v2145 = vsel %vm2083, %v2035, 0
        %v2148 = vsel %vm2083, %v2036, 0
        %v2151 = vsel %vm2083, %v2037, 0
        %v2154 = vsel %vm2083, %v2038, 0
        %v2157 = vsel %vm2083, %v2039, 0
        %v2160 = vsel %vm2083, %v2040, 0
        %v2163 = vsel %vm2083, %v2041, 0
        %v2166 = vsel %vm2083, %v2042, 0
        %v2169 = vsel %vm2083, %v2043, 0
        %v2172 = vsel %vm2083, %v2044, 0
        %v2175 = vsel %vm2083, %v2045, 0
        %v2178 = vsel %vm2083, %v2046, 0
        %v2181 = vsel %vm2083, %v2047, 0
        %v2184 = vsel %vm2083, %v2048, 0
        %v2187 = vsel %vm2083, %v2049, 0
        %v2190 = vsel %vm2083, %v2050, 0
        %v2193 = vsel %vm2083, %v2051, 0
        %v2196 = vsel %vm2083, %v2052, 0
        %v2199 = vsel %vm2083, %v2053, 0
        %v2202 = vsel %vm2083, %v2054, 0
        %v2205 = vsel %vm2083, %v2055, 0
        %v2208 = vsel %vm2083, %v2056, 0
        %v2211 = vsel %vm2083, %v2057, 0
        %v2214 = vsel %vm2083, %v2058, 0
        %v2217 = vsel %vm2083, %v2059, 0
        %v2220 = vsel %vm2083, %v2060, 0
        %v2223 = vsel %vm2083, %v2061, 0
        %v2226 = vsel %vm2083, %v2062, 0
        %v2229 = vsel %vm2083, %v2063, 0
        %v2232 = vsel %vm2083, %v2064, 0
        %v2235 = vsel %vm2083, %v2065, 0
        %v2238 = vsel %vm2083, %v2066, 0
        %v2241 = vsel %vm2083, %v2067, 0
        %v2244 = vsel %vm2083, %v2068, 0
        %v2247 = vsel %vm2083, %v2069, 0
        %v2250 = vsel %vm2083, %v2070, 0
        %v2253 = vsel %vm2083, %v2071, 0
        %v2256 = vsel %vm2083, %v2072, 0
        %v2259 = vsel %vm2083, %v2073, 0
        %v2262 = vsel %vm2083, %v2074, 0
        %v2265 = vsel %vm2083, %v2075, 0
        %v2268 = vsel %vm2083, %v2076, 0
        %v2271 = vsel %vm2083, %v2077, 0
        %v2274 = vsel %vm2083, %v2078, 0
        %2276 = vmatpush.msra.mxu0 0.0
        %2277 = vmatpush.msra.mxu0 0.0
        %2278 = vmatpush.msra.mxu0 0.0
        %2279 = vmatpush.msra.mxu0 0.0
        %2280 = vmatpush.msra.mxu0 0.0
        %2281 = vmatpush.msra.mxu0 0.0
        %2282 = vmatpush.msra.mxu0 0.0
        %2283 = vmatpush.msra.mxu0 0.0
        %2284 = vmatpush.msra.mxu0 0.0
        %2285 = vmatpush.msra.mxu0 0.0
        %2286 = vmatpush.msra.mxu0 0.0
        %2287 = vmatpush.msra.mxu0 0.0
        %2288 = vmatpush.msra.mxu0 %v2082
        %2289 = vmatpush.msra.mxu0 %v2081
        %2290 = vmatpush.msra.mxu0 %v2080
        %2291 = vmatpush.msra.mxu0 %v2079
        %2292 = vmatmul.f32.gmra.mxu0 %v2085
        %v2293 = vpop.f32.mrf.mxu0
        %v2294 = vadd.f32 0.0, %v2293
        %2295 = vmatmul.f32.gmra.mxu0 %v2088
        %v2296 = vpop.f32.mrf.mxu0
        %v2297 = vadd.f32 0.0, %v2296
        %2298 = vmatmul.f32.gmra.mxu0 %v2091
        %v2299 = vpop.f32.mrf.mxu0
        %v2300 = vadd.f32 0.0, %v2299
        %2301 = vmatmul.f32.gmra.mxu0 %v2094
        %v2302 = vpop.f32.mrf.mxu0
        %v2303 = vadd.f32 0.0, %v2302
        %2304 = vmatmul.f32.gmra.mxu0 %v2097
        %v2305 = vpop.f32.mrf.mxu0
        %v2306 = vadd.f32 0.0, %v2305
        %2307 = vmatmul.f32.gmra.mxu0 %v2100
        %v2308 = vpop.f32.mrf.mxu0
        %v2309 = vadd.f32 0.0, %v2308
        %2310 = vmatmul.f32.gmra.mxu0 %v2103
        %v2311 = vpop.f32.mrf.mxu0
        %v2312 = vadd.f32 0.0, %v2311
        %2313 = vmatmul.f32.gmra.mxu0 %v2106
        %v2314 = vpop.f32.mrf.mxu0
        %v2315 = vadd.f32 0.0, %v2314
        %2316 = vmatmul.f32.gmra.mxu0 %v2109
        %v2317 = vpop.f32.mrf.mxu0
        %v2318 = vadd.f32 0.0, %v2317
        %2319 = vmatmul.f32.gmra.mxu0 %v2112
        %v2320 = vpop.f32.mrf.mxu0
        %v2321 = vadd.f32 0.0, %v2320
        %2322 = vmatmul.f32.gmra.mxu0 %v2115
        %v2323 = vpop.f32.mrf.mxu0
        %v2324 = vadd.f32 0.0, %v2323
        %2325 = vmatmul.f32.gmra.mxu0 %v2118
        %v2326 = vpop.f32.mrf.mxu0
        %v2327 = vadd.f32 0.0, %v2326
        %2328 = vmatmul.f32.gmra.mxu0 %v2121
        %v2329 = vpop.f32.mrf.mxu0
        %v2330 = vadd.f32 0.0, %v2329
        %2331 = vmatmul.f32.gmra.mxu0 %v2124
        %v2332 = vpop.f32.mrf.mxu0
        %v2333 = vadd.f32 0.0, %v2332
        %2334 = vmatmul.f32.gmra.mxu0 %v2127
        %v2335 = vpop.f32.mrf.mxu0
        %v2336 = vadd.f32 0.0, %v2335
        %2337 = vmatmul.f32.gmra.mxu0 %v2130
        %v2338 = vpop.f32.mrf.mxu0
        %v2339 = vadd.f32 0.0, %v2338
        %2340 = vmatmul.f32.gmra.mxu0 %v2133
        %v2341 = vpop.f32.mrf.mxu0
        %v2342 = vadd.f32 0.0, %v2341
        %2343 = vmatmul.f32.gmra.mxu0 %v2136
        %v2344 = vpop.f32.mrf.mxu0
        %v2345 = vadd.f32 0.0, %v2344
        %2346 = vmatmul.f32.gmra.mxu0 %v2139
        %v2347 = vpop.f32.mrf.mxu0
        %v2348 = vadd.f32 0.0, %v2347
        %2349 = vmatmul.f32.gmra.mxu0 %v2142
        %v2350 = vpop.f32.mrf.mxu0
        %v2351 = vadd.f32 0.0, %v2350
        %2352 = vmatmul.f32.gmra.mxu0 %v2145
        %v2353 = vpop.f32.mrf.mxu0
        %v2354 = vadd.f32 0.0, %v2353
        %2355 = vmatmul.f32.gmra.mxu0 %v2148
        %v2356 = vpop.f32.mrf.mxu0
        %v2357 = vadd.f32 0.0, %v2356
        %2358 = vmatmul.f32.gmra.mxu0 %v2151
        %v2359 = vpop.f32.mrf.mxu0
        %v2360 = vadd.f32 0.0, %v2359
        %2361 = vmatmul.f32.gmra.mxu0 %v2154
        %v2362 = vpop.f32.mrf.mxu0
        %v2363 = vadd.f32 0.0, %v2362
        %2364 = vmatmul.f32.gmra.mxu0 %v2157
        %v2365 = vpop.f32.mrf.mxu0
        %v2366 = vadd.f32 0.0, %v2365
        %2367 = vmatmul.f32.gmra.mxu0 %v2160
        %v2368 = vpop.f32.mrf.mxu0
        %v2369 = vadd.f32 0.0, %v2368
        %2370 = vmatmul.f32.gmra.mxu0 %v2163
        %v2371 = vpop.f32.mrf.mxu0
        %v2372 = vadd.f32 0.0, %v2371
        %2373 = vmatmul.f32.gmra.mxu0 %v2166
        %v2374 = vpop.f32.mrf.mxu0
        %v2375 = vadd.f32 0.0, %v2374
        %2376 = vmatmul.f32.gmra.mxu0 %v2169
        %v2377 = vpop.f32.mrf.mxu0
        %v2378 = vadd.f32 0.0, %v2377
        %2379 = vmatmul.f32.gmra.mxu0 %v2172
        %v2380 = vpop.f32.mrf.mxu0
        %v2381 = vadd.f32 0.0, %v2380
        %2382 = vmatmul.f32.gmra.mxu0 %v2175
        %v2383 = vpop.f32.mrf.mxu0
        %v2384 = vadd.f32 0.0, %v2383
        %2385 = vmatmul.f32.gmra.mxu0 %v2178
        %v2386 = vpop.f32.mrf.mxu0
        %v2387 = vadd.f32 0.0, %v2386
        %2388 = vmatmul.f32.gmra.mxu0 %v2181
        %v2389 = vpop.f32.mrf.mxu0
        %v2390 = vadd.f32 0.0, %v2389
        %2391 = vmatmul.f32.gmra.mxu0 %v2184
        %v2392 = vpop.f32.mrf.mxu0
        %v2393 = vadd.f32 0.0, %v2392
        %2394 = vmatmul.f32.gmra.mxu0 %v2187
        %v2395 = vpop.f32.mrf.mxu0
        %v2396 = vadd.f32 0.0, %v2395
        %2397 = vmatmul.f32.gmra.mxu0 %v2190
        %v2398 = vpop.f32.mrf.mxu0
        %v2399 = vadd.f32 0.0, %v2398
        %2400 = vmatmul.f32.gmra.mxu0 %v2193
        %v2401 = vpop.f32.mrf.mxu0
        %v2402 = vadd.f32 0.0, %v2401
        %2403 = vmatmul.f32.gmra.mxu0 %v2196
        %v2404 = vpop.f32.mrf.mxu0
        %v2405 = vadd.f32 0.0, %v2404
        %2406 = vmatmul.f32.gmra.mxu0 %v2199
        %v2407 = vpop.f32.mrf.mxu0
        %v2408 = vadd.f32 0.0, %v2407
        %2409 = vmatmul.f32.gmra.mxu0 %v2202
        %v2410 = vpop.f32.mrf.mxu0
        %v2411 = vadd.f32 0.0, %v2410
        %2412 = vmatmul.f32.gmra.mxu0 %v2205
        %v2413 = vpop.f32.mrf.mxu0
        %v2414 = vadd.f32 0.0, %v2413
        %2415 = vmatmul.f32.gmra.mxu0 %v2208
        %v2416 = vpop.f32.mrf.mxu0
        %v2417 = vadd.f32 0.0, %v2416
        %2418 = vmatmul.f32.gmra.mxu0 %v2211
        %v2419 = vpop.f32.mrf.mxu0
        %v2420 = vadd.f32 0.0, %v2419
        %2421 = vmatmul.f32.gmra.mxu0 %v2214
        %v2422 = vpop.f32.mrf.mxu0
        %v2423 = vadd.f32 0.0, %v2422
        %2424 = vmatmul.f32.gmra.mxu0 %v2217
        %v2425 = vpop.f32.mrf.mxu0
        %v2426 = vadd.f32 0.0, %v2425
        %2427 = vmatmul.f32.gmra.mxu0 %v2220
        %v2428 = vpop.f32.mrf.mxu0
        %v2429 = vadd.f32 0.0, %v2428
        %2430 = vmatmul.f32.gmra.mxu0 %v2223
        %v2431 = vpop.f32.mrf.mxu0
        %v2432 = vadd.f32 0.0, %v2431
        %2433 = vmatmul.f32.gmra.mxu0 %v2226
        %v2434 = vpop.f32.mrf.mxu0
        %v2435 = vadd.f32 0.0, %v2434
        %2436 = vmatmul.f32.gmra.mxu0 %v2229
        %v2437 = vpop.f32.mrf.mxu0
        %v2438 = vadd.f32 0.0, %v2437
        %2439 = vmatmul.f32.gmra.mxu0 %v2232
        %v2440 = vpop.f32.mrf.mxu0
        %v2441 = vadd.f32 0.0, %v2440
        %2442 = vmatmul.f32.gmra.mxu0 %v2235
        %v2443 = vpop.f32.mrf.mxu0
        %v2444 = vadd.f32 0.0, %v2443
        %2445 = vmatmul.f32.gmra.mxu0 %v2238
        %v2446 = vpop.f32.mrf.mxu0
        %v2447 = vadd.f32 0.0, %v2446
        %2448 = vmatmul.f32.gmra.mxu0 %v2241
        %v2449 = vpop.f32.mrf.mxu0
        %v2450 = vadd.f32 0.0, %v2449
        %2451 = vmatmul.f32.gmra.mxu0 %v2244
        %v2452 = vpop.f32.mrf.mxu0
        %v2453 = vadd.f32 0.0, %v2452
        %2454 = vmatmul.f32.gmra.mxu0 %v2247
        %v2455 = vpop.f32.mrf.mxu0
        %v2456 = vadd.f32 0.0, %v2455
        %2457 = vmatmul.f32.gmra.mxu0 %v2250
        %v2458 = vpop.f32.mrf.mxu0
        %v2459 = vadd.f32 0.0, %v2458
        %2460 = vmatmul.f32.gmra.mxu0 %v2253
        %v2461 = vpop.f32.mrf.mxu0
        %v2462 = vadd.f32 0.0, %v2461
        %2463 = vmatmul.f32.gmra.mxu0 %v2256
        %v2464 = vpop.f32.mrf.mxu0
        %v2465 = vadd.f32 0.0, %v2464
        %2466 = vmatmul.f32.gmra.mxu0 %v2259
        %v2467 = vpop.f32.mrf.mxu0
        %v2468 = vadd.f32 0.0, %v2467
        %2469 = vmatmul.f32.gmra.mxu0 %v2262
        %v2470 = vpop.f32.mrf.mxu0
        %v2471 = vadd.f32 0.0, %v2470
        %2472 = vmatmul.f32.gmra.mxu0 %v2265
        %v2473 = vpop.f32.mrf.mxu0
        %v2474 = vadd.f32 0.0, %v2473
        %2475 = vmatmul.f32.gmra.mxu0 %v2268
        %v2476 = vpop.f32.mrf.mxu0
        %v2477 = vadd.f32 0.0, %v2476
        %2478 = vmatmul.f32.gmra.mxu0 %v2271
        %v2479 = vpop.f32.mrf.mxu0
        %v2480 = vadd.f32 0.0, %v2479
        %2481 = vmatmul.f32.gmra.mxu0 %v2274
        %v2482 = vpop.f32.mrf.mxu0
        %v2483 = vadd.f32 0.0, %v2482
        %2484 = vdwg.mxu0
        %s2485 = scalar_lea.vmem %s352, 512 [#allocation7]
        %2486 = vst [vmem:[%s2485] sm:$0xff] %v2294
        %2487 = vst [vmem:[%s2485 + $0x8] sm:$0xff] %v2297
        %2488 = vst [vmem:[%s2485 + $0x10] sm:$0xff] %v2300
        %2489 = vst [vmem:[%s2485 + $0x18] sm:$0xff] %v2303
        %2490 = vst [vmem:[%s2485 + $0x20] sm:$0xff] %v2306
        %2491 = vst [vmem:[%s2485 + $0x28] sm:$0xff] %v2309
        %2492 = vst [vmem:[%s2485 + $0x30] sm:$0xff] %v2312
        %2493 = vst [vmem:[%s2485 + $0x38] sm:$0xff] %v2315
        %2494 = vst [vmem:[%s2485 + $0x40] sm:$0xff] %v2318
        %2495 = vst [vmem:[%s2485 + $0x48] sm:$0xff] %v2321
        %2496 = vst [vmem:[%s2485 + $0x50] sm:$0xff] %v2324
        %2497 = vst [vmem:[%s2485 + $0x58] sm:$0xff] %v2327
        %2498 = vst [vmem:[%s2485 + $0x60] sm:$0xff] %v2330
        %2499 = vst [vmem:[%s2485 + $0x68] sm:$0xff] %v2333
        %2500 = vst [vmem:[%s2485 + $0x70] sm:$0xff] %v2336
        %2501 = vst [vmem:[%s2485 + $0x78] sm:$0xff] %v2339
        %2502 = vst [vmem:[%s2485 + $0x80] sm:$0xff] %v2342
        %2503 = vst [vmem:[%s2485 + $0x88] sm:$0xff] %v2345
        %2504 = vst [vmem:[%s2485 + $0x90] sm:$0xff] %v2348
        %2505 = vst [vmem:[%s2485 + $0x98] sm:$0xff] %v2351
        %2506 = vst [vmem:[%s2485 + $0xa0] sm:$0xff] %v2354
        %2507 = vst [vmem:[%s2485 + $0xa8] sm:$0xff] %v2357
        %2508 = vst [vmem:[%s2485 + $0xb0] sm:$0xff] %v2360
        %2509 = vst [vmem:[%s2485 + $0xb8] sm:$0xff] %v2363
        %2510 = vst [vmem:[%s2485 + $0xc0] sm:$0xff] %v2366
        %2511 = vst [vmem:[%s2485 + $0xc8] sm:$0xff] %v2369
        %2512 = vst [vmem:[%s2485 + $0xd0] sm:$0xff] %v2372
        %2513 = vst [vmem:[%s2485 + $0xd8] sm:$0xff] %v2375
        %2514 = vst [vmem:[%s2485 + $0xe0] sm:$0xff] %v2378
        %2515 = vst [vmem:[%s2485 + $0xe8] sm:$0xff] %v2381
        %2516 = vst [vmem:[%s2485 + $0xf0] sm:$0xff] %v2384
        %2517 = vst [vmem:[%s2485 + $0xf8] sm:$0xff] %v2387
        %2518 = vst [vmem:[%s2485 + $0x100] sm:$0xff] %v2390
        %2519 = vst [vmem:[%s2485 + $0x108] sm:$0xff] %v2393
        %2520 = vst [vmem:[%s2485 + $0x110] sm:$0xff] %v2396
        %2521 = vst [vmem:[%s2485 + $0x118] sm:$0xff] %v2399
        %2522 = vst [vmem:[%s2485 + $0x120] sm:$0xff] %v2402
        %2523 = vst [vmem:[%s2485 + $0x128] sm:$0xff] %v2405
        %2524 = vst [vmem:[%s2485 + $0x130] sm:$0xff] %v2408
        %2525 = vst [vmem:[%s2485 + $0x138] sm:$0xff] %v2411
        %2526 = vst [vmem:[%s2485 + $0x140] sm:$0xff] %v2414
        %2527 = vst [vmem:[%s2485 + $0x148] sm:$0xff] %v2417
        %2528 = vst [vmem:[%s2485 + $0x150] sm:$0xff] %v2420
        %2529 = vst [vmem:[%s2485 + $0x158] sm:$0xff] %v2423
        %2530 = vst [vmem:[%s2485 + $0x160] sm:$0xff] %v2426
        %2531 = vst [vmem:[%s2485 + $0x168] sm:$0xff] %v2429
        %2532 = vst [vmem:[%s2485 + $0x170] sm:$0xff] %v2432
        %2533 = vst [vmem:[%s2485 + $0x178] sm:$0xff] %v2435
        %2534 = vst [vmem:[%s2485 + $0x180] sm:$0xff] %v2438
        %2535 = vst [vmem:[%s2485 + $0x188] sm:$0xff] %v2441
        %2536 = vst [vmem:[%s2485 + $0x190] sm:$0xff] %v2444
        %2537 = vst [vmem:[%s2485 + $0x198] sm:$0xff] %v2447
        %2538 = vst [vmem:[%s2485 + $0x1a0] sm:$0xff] %v2450
        %2539 = vst [vmem:[%s2485 + $0x1a8] sm:$0xff] %v2453
        %2540 = vst [vmem:[%s2485 + $0x1b0] sm:$0xff] %v2456
        %2541 = vst [vmem:[%s2485 + $0x1b8] sm:$0xff] %v2459
        %2542 = vst [vmem:[%s2485 + $0x1c0] sm:$0xff] %v2462
        %2543 = vst [vmem:[%s2485 + $0x1c8] sm:$0xff] %v2465
        %2544 = vst [vmem:[%s2485 + $0x1d0] sm:$0xff] %v2468
        %2545 = vst [vmem:[%s2485 + $0x1d8] sm:$0xff] %v2471
        %2546 = vst [vmem:[%s2485 + $0x1e0] sm:$0xff] %v2474
        %2547 = vst [vmem:[%s2485 + $0x1e8] sm:$0xff] %v2477
        %2548 = vst [vmem:[%s2485 + $0x1f0] sm:$0xff] %v2480
        %2549 = vst [vmem:[%s2485 + $0x1f8] sm:$0xff] %v2483
        %s2550 = sand.u32 %s228, 1
        %s2551 = scalar_lea.sflag [#allocation6], %s2550
        %s2552 = sand.u32 %s228, 1
        %s2553 = smul.addr %s2552, 1024
        %s2554 = scalar_lea.vmem [#allocation7], %s2553
        // Predicated region
        $region61: #{forward.1} parent=55 // pred_check
          %p2555 = pneg %p238
        $region62: #{forward.1} parent=55 // pred_check_branch
          %2557 = sbr.rel (%p2555) target = $region64
        $region63: #{forward.1} parent=55 // pred_region
          %2559 = vsyncadd %s2551, 0
          %s2560 = smul.addr %s26, 128
          %s2561 = smul.addr %s2560, 8
          %s2562 = scalar_lea.hbm %s9, %s2561
          %s2563 = sshll.u32 %s2554, 4
          %s2564 = int_to_ptr.vmem [resolvable:$true] %s2563
          %s2565 = sshll.u32 %s2562, 4
          %s2566 = int_to_ptr.hbm [resolvable:$true] %s2565
          %2571 = dma.vmem_to_hbm [thread:$0]  %s2564, 16384, %s2566, %s2551, 128, 128, 8
        $region64: #{forward.1} parent=55 // pred_fallthru
          _
      $region56: #{forward.1} parent=5 // pred_fallthru
        _
      %p2572 = scmp.le.s32.totalorder 2, %s21
      // Predicated region
      $region65: #{forward.1} parent=5 // pred_check
        %p2573 = pneg %p2572
      $region66: #{forward.1} parent=5 // pred_check_branch
        %2575 = sbr.rel (%p2573) target = $region68
      $region67: #{forward.1} parent=5 // pred_region
        %s2576 = ssub.s32 %s21, 2
        // Predicated region
        $region69: #{forward.1} parent=67 // pred_check
          %p2577 = pneg %p244
        $region70: #{forward.1} parent=67 // pred_check_branch
          %2579 = sbr.rel (%p2577) target = $region72
        $region71: #{forward.1} parent=67 // pred_region
          %s2580 = sand.u32 %s229, 1
          %s2581 = scalar_lea.sflag [#allocation6], %s2580
          %s2582 = sand.u32 %s229, 1
          %s2583 = smul.addr %s2582, 1024
          %s2584 = scalar_lea.vmem [#allocation7], %s2583
          %2586 = dma.done %s2581, 16384
        $region72: #{forward.1} parent=67 // pred_fallthru
          _
      $region68: #{forward.1} parent=5 // pred_fallthru
        _
    $region6: #{forward.1} parent=1 // loop_footer
      %s25 = sadd.s32 1, %s21
    $region7: #{forward.1} parent=1 // loop_footer_branch
      %20 = sbr.rel target = $region3
    $region8: #{forward.1} parent=1 // loop_exit
      _
    %2587 = vsyncpa [#allocation5], 1
    %s2588 = scalar_lea.sflag [#allocation5], 1
    %2589 = vsyncpa %s2588, 1
    %2590 = vsyncpa [#allocation6], 1
    %s2591 = scalar_lea.sflag [#allocation6], 1
    %2592 = vsyncpa %s2591, 1

</llo_original>
